<compile_context>
chip_gen: v5e
topology: v5e:2x2
jax: 0.10.0
libtpu: 0.0.40
codegen_flags: <defaults>
</compile_context>

<pallas_src>
import math
import jax
import jax.numpy as jnp
from jax.experimental import pallas as pl
from jax.experimental.pallas import tpu as pltpu


# ----------------------------------------------------------------------------
# Fused Inception kernel (B images per grid step, (C, H*W) transposed layout).
# ----------------------------------------------------------------------------
def _make_inception_kernel(H, W):
    HW = H * W
    f32 = jnp.float32

    def kernel(x_ref, masks_ref,
               w1_ref, b1_ref, w2a_ref, b2a_ref, w3_ref, b3_ref,
               w3a_ref, b3a_ref, w5_ref, b5_ref, w4_ref, b4_ref,
               o_ref):
        # x_ref     : (B, Cin, HW)   channels on sublanes, pixels on lanes (lane-dense)
        # masks_ref : (25, HW)       0/1 validity per tap (dy, dx) in [-2, 2]^2
        # wK_ref    : (Cout, K*K*Cin) packed weights (cols ordered ky, kx, ci); bK: (Cout, 1)
        # o_ref     : (B, Ctot, HW)
        B = x_ref.shape[0]
        c1 = w1_ref.shape[0]
        c2_1 = w3_ref.shape[0]
        c3_1 = w5_ref.shape[0]
        c4 = w4_ref.shape[0]
        dt = o_ref.dtype

        # Load the (tiny) weights once per grid step.
        w1, b1 = w1_ref[...], b1_ref[...]
        w2a, b2a = w2a_ref[...], b2a_ref[...]
        w3, b3 = w3_ref[...], b3_ref[...]
        w3a, b3a = w3a_ref[...], b3a_ref[...]
        w5, b5 = w5_ref[...], b5_ref[...]
        w4, b4 = w4_ref[...], b4_ref[...]

        def mask_row(dy, dx):
            t = (dy + 2) * 5 + (dx + 2)
            return masks_ref[t:t + 1, :]                       # (1, HW) 0/1 f32

        def shifted(flat, dy, dx):
            # flat[:, p] -> flat[:, p + dy*W + dx] (circular; invalid lanes masked later)
            d = dy * W + dx
            if d == 0:
                return flat
            return pltpu.roll(flat, shift=(-d) % HW, axis=1)   # XLU lane rotate

        def conv1x1_relu(w, bias, inp):
            y = jnp.dot(w, inp, preferred_element_type=f32)    # (Cout, HW), MXU
            return jnp.maximum(y + bias, 0.0)

        def conv_kxk_relu(w, bias, stem, k):
            # stem (Cin, HW); spatial k x k conv, padding (k-1)//2, as ONE im2col matmul.
            r = (k - 1) // 2
            taps = []
            for dy in range(-r, r + 1):
                for dx in range(-r, r + 1):
                    taps.append(shifted(stem, dy, dx) * mask_row(dy, dx))
            patches = jnp.concatenate(taps, axis=0)            # (k*k*Cin, HW)
            y = jnp.dot(w, patches, preferred_element_type=f32)
            return jnp.maximum(y + bias, 0.0)

        for b in range(B):                                     # short, unrolled
            x = x_ref[b].astype(f32)                           # (Cin, HW), lane-dense

            # branch 1: 1x1 conv
            p1 = conv1x1_relu(w1, b1, x)

            # branch 2: 1x1 -> 3x3 (pad 1), single im2col matmul
            p2 = conv_kxk_relu(w3, b3, conv1x1_relu(w2a, b2a, x), 3)

            # branch 3: 1x1 -> 5x5 (pad 2), single im2col matmul
            p3 = conv_kxk_relu(w5, b5, conv1x1_relu(w3a, b3a, x), 5)

            # branch 4: maxpool 3x3 / stride 1 / pad 1 -> 1x1 conv
            m = x
            for dy in range(-1, 2):
                for dx in range(-1, 2):
                    if dy == 0 and dx == 0:
                        continue
                    cand = jnp.where(mask_row(dy, dx) > 0.5,
                                     shifted(x, dy, dx), float("-inf"))
                    m = jnp.maximum(m, cand)
            p4 = conv1x1_relu(w4, b4, m)

            # Direct per-branch stores into channel (sublane) slices; lanes stay dense.
            off = 0
            o_ref[b, off:off + c1, :] = p1.astype(dt); off += c1
            o_ref[b, off:off + c2_1, :] = p2.astype(dt); off += c2_1
            o_ref[b, off:off + c3_1, :] = p3.astype(dt); off += c3_1
            o_ref[b, off:off + c4, :] = p4.astype(dt)

    return kernel


def _make_tap_masks(H, W):
    """(25, H*W) float32 validity masks for taps (dy, dx) in [-2, 2]^2 (row-major)."""
    p = jnp.arange(H * W, dtype=jnp.int32)
    y, x = p // W, p % W
    rows = []
    for dy in range(-2, 3):
        for dx in range(-2, 3):
            rows.append((y + dy >= 0) & (y + dy < H) & (x + dx >= 0) & (x + dx < W))
    return jnp.stack(rows).astype(jnp.float32)


# ----------------------------------------------------------------------------
# Parameter init (deterministic, PyTorch-Conv2d-like uniform bounds).
# ----------------------------------------------------------------------------
def _conv_init(key, cout, cin, k):
    kw, kb = jax.random.split(key)
    bound = 1.0 / math.sqrt(cin * k * k)
    w = jax.random.uniform(kw, (cout, cin, k, k), jnp.float32, -bound, bound)
    b = jax.random.uniform(kb, (cout,), jnp.float32, -bound, bound)
    return w, b


class InceptionPallas:
    def __init__(self, key, in_c, c1, c2, c3, c4):
        self.in_c, self.c1, self.c2, self.c3, self.c4 = in_c, c1, c2, c3, c4
        ks = jax.random.split(key, 6)
        self.p1_1 = _conv_init(ks[0], c1, in_c, 1)
        self.p2_1 = _conv_init(ks[1], c2[0], in_c, 1)
        self.p2_2 = _conv_init(ks[2], c2[1], c2[0], 3)
        self.p3_1 = _conv_init(ks[3], c3[0], in_c, 1)
        self.p3_2 = _conv_init(ks[4], c3[1], c3[0], 5)
        self.p4_2 = _conv_init(ks[5], c4, in_c, 1)

        # --- pack weights for the kernel (done once, plain JAX) -------------
        def w1x1(w):            # (Cout, Cin, 1, 1) -> (Cout, Cin)
            return w.reshape(w.shape[0], w.shape[1])

        def wkxk(w):            # (Cout, Cin, K, K) -> (Cout, K*K*Cin), cols (ky, kx, ci)
            co, ci, k, _ = w.shape
            return jnp.transpose(w, (0, 2, 3, 1)).reshape(co, k * k * ci)

        def col(b):
            return b.reshape(-1, 1)

        self._packed = (
            w1x1(self.p1_1[0]), col(self.p1_1[1]),
            w1x1(self.p2_1[0]), col(self.p2_1[1]),
            wkxk(self.p2_2[0]), col(self.p2_2[1]),
            w1x1(self.p3_1[0]), col(self.p3_1[1]),
            wkxk(self.p3_2[0]), col(self.p3_2[1]),
            w1x1(self.p4_2[0]), col(self.p4_2[1]),
        )

    def __call__(self, x_nchw):
        N, Cin, H, W = x_nchw.shape
        assert Cin == self.in_c
        HW = H * W
        c1, (c2_0, c2_1), (c3_0, c3_1), c4 = self.c1, self.c2, self.c3, self.c4
        Ctot = c1 + c2_1 + c3_1 + c4

        # Images per grid step (amortizes ~0.35us/step overhead; grid stays parallel).
        B = math.gcd(N, 8)

        x_flat = x_nchw.reshape(N, Cin, HW)     # free: NCHW is already (C, H*W)-major
        masks = _make_tap_masks(H, W)
        kern = _make_inception_kernel(H, W)

        def const_spec(a):                      # whole (small) array, resident each step
            return pl.BlockSpec(a.shape, lambda n: (0, 0))

        weight_specs = [const_spec(a) for a in self._packed]

        out = pl.pallas_call(
            kern,
            out_shape=jax.ShapeDtypeStruct((N, Ctot, HW), x_nchw.dtype),
            grid=(N // B,),
            in_specs=[pl.BlockSpec((B, Cin, HW), lambda n: (n, 0, 0)),
                      const_spec(masks)] + weight_specs,
            out_specs=pl.BlockSpec((B, Ctot, HW), lambda n: (n, 0, 0)),
            compiler_params=pltpu.CompilerParams(
                dimension_semantics=("parallel",),
                vmem_limit_bytes=32 * 1024 * 1024),
        )(x_flat, masks, *self._packed)

        return out.reshape(N, Ctot, H, W)       # already NCHW, no transpose needed


# ----------------------------------------------------------------------------
# Pure-JAX reference (for correctness check), NCHW like the PyTorch module.
# ----------------------------------------------------------------------------
def _ref_conv_relu(x, w, b, pad):
    y = jax.lax.conv_general_dilated(
        x, w, window_strides=(1, 1), padding=[(pad, pad), (pad, pad)],
        dimension_numbers=("NCHW", "OIHW", "NCHW"))
    return jnp.maximum(y + b.reshape(1, -1, 1, 1), 0.0)


def _ref_maxpool3x3(x):
    return jax.lax.reduce_window(
        x, -jnp.inf, jax.lax.max,
        (1, 1, 3, 3), (1, 1, 1, 1), [(0, 0), (0, 0), (1, 1), (1, 1)])


def inception_ref(model, x):
    p1 = _ref_conv_relu(x, *model.p1_1, 0)
    p2 = _ref_conv_relu(_ref_conv_relu(x, *model.p2_1, 0), *model.p2_2, 1)
    p3 = _ref_conv_relu(_ref_conv_relu(x, *model.p3_1, 0), *model.p3_2, 2)
    p4 = _ref_conv_relu(_ref_maxpool3x3(x), *model.p4_2, 0)
    return jnp.concatenate([p1, p2, p3, p4], axis=1)


if __name__ == "__main__":
    key = jax.random.PRNGKey(0)
    kx, kp = jax.random.split(key)

    N, in_c, H, W = 2, 4, 16, 16
    c1, c2, c3, c4 = 4, (4, 8), (2, 4), 4

    x = jax.random.normal(kx, (N, in_c, H, W), jnp.float32)   # NCHW like PyTorch
    model = InceptionPallas(kp, in_c, c1, c2, c3, c4)

    out = jax.block_until_ready(model(x))
    assert out.shape == (N, c1 + c2[1] + c3[1] + c4, H, W), out.shape

    ref = jax.block_until_ready(inception_ref(model, x))
    assert jnp.allclose(out, ref, atol=5e-4, rtol=5e-4), (
        "mismatch vs reference, max abs err = %f" % float(jnp.max(jnp.abs(out - ref))))

    print("KERNEL_OK")
</pallas_src>

<mosaic_0001>
module attributes {stable_mosaic.version = 11 : i64} {
  func.func @kernel(%arg0: i32, %arg1: memref<2x4x256xf32, #tpu.memory_space<vmem>>, %arg2: memref<25x256xf32, #tpu.memory_space<vmem>>, %arg3: memref<4x4xf32, #tpu.memory_space<vmem>>, %arg4: memref<4x1xf32, #tpu.memory_space<vmem>>, %arg5: memref<4x4xf32, #tpu.memory_space<vmem>>, %arg6: memref<4x1xf32, #tpu.memory_space<vmem>>, %arg7: memref<8x36xf32, #tpu.memory_space<vmem>>, %arg8: memref<8x1xf32, #tpu.memory_space<vmem>>, %arg9: memref<2x4xf32, #tpu.memory_space<vmem>>, %arg10: memref<2x1xf32, #tpu.memory_space<vmem>>, %arg11: memref<4x50xf32, #tpu.memory_space<vmem>>, %arg12: memref<4x1xf32, #tpu.memory_space<vmem>>, %arg13: memref<4x4xf32, #tpu.memory_space<vmem>>, %arg14: memref<4x1xf32, #tpu.memory_space<vmem>>, %arg15: memref<2x20x256xf32, #tpu.memory_space<vmem>>) attributes {dimension_semantics = [#tpu.dimension_semantics<parallel>], iteration_bounds = array<i64: 1>, scalar_prefetch = 0 : i64, scratch_operands = 0 : i64, tpu.core_type = #tpu.core_type<tc>, window_params = [{transform_indices = @transform_0, window_bounds = array<i64: 2, 4, 256>}, {pipeline_mode = #tpu.pipeline_mode<synchronous>, transform_indices = @transform_1, window_bounds = array<i64: 25, 256>}, {pipeline_mode = #tpu.pipeline_mode<synchronous>, transform_indices = @transform_2, window_bounds = array<i64: 4, 4>}, {pipeline_mode = #tpu.pipeline_mode<synchronous>, transform_indices = @transform_3, window_bounds = array<i64: 4, 1>}, {pipeline_mode = #tpu.pipeline_mode<synchronous>, transform_indices = @transform_4, window_bounds = array<i64: 4, 4>}, {pipeline_mode = #tpu.pipeline_mode<synchronous>, transform_indices = @transform_5, window_bounds = array<i64: 4, 1>}, {pipeline_mode = #tpu.pipeline_mode<synchronous>, transform_indices = @transform_6, window_bounds = array<i64: 8, 36>}, {pipeline_mode = #tpu.pipeline_mode<synchronous>, transform_indices = @transform_7, window_bounds = array<i64: 8, 1>}, {pipeline_mode = #tpu.pipeline_mode<synchronous>, transform_indices = @transform_8, window_bounds = array<i64: 2, 4>}, {pipeline_mode = #tpu.pipeline_mode<synchronous>, transform_indices = @transform_9, window_bounds = array<i64: 2, 1>}, {pipeline_mode = #tpu.pipeline_mode<synchronous>, transform_indices = @transform_10, window_bounds = array<i64: 4, 50>}, {pipeline_mode = #tpu.pipeline_mode<synchronous>, transform_indices = @transform_11, window_bounds = array<i64: 4, 1>}, {pipeline_mode = #tpu.pipeline_mode<synchronous>, transform_indices = @transform_12, window_bounds = array<i64: 4, 4>}, {pipeline_mode = #tpu.pipeline_mode<synchronous>, transform_indices = @transform_13, window_bounds = array<i64: 4, 1>}, {transform_indices = @transform_14, window_bounds = array<i64: 2, 20, 256>}]} {
    %c0 = arith.constant 0 : index
    %c0_0 = arith.constant 0 : index
    %0 = vector.load %arg3[%c0, %c0_0] : memref<4x4xf32, #tpu.memory_space<vmem>>, vector<4x4xf32>
    %c0_1 = arith.constant 0 : index
    %c0_2 = arith.constant 0 : index
    %1 = vector.load %arg4[%c0_1, %c0_2] : memref<4x1xf32, #tpu.memory_space<vmem>>, vector<4x1xf32>
    %c0_3 = arith.constant 0 : index
    %c0_4 = arith.constant 0 : index
    %2 = vector.load %arg5[%c0_3, %c0_4] : memref<4x4xf32, #tpu.memory_space<vmem>>, vector<4x4xf32>
    %c0_5 = arith.constant 0 : index
    %c0_6 = arith.constant 0 : index
    %3 = vector.load %arg6[%c0_5, %c0_6] : memref<4x1xf32, #tpu.memory_space<vmem>>, vector<4x1xf32>
    %c0_7 = arith.constant 0 : index
    %c0_8 = arith.constant 0 : index
    %4 = vector.load %arg7[%c0_7, %c0_8] : memref<8x36xf32, #tpu.memory_space<vmem>>, vector<8x36xf32>
    %c0_9 = arith.constant 0 : index
    %c0_10 = arith.constant 0 : index
    %5 = vector.load %arg8[%c0_9, %c0_10] : memref<8x1xf32, #tpu.memory_space<vmem>>, vector<8x1xf32>
    %c0_11 = arith.constant 0 : index
    %c0_12 = arith.constant 0 : index
    %6 = vector.load %arg9[%c0_11, %c0_12] : memref<2x4xf32, #tpu.memory_space<vmem>>, vector<2x4xf32>
    %c0_13 = arith.constant 0 : index
    %c0_14 = arith.constant 0 : index
    %7 = vector.load %arg10[%c0_13, %c0_14] : memref<2x1xf32, #tpu.memory_space<vmem>>, vector<2x1xf32>
    %c0_15 = arith.constant 0 : index
    %c0_16 = arith.constant 0 : index
    %8 = vector.load %arg11[%c0_15, %c0_16] : memref<4x50xf32, #tpu.memory_space<vmem>>, vector<4x50xf32>
    %c0_17 = arith.constant 0 : index
    %c0_18 = arith.constant 0 : index
    %9 = vector.load %arg12[%c0_17, %c0_18] : memref<4x1xf32, #tpu.memory_space<vmem>>, vector<4x1xf32>
    %c0_19 = arith.constant 0 : index
    %c0_20 = arith.constant 0 : index
    %10 = vector.load %arg13[%c0_19, %c0_20] : memref<4x4xf32, #tpu.memory_space<vmem>>, vector<4x4xf32>
    %c0_21 = arith.constant 0 : index
    %c0_22 = arith.constant 0 : index
    %11 = vector.load %arg14[%c0_21, %c0_22] : memref<4x1xf32, #tpu.memory_space<vmem>>, vector<4x1xf32>
    %c0_23 = arith.constant 0 : index
    %c0_24 = arith.constant 0 : index
    %c0_25 = arith.constant 0 : index
    %12 = vector.load %arg1[%c0_23, %c0_24, %c0_25] : memref<2x4x256xf32, #tpu.memory_space<vmem>>, vector<1x4x256xf32>
    %13 = vector.shape_cast %12 : vector<1x4x256xf32> to vector<4x256xf32>
    %cst = arith.constant dense<0.000000e+00> : vector<4x256xf32>
    %14 = tpu.matmul %0, %13, %cst {dimension_numbers = #tpu.dot_dimension_numbers<[1], [0], [0], [1], [0, 0, 1, 1], [], []>} : vector<4x4xf32>, vector<4x256xf32>, vector<4x256xf32> -> vector<4x256xf32>
    %15 = vector.broadcast %1 : vector<4x1xf32> to vector<4x256xf32>
    %16 = arith.addf %14, %15 : vector<4x256xf32>
    %cst_26 = arith.constant 0.000000e+00 : f32
    %17 = vector.broadcast %cst_26 : f32 to vector<4x256xf32>
    %18 = arith.maximumf %16, %17 : vector<4x256xf32>
    %cst_27 = arith.constant dense<0.000000e+00> : vector<4x256xf32>
    %19 = tpu.matmul %2, %13, %cst_27 {dimension_numbers = #tpu.dot_dimension_numbers<[1], [0], [0], [1], [0, 0, 1, 1], [], []>} : vector<4x4xf32>, vector<4x256xf32>, vector<4x256xf32> -> vector<4x256xf32>
    %20 = vector.broadcast %3 : vector<4x1xf32> to vector<4x256xf32>
    %21 = arith.addf %19, %20 : vector<4x256xf32>
    %cst_28 = arith.constant 0.000000e+00 : f32
    %22 = vector.broadcast %cst_28 : f32 to vector<4x256xf32>
    %23 = arith.maximumf %21, %22 : vector<4x256xf32>
    %c17_i32 = arith.constant 17 : i32
    %24 = tpu.dynamic_rotate %23 by %c17_i32 dim 1 : vector<4x256xf32>, i32 -> vector<4x256xf32>
    %c6 = arith.constant 6 : index
    %c0_29 = arith.constant 0 : index
    %25 = vector.load %arg2[%c6, %c0_29] : memref<25x256xf32, #tpu.memory_space<vmem>>, vector<1x256xf32>
    %26 = vector.broadcast %25 : vector<1x256xf32> to vector<4x256xf32>
    %27 = arith.mulf %24, %26 : vector<4x256xf32>
    %c16_i32 = arith.constant 16 : i32
    %28 = tpu.dynamic_rotate %23 by %c16_i32 dim 1 : vector<4x256xf32>, i32 -> vector<4x256xf32>
    %c7 = arith.constant 7 : index
    %c0_30 = arith.constant 0 : index
    %29 = vector.load %arg2[%c7, %c0_30] : memref<25x256xf32, #tpu.memory_space<vmem>>, vector<1x256xf32>
    %30 = vector.broadcast %29 : vector<1x256xf32> to vector<4x256xf32>
    %31 = arith.mulf %28, %30 : vector<4x256xf32>
    %c15_i32 = arith.constant 15 : i32
    %32 = tpu.dynamic_rotate %23 by %c15_i32 dim 1 : vector<4x256xf32>, i32 -> vector<4x256xf32>
    %c8 = arith.constant 8 : index
    %c0_31 = arith.constant 0 : index
    %33 = vector.load %arg2[%c8, %c0_31] : memref<25x256xf32, #tpu.memory_space<vmem>>, vector<1x256xf32>
    %34 = vector.broadcast %33 : vector<1x256xf32> to vector<4x256xf32>
    %35 = arith.mulf %32, %34 : vector<4x256xf32>
    %c1_i32 = arith.constant 1 : i32
    %36 = tpu.dynamic_rotate %23 by %c1_i32 dim 1 : vector<4x256xf32>, i32 -> vector<4x256xf32>
    %c11 = arith.constant 11 : index
    %c0_32 = arith.constant 0 : index
    %37 = vector.load %arg2[%c11, %c0_32] : memref<25x256xf32, #tpu.memory_space<vmem>>, vector<1x256xf32>
    %38 = vector.broadcast %37 : vector<1x256xf32> to vector<4x256xf32>
    %39 = arith.mulf %36, %38 : vector<4x256xf32>
    %c12 = arith.constant 12 : index
    %c0_33 = arith.constant 0 : index
    %40 = vector.load %arg2[%c12, %c0_33] : memref<25x256xf32, #tpu.memory_space<vmem>>, vector<1x256xf32>
    %41 = vector.broadcast %40 : vector<1x256xf32> to vector<4x256xf32>
    %42 = arith.mulf %23, %41 : vector<4x256xf32>
    %c255_i32 = arith.constant 255 : i32
    %43 = tpu.dynamic_rotate %23 by %c255_i32 dim 1 : vector<4x256xf32>, i32 -> vector<4x256xf32>
    %c13 = arith.constant 13 : index
    %c0_34 = arith.constant 0 : index
    %44 = vector.load %arg2[%c13, %c0_34] : memref<25x256xf32, #tpu.memory_space<vmem>>, vector<1x256xf32>
    %45 = vector.broadcast %44 : vector<1x256xf32> to vector<4x256xf32>
    %46 = arith.mulf %43, %45 : vector<4x256xf32>
    %c241_i32 = arith.constant 241 : i32
    %47 = tpu.dynamic_rotate %23 by %c241_i32 dim 1 : vector<4x256xf32>, i32 -> vector<4x256xf32>
    %c16 = arith.constant 16 : index
    %c0_35 = arith.constant 0 : index
    %48 = vector.load %arg2[%c16, %c0_35] : memref<25x256xf32, #tpu.memory_space<vmem>>, vector<1x256xf32>
    %49 = vector.broadcast %48 : vector<1x256xf32> to vector<4x256xf32>
    %50 = arith.mulf %47, %49 : vector<4x256xf32>
    %c240_i32 = arith.constant 240 : i32
    %51 = tpu.dynamic_rotate %23 by %c240_i32 dim 1 : vector<4x256xf32>, i32 -> vector<4x256xf32>
    %c17 = arith.constant 17 : index
    %c0_36 = arith.constant 0 : index
    %52 = vector.load %arg2[%c17, %c0_36] : memref<25x256xf32, #tpu.memory_space<vmem>>, vector<1x256xf32>
    %53 = vector.broadcast %52 : vector<1x256xf32> to vector<4x256xf32>
    %54 = arith.mulf %51, %53 : vector<4x256xf32>
    %c239_i32 = arith.constant 239 : i32
    %55 = tpu.dynamic_rotate %23 by %c239_i32 dim 1 : vector<4x256xf32>, i32 -> vector<4x256xf32>
    %c18 = arith.constant 18 : index
    %c0_37 = arith.constant 0 : index
    %56 = vector.load %arg2[%c18, %c0_37] : memref<25x256xf32, #tpu.memory_space<vmem>>, vector<1x256xf32>
    %57 = vector.broadcast %56 : vector<1x256xf32> to vector<4x256xf32>
    %58 = arith.mulf %55, %57 : vector<4x256xf32>
    %59 = tpu.concatenate %27, %31, %35, %39, %42, %46, %50, %54, %58 in 0 : vector<4x256xf32>, vector<4x256xf32>, vector<4x256xf32>, vector<4x256xf32>, vector<4x256xf32>, vector<4x256xf32>, vector<4x256xf32>, vector<4x256xf32>, vector<4x256xf32> -> vector<36x256xf32>
    %cst_38 = arith.constant dense<0.000000e+00> : vector<8x256xf32>
    %60 = tpu.matmul %4, %59, %cst_38 {dimension_numbers = #tpu.dot_dimension_numbers<[1], [0], [0], [1], [0, 0, 1, 1], [], []>} : vector<8x36xf32>, vector<36x256xf32>, vector<8x256xf32> -> vector<8x256xf32>
    %61 = vector.broadcast %5 : vector<8x1xf32> to vector<8x256xf32>
    %62 = arith.addf %60, %61 : vector<8x256xf32>
    %cst_39 = arith.constant 0.000000e+00 : f32
    %63 = vector.broadcast %cst_39 : f32 to vector<8x256xf32>
    %64 = arith.maximumf %62, %63 : vector<8x256xf32>
    %cst_40 = arith.constant dense<0.000000e+00> : vector<2x256xf32>
    %65 = tpu.matmul %6, %13, %cst_40 {dimension_numbers = #tpu.dot_dimension_numbers<[1], [0], [0], [1], [0, 0, 1, 1], [], []>} : vector<2x4xf32>, vector<4x256xf32>, vector<2x256xf32> -> vector<2x256xf32>
    %66 = vector.broadcast %7 : vector<2x1xf32> to vector<2x256xf32>
    %67 = arith.addf %65, %66 : vector<2x256xf32>
    %cst_41 = arith.constant 0.000000e+00 : f32
    %68 = vector.broadcast %cst_41 : f32 to vector<2x256xf32>
    %69 = arith.maximumf %67, %68 : vector<2x256xf32>
    %c34_i32 = arith.constant 34 : i32
    %70 = tpu.dynamic_rotate %69 by %c34_i32 dim 1 : vector<2x256xf32>, i32 -> vector<2x256xf32>
    %c0_42 = arith.constant 0 : index
    %c0_43 = arith.constant 0 : index
    %71 = vector.load %arg2[%c0_42, %c0_43] : memref<25x256xf32, #tpu.memory_space<vmem>>, vector<1x256xf32>
    %72 = vector.broadcast %71 : vector<1x256xf32> to vector<2x256xf32>
    %73 = arith.mulf %70, %72 : vector<2x256xf32>
    %c33_i32 = arith.constant 33 : i32
    %74 = tpu.dynamic_rotate %69 by %c33_i32 dim 1 : vector<2x256xf32>, i32 -> vector<2x256xf32>
    %c1 = arith.constant 1 : index
    %c0_44 = arith.constant 0 : index
    %75 = vector.load %arg2[%c1, %c0_44] : memref<25x256xf32, #tpu.memory_space<vmem>>, vector<1x256xf32>
    %76 = vector.broadcast %75 : vector<1x256xf32> to vector<2x256xf32>
    %77 = arith.mulf %74, %76 : vector<2x256xf32>
    %c32_i32 = arith.constant 32 : i32
    %78 = tpu.dynamic_rotate %69 by %c32_i32 dim 1 : vector<2x256xf32>, i32 -> vector<2x256xf32>
    %c2 = arith.constant 2 : index
    %c0_45 = arith.constant 0 : index
    %79 = vector.load %arg2[%c2, %c0_45] : memref<25x256xf32, #tpu.memory_space<vmem>>, vector<1x256xf32>
    %80 = vector.broadcast %79 : vector<1x256xf32> to vector<2x256xf32>
    %81 = arith.mulf %78, %80 : vector<2x256xf32>
    %c31_i32 = arith.constant 31 : i32
    %82 = tpu.dynamic_rotate %69 by %c31_i32 dim 1 : vector<2x256xf32>, i32 -> vector<2x256xf32>
    %c3 = arith.constant 3 : index
    %c0_46 = arith.constant 0 : index
    %83 = vector.load %arg2[%c3, %c0_46] : memref<25x256xf32, #tpu.memory_space<vmem>>, vector<1x256xf32>
    %84 = vector.broadcast %83 : vector<1x256xf32> to vector<2x256xf32>
    %85 = arith.mulf %82, %84 : vector<2x256xf32>
    %c30_i32 = arith.constant 30 : i32
    %86 = tpu.dynamic_rotate %69 by %c30_i32 dim 1 : vector<2x256xf32>, i32 -> vector<2x256xf32>
    %c4 = arith.constant 4 : index
    %c0_47 = arith.constant 0 : index
    %87 = vector.load %arg2[%c4, %c0_47] : memref<25x256xf32, #tpu.memory_space<vmem>>, vector<1x256xf32>
    %88 = vector.broadcast %87 : vector<1x256xf32> to vector<2x256xf32>
    %89 = arith.mulf %86, %88 : vector<2x256xf32>
    %c18_i32 = arith.constant 18 : i32
    %90 = tpu.dynamic_rotate %69 by %c18_i32 dim 1 : vector<2x256xf32>, i32 -> vector<2x256xf32>
    %c5 = arith.constant 5 : index
    %c0_48 = arith.constant 0 : index
    %91 = vector.load %arg2[%c5, %c0_48] : memref<25x256xf32, #tpu.memory_space<vmem>>, vector<1x256xf32>
    %92 = vector.broadcast %91 : vector<1x256xf32> to vector<2x256xf32>
    %93 = arith.mulf %90, %92 : vector<2x256xf32>
    %c17_i32_49 = arith.constant 17 : i32
    %94 = tpu.dynamic_rotate %69 by %c17_i32_49 dim 1 : vector<2x256xf32>, i32 -> vector<2x256xf32>
    %c6_50 = arith.constant 6 : index
    %c0_51 = arith.constant 0 : index
    %95 = vector.load %arg2[%c6_50, %c0_51] : memref<25x256xf32, #tpu.memory_space<vmem>>, vector<1x256xf32>
    %96 = vector.broadcast %95 : vector<1x256xf32> to vector<2x256xf32>
    %97 = arith.mulf %94, %96 : vector<2x256xf32>
    %c16_i32_52 = arith.constant 16 : i32
    %98 = tpu.dynamic_rotate %69 by %c16_i32_52 dim 1 : vector<2x256xf32>, i32 -> vector<2x256xf32>
    %c7_53 = arith.constant 7 : index
    %c0_54 = arith.constant 0 : index
    %99 = vector.load %arg2[%c7_53, %c0_54] : memref<25x256xf32, #tpu.memory_space<vmem>>, vector<1x256xf32>
    %100 = vector.broadcast %99 : vector<1x256xf32> to vector<2x256xf32>
    %101 = arith.mulf %98, %100 : vector<2x256xf32>
    %c15_i32_55 = arith.constant 15 : i32
    %102 = tpu.dynamic_rotate %69 by %c15_i32_55 dim 1 : vector<2x256xf32>, i32 -> vector<2x256xf32>
    %c8_56 = arith.constant 8 : index
    %c0_57 = arith.constant 0 : index
    %103 = vector.load %arg2[%c8_56, %c0_57] : memref<25x256xf32, #tpu.memory_space<vmem>>, vector<1x256xf32>
    %104 = vector.broadcast %103 : vector<1x256xf32> to vector<2x256xf32>
    %105 = arith.mulf %102, %104 : vector<2x256xf32>
    %c14_i32 = arith.constant 14 : i32
    %106 = tpu.dynamic_rotate %69 by %c14_i32 dim 1 : vector<2x256xf32>, i32 -> vector<2x256xf32>
    %c9 = arith.constant 9 : index
    %c0_58 = arith.constant 0 : index
    %107 = vector.load %arg2[%c9, %c0_58] : memref<25x256xf32, #tpu.memory_space<vmem>>, vector<1x256xf32>
    %108 = vector.broadcast %107 : vector<1x256xf32> to vector<2x256xf32>
    %109 = arith.mulf %106, %108 : vector<2x256xf32>
    %c2_i32 = arith.constant 2 : i32
    %110 = tpu.dynamic_rotate %69 by %c2_i32 dim 1 : vector<2x256xf32>, i32 -> vector<2x256xf32>
    %c10 = arith.constant 10 : index
    %c0_59 = arith.constant 0 : index
    %111 = vector.load %arg2[%c10, %c0_59] : memref<25x256xf32, #tpu.memory_space<vmem>>, vector<1x256xf32>
    %112 = vector.broadcast %111 : vector<1x256xf32> to vector<2x256xf32>
    %113 = arith.mulf %110, %112 : vector<2x256xf32>
    %c1_i32_60 = arith.constant 1 : i32
    %114 = tpu.dynamic_rotate %69 by %c1_i32_60 dim 1 : vector<2x256xf32>, i32 -> vector<2x256xf32>
    %c11_61 = arith.constant 11 : index
    %c0_62 = arith.constant 0 : index
    %115 = vector.load %arg2[%c11_61, %c0_62] : memref<25x256xf32, #tpu.memory_space<vmem>>, vector<1x256xf32>
    %116 = vector.broadcast %115 : vector<1x256xf32> to vector<2x256xf32>
    %117 = arith.mulf %114, %116 : vector<2x256xf32>
    %c12_63 = arith.constant 12 : index
    %c0_64 = arith.constant 0 : index
    %118 = vector.load %arg2[%c12_63, %c0_64] : memref<25x256xf32, #tpu.memory_space<vmem>>, vector<1x256xf32>
    %119 = vector.broadcast %118 : vector<1x256xf32> to vector<2x256xf32>
    %120 = arith.mulf %69, %119 : vector<2x256xf32>
    %c255_i32_65 = arith.constant 255 : i32
    %121 = tpu.dynamic_rotate %69 by %c255_i32_65 dim 1 : vector<2x256xf32>, i32 -> vector<2x256xf32>
    %c13_66 = arith.constant 13 : index
    %c0_67 = arith.constant 0 : index
    %122 = vector.load %arg2[%c13_66, %c0_67] : memref<25x256xf32, #tpu.memory_space<vmem>>, vector<1x256xf32>
    %123 = vector.broadcast %122 : vector<1x256xf32> to vector<2x256xf32>
    %124 = arith.mulf %121, %123 : vector<2x256xf32>
    %c254_i32 = arith.constant 254 : i32
    %125 = tpu.dynamic_rotate %69 by %c254_i32 dim 1 : vector<2x256xf32>, i32 -> vector<2x256xf32>
    %c14 = arith.constant 14 : index
    %c0_68 = arith.constant 0 : index
    %126 = vector.load %arg2[%c14, %c0_68] : memref<25x256xf32, #tpu.memory_space<vmem>>, vector<1x256xf32>
    %127 = vector.broadcast %126 : vector<1x256xf32> to vector<2x256xf32>
    %128 = arith.mulf %125, %127 : vector<2x256xf32>
    %c242_i32 = arith.constant 242 : i32
    %129 = tpu.dynamic_rotate %69 by %c242_i32 dim 1 : vector<2x256xf32>, i32 -> vector<2x256xf32>
    %c15 = arith.constant 15 : index
    %c0_69 = arith.constant 0 : index
    %130 = vector.load %arg2[%c15, %c0_69] : memref<25x256xf32, #tpu.memory_space<vmem>>, vector<1x256xf32>
    %131 = vector.broadcast %130 : vector<1x256xf32> to vector<2x256xf32>
    %132 = arith.mulf %129, %131 : vector<2x256xf32>
    %c241_i32_70 = arith.constant 241 : i32
    %133 = tpu.dynamic_rotate %69 by %c241_i32_70 dim 1 : vector<2x256xf32>, i32 -> vector<2x256xf32>
    %c16_71 = arith.constant 16 : index
    %c0_72 = arith.constant 0 : index
    %134 = vector.load %arg2[%c16_71, %c0_72] : memref<25x256xf32, #tpu.memory_space<vmem>>, vector<1x256xf32>
    %135 = vector.broadcast %134 : vector<1x256xf32> to vector<2x256xf32>
    %136 = arith.mulf %133, %135 : vector<2x256xf32>
    %c240_i32_73 = arith.constant 240 : i32
    %137 = tpu.dynamic_rotate %69 by %c240_i32_73 dim 1 : vector<2x256xf32>, i32 -> vector<2x256xf32>
    %c17_74 = arith.constant 17 : index
    %c0_75 = arith.constant 0 : index
    %138 = vector.load %arg2[%c17_74, %c0_75] : memref<25x256xf32, #tpu.memory_space<vmem>>, vector<1x256xf32>
    %139 = vector.broadcast %138 : vector<1x256xf32> to vector<2x256xf32>
    %140 = arith.mulf %137, %139 : vector<2x256xf32>
    %c239_i32_76 = arith.constant 239 : i32
    %141 = tpu.dynamic_rotate %69 by %c239_i32_76 dim 1 : vector<2x256xf32>, i32 -> vector<2x256xf32>
    %c18_77 = arith.constant 18 : index
    %c0_78 = arith.constant 0 : index
    %142 = vector.load %arg2[%c18_77, %c0_78] : memref<25x256xf32, #tpu.memory_space<vmem>>, vector<1x256xf32>
    %143 = vector.broadcast %142 : vector<1x256xf32> to vector<2x256xf32>
    %144 = arith.mulf %141, %143 : vector<2x256xf32>
    %c238_i32 = arith.constant 238 : i32
    %145 = tpu.dynamic_rotate %69 by %c238_i32 dim 1 : vector<2x256xf32>, i32 -> vector<2x256xf32>
    %c19 = arith.constant 19 : index
    %c0_79 = arith.constant 0 : index
    %146 = vector.load %arg2[%c19, %c0_79] : memref<25x256xf32, #tpu.memory_space<vmem>>, vector<1x256xf32>
    %147 = vector.broadcast %146 : vector<1x256xf32> to vector<2x256xf32>
    %148 = arith.mulf %145, %147 : vector<2x256xf32>
    %c226_i32 = arith.constant 226 : i32
    %149 = tpu.dynamic_rotate %69 by %c226_i32 dim 1 : vector<2x256xf32>, i32 -> vector<2x256xf32>
    %c20 = arith.constant 20 : index
    %c0_80 = arith.constant 0 : index
    %150 = vector.load %arg2[%c20, %c0_80] : memref<25x256xf32, #tpu.memory_space<vmem>>, vector<1x256xf32>
    %151 = vector.broadcast %150 : vector<1x256xf32> to vector<2x256xf32>
    %152 = arith.mulf %149, %151 : vector<2x256xf32>
    %c225_i32 = arith.constant 225 : i32
    %153 = tpu.dynamic_rotate %69 by %c225_i32 dim 1 : vector<2x256xf32>, i32 -> vector<2x256xf32>
    %c21 = arith.constant 21 : index
    %c0_81 = arith.constant 0 : index
    %154 = vector.load %arg2[%c21, %c0_81] : memref<25x256xf32, #tpu.memory_space<vmem>>, vector<1x256xf32>
    %155 = vector.broadcast %154 : vector<1x256xf32> to vector<2x256xf32>
    %156 = arith.mulf %153, %155 : vector<2x256xf32>
    %c224_i32 = arith.constant 224 : i32
    %157 = tpu.dynamic_rotate %69 by %c224_i32 dim 1 : vector<2x256xf32>, i32 -> vector<2x256xf32>
    %c22 = arith.constant 22 : index
    %c0_82 = arith.constant 0 : index
    %158 = vector.load %arg2[%c22, %c0_82] : memref<25x256xf32, #tpu.memory_space<vmem>>, vector<1x256xf32>
    %159 = vector.broadcast %158 : vector<1x256xf32> to vector<2x256xf32>
    %160 = arith.mulf %157, %159 : vector<2x256xf32>
    %c223_i32 = arith.constant 223 : i32
    %161 = tpu.dynamic_rotate %69 by %c223_i32 dim 1 : vector<2x256xf32>, i32 -> vector<2x256xf32>
    %c23 = arith.constant 23 : index
    %c0_83 = arith.constant 0 : index
    %162 = vector.load %arg2[%c23, %c0_83] : memref<25x256xf32, #tpu.memory_space<vmem>>, vector<1x256xf32>
    %163 = vector.broadcast %162 : vector<1x256xf32> to vector<2x256xf32>
    %164 = arith.mulf %161, %163 : vector<2x256xf32>
    %c222_i32 = arith.constant 222 : i32
    %165 = tpu.dynamic_rotate %69 by %c222_i32 dim 1 : vector<2x256xf32>, i32 -> vector<2x256xf32>
    %c24 = arith.constant 24 : index
    %c0_84 = arith.constant 0 : index
    %166 = vector.load %arg2[%c24, %c0_84] : memref<25x256xf32, #tpu.memory_space<vmem>>, vector<1x256xf32>
    %167 = vector.broadcast %166 : vector<1x256xf32> to vector<2x256xf32>
    %168 = arith.mulf %165, %167 : vector<2x256xf32>
    %169 = tpu.concatenate %73, %77, %81, %85, %89, %93, %97, %101, %105, %109, %113, %117, %120, %124, %128, %132 in 0 : vector<2x256xf32>, vector<2x256xf32>, vector<2x256xf32>, vector<2x256xf32>, vector<2x256xf32>, vector<2x256xf32>, vector<2x256xf32>, vector<2x256xf32>, vector<2x256xf32>, vector<2x256xf32>, vector<2x256xf32>, vector<2x256xf32>, vector<2x256xf32>, vector<2x256xf32>, vector<2x256xf32>, vector<2x256xf32> -> vector<32x256xf32>
    %170 = tpu.concatenate %136, %140, %144, %148, %152, %156, %160, %164, %168 in 0 : vector<2x256xf32>, vector<2x256xf32>, vector<2x256xf32>, vector<2x256xf32>, vector<2x256xf32>, vector<2x256xf32>, vector<2x256xf32>, vector<2x256xf32>, vector<2x256xf32> -> vector<18x256xf32>
    %171 = tpu.concatenate %169, %170 in 0 : vector<32x256xf32>, vector<18x256xf32> -> vector<50x256xf32>
    %cst_85 = arith.constant dense<0.000000e+00> : vector<4x256xf32>
    %172 = tpu.matmul %8, %171, %cst_85 {dimension_numbers = #tpu.dot_dimension_numbers<[1], [0], [0], [1], [0, 0, 1, 1], [], []>} : vector<4x50xf32>, vector<50x256xf32>, vector<4x256xf32> -> vector<4x256xf32>
    %173 = vector.broadcast %9 : vector<4x1xf32> to vector<4x256xf32>
    %174 = arith.addf %172, %173 : vector<4x256xf32>
    %cst_86 = arith.constant 0.000000e+00 : f32
    %175 = vector.broadcast %cst_86 : f32 to vector<4x256xf32>
    %176 = arith.maximumf %174, %175 : vector<4x256xf32>
    %c6_87 = arith.constant 6 : index
    %c0_88 = arith.constant 0 : index
    %177 = vector.load %arg2[%c6_87, %c0_88] : memref<25x256xf32, #tpu.memory_space<vmem>>, vector<1x256xf32>
    %cst_89 = arith.constant 5.000000e-01 : f32
    %178 = vector.broadcast %cst_89 : f32 to vector<1x256xf32>
    %179 = arith.cmpf ogt, %177, %178 : vector<1x256xf32>
    %c17_i32_90 = arith.constant 17 : i32
    %180 = tpu.dynamic_rotate %13 by %c17_i32_90 dim 1 : vector<4x256xf32>, i32 -> vector<4x256xf32>
    %cst_91 = arith.constant 0xFF800000 : f32
    %181 = vector.shape_cast %179 : vector<1x256xi1> to vector<1x256xi1>
    %182 = vector.broadcast %181 : vector<1x256xi1> to vector<4x256xi1>
    %183 = vector.broadcast %cst_91 : f32 to vector<4x256xf32>
    %184 = arith.select %182, %180, %183 : vector<4x256xi1>, vector<4x256xf32>
    %185 = arith.maximumf %13, %184 : vector<4x256xf32>
    %c7_92 = arith.constant 7 : index
    %c0_93 = arith.constant 0 : index
    %186 = vector.load %arg2[%c7_92, %c0_93] : memref<25x256xf32, #tpu.memory_space<vmem>>, vector<1x256xf32>
    %cst_94 = arith.constant 5.000000e-01 : f32
    %187 = vector.broadcast %cst_94 : f32 to vector<1x256xf32>
    %188 = arith.cmpf ogt, %186, %187 : vector<1x256xf32>
    %c16_i32_95 = arith.constant 16 : i32
    %189 = tpu.dynamic_rotate %13 by %c16_i32_95 dim 1 : vector<4x256xf32>, i32 -> vector<4x256xf32>
    %cst_96 = arith.constant 0xFF800000 : f32
    %190 = vector.shape_cast %188 : vector<1x256xi1> to vector<1x256xi1>
    %191 = vector.broadcast %190 : vector<1x256xi1> to vector<4x256xi1>
    %192 = vector.broadcast %cst_96 : f32 to vector<4x256xf32>
    %193 = arith.select %191, %189, %192 : vector<4x256xi1>, vector<4x256xf32>
    %194 = arith.maximumf %185, %193 : vector<4x256xf32>
    %c8_97 = arith.constant 8 : index
    %c0_98 = arith.constant 0 : index
    %195 = vector.load %arg2[%c8_97, %c0_98] : memref<25x256xf32, #tpu.memory_space<vmem>>, vector<1x256xf32>
    %cst_99 = arith.constant 5.000000e-01 : f32
    %196 = vector.broadcast %cst_99 : f32 to vector<1x256xf32>
    %197 = arith.cmpf ogt, %195, %196 : vector<1x256xf32>
    %c15_i32_100 = arith.constant 15 : i32
    %198 = tpu.dynamic_rotate %13 by %c15_i32_100 dim 1 : vector<4x256xf32>, i32 -> vector<4x256xf32>
    %cst_101 = arith.constant 0xFF800000 : f32
    %199 = vector.shape_cast %197 : vector<1x256xi1> to vector<1x256xi1>
    %200 = vector.broadcast %199 : vector<1x256xi1> to vector<4x256xi1>
    %201 = vector.broadcast %cst_101 : f32 to vector<4x256xf32>
    %202 = arith.select %200, %198, %201 : vector<4x256xi1>, vector<4x256xf32>
    %203 = arith.maximumf %194, %202 : vector<4x256xf32>
    %c11_102 = arith.constant 11 : index
    %c0_103 = arith.constant 0 : index
    %204 = vector.load %arg2[%c11_102, %c0_103] : memref<25x256xf32, #tpu.memory_space<vmem>>, vector<1x256xf32>
    %cst_104 = arith.constant 5.000000e-01 : f32
    %205 = vector.broadcast %cst_104 : f32 to vector<1x256xf32>
    %206 = arith.cmpf ogt, %204, %205 : vector<1x256xf32>
    %c1_i32_105 = arith.constant 1 : i32
    %207 = tpu.dynamic_rotate %13 by %c1_i32_105 dim 1 : vector<4x256xf32>, i32 -> vector<4x256xf32>
    %cst_106 = arith.constant 0xFF800000 : f32
    %208 = vector.shape_cast %206 : vector<1x256xi1> to vector<1x256xi1>
    %209 = vector.broadcast %208 : vector<1x256xi1> to vector<4x256xi1>
    %210 = vector.broadcast %cst_106 : f32 to vector<4x256xf32>
    %211 = arith.select %209, %207, %210 : vector<4x256xi1>, vector<4x256xf32>
    %212 = arith.maximumf %203, %211 : vector<4x256xf32>
    %c13_107 = arith.constant 13 : index
    %c0_108 = arith.constant 0 : index
    %213 = vector.load %arg2[%c13_107, %c0_108] : memref<25x256xf32, #tpu.memory_space<vmem>>, vector<1x256xf32>
    %cst_109 = arith.constant 5.000000e-01 : f32
    %214 = vector.broadcast %cst_109 : f32 to vector<1x256xf32>
    %215 = arith.cmpf ogt, %213, %214 : vector<1x256xf32>
    %c255_i32_110 = arith.constant 255 : i32
    %216 = tpu.dynamic_rotate %13 by %c255_i32_110 dim 1 : vector<4x256xf32>, i32 -> vector<4x256xf32>
    %cst_111 = arith.constant 0xFF800000 : f32
    %217 = vector.shape_cast %215 : vector<1x256xi1> to vector<1x256xi1>
    %218 = vector.broadcast %217 : vector<1x256xi1> to vector<4x256xi1>
    %219 = vector.broadcast %cst_111 : f32 to vector<4x256xf32>
    %220 = arith.select %218, %216, %219 : vector<4x256xi1>, vector<4x256xf32>
    %221 = arith.maximumf %212, %220 : vector<4x256xf32>
    %c16_112 = arith.constant 16 : index
    %c0_113 = arith.constant 0 : index
    %222 = vector.load %arg2[%c16_112, %c0_113] : memref<25x256xf32, #tpu.memory_space<vmem>>, vector<1x256xf32>
    %cst_114 = arith.constant 5.000000e-01 : f32
    %223 = vector.broadcast %cst_114 : f32 to vector<1x256xf32>
    %224 = arith.cmpf ogt, %222, %223 : vector<1x256xf32>
    %c241_i32_115 = arith.constant 241 : i32
    %225 = tpu.dynamic_rotate %13 by %c241_i32_115 dim 1 : vector<4x256xf32>, i32 -> vector<4x256xf32>
    %cst_116 = arith.constant 0xFF800000 : f32
    %226 = vector.shape_cast %224 : vector<1x256xi1> to vector<1x256xi1>
    %227 = vector.broadcast %226 : vector<1x256xi1> to vector<4x256xi1>
    %228 = vector.broadcast %cst_116 : f32 to vector<4x256xf32>
    %229 = arith.select %227, %225, %228 : vector<4x256xi1>, vector<4x256xf32>
    %230 = arith.maximumf %221, %229 : vector<4x256xf32>
    %c17_117 = arith.constant 17 : index
    %c0_118 = arith.constant 0 : index
    %231 = vector.load %arg2[%c17_117, %c0_118] : memref<25x256xf32, #tpu.memory_space<vmem>>, vector<1x256xf32>
    %cst_119 = arith.constant 5.000000e-01 : f32
    %232 = vector.broadcast %cst_119 : f32 to vector<1x256xf32>
    %233 = arith.cmpf ogt, %231, %232 : vector<1x256xf32>
    %c240_i32_120 = arith.constant 240 : i32
    %234 = tpu.dynamic_rotate %13 by %c240_i32_120 dim 1 : vector<4x256xf32>, i32 -> vector<4x256xf32>
    %cst_121 = arith.constant 0xFF800000 : f32
    %235 = vector.shape_cast %233 : vector<1x256xi1> to vector<1x256xi1>
    %236 = vector.broadcast %235 : vector<1x256xi1> to vector<4x256xi1>
    %237 = vector.broadcast %cst_121 : f32 to vector<4x256xf32>
    %238 = arith.select %236, %234, %237 : vector<4x256xi1>, vector<4x256xf32>
    %239 = arith.maximumf %230, %238 : vector<4x256xf32>
    %c18_122 = arith.constant 18 : index
    %c0_123 = arith.constant 0 : index
    %240 = vector.load %arg2[%c18_122, %c0_123] : memref<25x256xf32, #tpu.memory_space<vmem>>, vector<1x256xf32>
    %cst_124 = arith.constant 5.000000e-01 : f32
    %241 = vector.broadcast %cst_124 : f32 to vector<1x256xf32>
    %242 = arith.cmpf ogt, %240, %241 : vector<1x256xf32>
    %c239_i32_125 = arith.constant 239 : i32
    %243 = tpu.dynamic_rotate %13 by %c239_i32_125 dim 1 : vector<4x256xf32>, i32 -> vector<4x256xf32>
    %cst_126 = arith.constant 0xFF800000 : f32
    %244 = vector.shape_cast %242 : vector<1x256xi1> to vector<1x256xi1>
    %245 = vector.broadcast %244 : vector<1x256xi1> to vector<4x256xi1>
    %246 = vector.broadcast %cst_126 : f32 to vector<4x256xf32>
    %247 = arith.select %245, %243, %246 : vector<4x256xi1>, vector<4x256xf32>
    %248 = arith.maximumf %239, %247 : vector<4x256xf32>
    %cst_127 = arith.constant dense<0.000000e+00> : vector<4x256xf32>
    %249 = tpu.matmul %10, %248, %cst_127 {dimension_numbers = #tpu.dot_dimension_numbers<[1], [0], [0], [1], [0, 0, 1, 1], [], []>} : vector<4x4xf32>, vector<4x256xf32>, vector<4x256xf32> -> vector<4x256xf32>
    %250 = vector.broadcast %11 : vector<4x1xf32> to vector<4x256xf32>
    %251 = arith.addf %249, %250 : vector<4x256xf32>
    %cst_128 = arith.constant 0.000000e+00 : f32
    %252 = vector.broadcast %cst_128 : f32 to vector<4x256xf32>
    %253 = arith.maximumf %251, %252 : vector<4x256xf32>
    %c0_129 = arith.constant 0 : index
    %c0_130 = arith.constant 0 : index
    %c0_131 = arith.constant 0 : index
    %254 = vector.load %arg15[%c0_129, %c0_130, %c0_131] : memref<2x20x256xf32, #tpu.memory_space<vmem>>, vector<1x4x256xf32>
    %255 = vector.shape_cast %254 : vector<1x4x256xf32> to vector<4x256xf32>
    %256 = vector.shape_cast %18 : vector<4x256xf32> to vector<1x4x256xf32>
    tpu.vector_store %arg15[%c0_129, %c0_130, %c0_131], %256 {strides = array<i32>} : memref<2x20x256xf32, #tpu.memory_space<vmem>>, vector<1x4x256xf32>,
    %c0_132 = arith.constant 0 : index
    %c4_133 = arith.constant 4 : index
    %c0_134 = arith.constant 0 : index
    %257 = vector.load %arg15[%c0_132, %c4_133, %c0_134] : memref<2x20x256xf32, #tpu.memory_space<vmem>>, vector<1x8x256xf32>
    %258 = vector.shape_cast %257 : vector<1x8x256xf32> to vector<8x256xf32>
    %259 = vector.shape_cast %64 : vector<8x256xf32> to vector<1x8x256xf32>
    tpu.vector_store %arg15[%c0_132, %c4_133, %c0_134], %259 {strides = array<i32>} : memref<2x20x256xf32, #tpu.memory_space<vmem>>, vector<1x8x256xf32>,
    %c0_135 = arith.constant 0 : index
    %c12_136 = arith.constant 12 : index
    %c0_137 = arith.constant 0 : index
    %260 = vector.load %arg15[%c0_135, %c12_136, %c0_137] : memref<2x20x256xf32, #tpu.memory_space<vmem>>, vector<1x4x256xf32>
    %261 = vector.shape_cast %260 : vector<1x4x256xf32> to vector<4x256xf32>
    %262 = vector.shape_cast %176 : vector<4x256xf32> to vector<1x4x256xf32>
    tpu.vector_store %arg15[%c0_135, %c12_136, %c0_137], %262 {strides = array<i32>} : memref<2x20x256xf32, #tpu.memory_space<vmem>>, vector<1x4x256xf32>,
    %c0_138 = arith.constant 0 : index
    %c16_139 = arith.constant 16 : index
    %c0_140 = arith.constant 0 : index
    %263 = vector.load %arg15[%c0_138, %c16_139, %c0_140] : memref<2x20x256xf32, #tpu.memory_space<vmem>>, vector<1x4x256xf32>
    %264 = vector.shape_cast %263 : vector<1x4x256xf32> to vector<4x256xf32>
    %265 = vector.shape_cast %253 : vector<4x256xf32> to vector<1x4x256xf32>
    tpu.vector_store %arg15[%c0_138, %c16_139, %c0_140], %265 {strides = array<i32>} : memref<2x20x256xf32, #tpu.memory_space<vmem>>, vector<1x4x256xf32>,
    %c1_141 = arith.constant 1 : index
    %c0_142 = arith.constant 0 : index
    %c0_143 = arith.constant 0 : index
    %266 = vector.load %arg1[%c1_141, %c0_142, %c0_143] : memref<2x4x256xf32, #tpu.memory_space<vmem>>, vector<1x4x256xf32>
    %267 = vector.shape_cast %266 : vector<1x4x256xf32> to vector<4x256xf32>
    %cst_144 = arith.constant dense<0.000000e+00> : vector<4x256xf32>
    %268 = tpu.matmul %0, %267, %cst_144 {dimension_numbers = #tpu.dot_dimension_numbers<[1], [0], [0], [1], [0, 0, 1, 1], [], []>} : vector<4x4xf32>, vector<4x256xf32>, vector<4x256xf32> -> vector<4x256xf32>
    %269 = vector.broadcast %1 : vector<4x1xf32> to vector<4x256xf32>
    %270 = arith.addf %268, %269 : vector<4x256xf32>
    %cst_145 = arith.constant 0.000000e+00 : f32
    %271 = vector.broadcast %cst_145 : f32 to vector<4x256xf32>
    %272 = arith.maximumf %270, %271 : vector<4x256xf32>
    %cst_146 = arith.constant dense<0.000000e+00> : vector<4x256xf32>
    %273 = tpu.matmul %2, %267, %cst_146 {dimension_numbers = #tpu.dot_dimension_numbers<[1], [0], [0], [1], [0, 0, 1, 1], [], []>} : vector<4x4xf32>, vector<4x256xf32>, vector<4x256xf32> -> vector<4x256xf32>
    %274 = vector.broadcast %3 : vector<4x1xf32> to vector<4x256xf32>
    %275 = arith.addf %273, %274 : vector<4x256xf32>
    %cst_147 = arith.constant 0.000000e+00 : f32
    %276 = vector.broadcast %cst_147 : f32 to vector<4x256xf32>
    %277 = arith.maximumf %275, %276 : vector<4x256xf32>
    %c17_i32_148 = arith.constant 17 : i32
    %278 = tpu.dynamic_rotate %277 by %c17_i32_148 dim 1 : vector<4x256xf32>, i32 -> vector<4x256xf32>
    %c6_149 = arith.constant 6 : index
    %c0_150 = arith.constant 0 : index
    %279 = vector.load %arg2[%c6_149, %c0_150] : memref<25x256xf32, #tpu.memory_space<vmem>>, vector<1x256xf32>
    %280 = vector.broadcast %279 : vector<1x256xf32> to vector<4x256xf32>
    %281 = arith.mulf %278, %280 : vector<4x256xf32>
    %c16_i32_151 = arith.constant 16 : i32
    %282 = tpu.dynamic_rotate %277 by %c16_i32_151 dim 1 : vector<4x256xf32>, i32 -> vector<4x256xf32>
    %c7_152 = arith.constant 7 : index
    %c0_153 = arith.constant 0 : index
    %283 = vector.load %arg2[%c7_152, %c0_153] : memref<25x256xf32, #tpu.memory_space<vmem>>, vector<1x256xf32>
    %284 = vector.broadcast %283 : vector<1x256xf32> to vector<4x256xf32>
    %285 = arith.mulf %282, %284 : vector<4x256xf32>
    %c15_i32_154 = arith.constant 15 : i32
    %286 = tpu.dynamic_rotate %277 by %c15_i32_154 dim 1 : vector<4x256xf32>, i32 -> vector<4x256xf32>
    %c8_155 = arith.constant 8 : index
    %c0_156 = arith.constant 0 : index
    %287 = vector.load %arg2[%c8_155, %c0_156] : memref<25x256xf32, #tpu.memory_space<vmem>>, vector<1x256xf32>
    %288 = vector.broadcast %287 : vector<1x256xf32> to vector<4x256xf32>
    %289 = arith.mulf %286, %288 : vector<4x256xf32>
    %c1_i32_157 = arith.constant 1 : i32
    %290 = tpu.dynamic_rotate %277 by %c1_i32_157 dim 1 : vector<4x256xf32>, i32 -> vector<4x256xf32>
    %c11_158 = arith.constant 11 : index
    %c0_159 = arith.constant 0 : index
    %291 = vector.load %arg2[%c11_158, %c0_159] : memref<25x256xf32, #tpu.memory_space<vmem>>, vector<1x256xf32>
    %292 = vector.broadcast %291 : vector<1x256xf32> to vector<4x256xf32>
    %293 = arith.mulf %290, %292 : vector<4x256xf32>
    %c12_160 = arith.constant 12 : index
    %c0_161 = arith.constant 0 : index
    %294 = vector.load %arg2[%c12_160, %c0_161] : memref<25x256xf32, #tpu.memory_space<vmem>>, vector<1x256xf32>
    %295 = vector.broadcast %294 : vector<1x256xf32> to vector<4x256xf32>
    %296 = arith.mulf %277, %295 : vector<4x256xf32>
    %c255_i32_162 = arith.constant 255 : i32
    %297 = tpu.dynamic_rotate %277 by %c255_i32_162 dim 1 : vector<4x256xf32>, i32 -> vector<4x256xf32>
    %c13_163 = arith.constant 13 : index
    %c0_164 = arith.constant 0 : index
    %298 = vector.load %arg2[%c13_163, %c0_164] : memref<25x256xf32, #tpu.memory_space<vmem>>, vector<1x256xf32>
    %299 = vector.broadcast %298 : vector<1x256xf32> to vector<4x256xf32>
    %300 = arith.mulf %297, %299 : vector<4x256xf32>
    %c241_i32_165 = arith.constant 241 : i32
    %301 = tpu.dynamic_rotate %277 by %c241_i32_165 dim 1 : vector<4x256xf32>, i32 -> vector<4x256xf32>
    %c16_166 = arith.constant 16 : index
    %c0_167 = arith.constant 0 : index
    %302 = vector.load %arg2[%c16_166, %c0_167] : memref<25x256xf32, #tpu.memory_space<vmem>>, vector<1x256xf32>
    %303 = vector.broadcast %302 : vector<1x256xf32> to vector<4x256xf32>
    %304 = arith.mulf %301, %303 : vector<4x256xf32>
    %c240_i32_168 = arith.constant 240 : i32
    %305 = tpu.dynamic_rotate %277 by %c240_i32_168 dim 1 : vector<4x256xf32>, i32 -> vector<4x256xf32>
    %c17_169 = arith.constant 17 : index
    %c0_170 = arith.constant 0 : index
    %306 = vector.load %arg2[%c17_169, %c0_170] : memref<25x256xf32, #tpu.memory_space<vmem>>, vector<1x256xf32>
    %307 = vector.broadcast %306 : vector<1x256xf32> to vector<4x256xf32>
    %308 = arith.mulf %305, %307 : vector<4x256xf32>
    %c239_i32_171 = arith.constant 239 : i32
    %309 = tpu.dynamic_rotate %277 by %c239_i32_171 dim 1 : vector<4x256xf32>, i32 -> vector<4x256xf32>
    %c18_172 = arith.constant 18 : index
    %c0_173 = arith.constant 0 : index
    %310 = vector.load %arg2[%c18_172, %c0_173] : memref<25x256xf32, #tpu.memory_space<vmem>>, vector<1x256xf32>
    %311 = vector.broadcast %310 : vector<1x256xf32> to vector<4x256xf32>
    %312 = arith.mulf %309, %311 : vector<4x256xf32>
    %313 = tpu.concatenate %281, %285, %289, %293, %296, %300, %304, %308, %312 in 0 : vector<4x256xf32>, vector<4x256xf32>, vector<4x256xf32>, vector<4x256xf32>, vector<4x256xf32>, vector<4x256xf32>, vector<4x256xf32>, vector<4x256xf32>, vector<4x256xf32> -> vector<36x256xf32>
    %cst_174 = arith.constant dense<0.000000e+00> : vector<8x256xf32>
    %314 = tpu.matmul %4, %313, %cst_174 {dimension_numbers = #tpu.dot_dimension_numbers<[1], [0], [0], [1], [0, 0, 1, 1], [], []>} : vector<8x36xf32>, vector<36x256xf32>, vector<8x256xf32> -> vector<8x256xf32>
    %315 = vector.broadcast %5 : vector<8x1xf32> to vector<8x256xf32>
    %316 = arith.addf %314, %315 : vector<8x256xf32>
    %cst_175 = arith.constant 0.000000e+00 : f32
    %317 = vector.broadcast %cst_175 : f32 to vector<8x256xf32>
    %318 = arith.maximumf %316, %317 : vector<8x256xf32>
    %cst_176 = arith.constant dense<0.000000e+00> : vector<2x256xf32>
    %319 = tpu.matmul %6, %267, %cst_176 {dimension_numbers = #tpu.dot_dimension_numbers<[1], [0], [0], [1], [0, 0, 1, 1], [], []>} : vector<2x4xf32>, vector<4x256xf32>, vector<2x256xf32> -> vector<2x256xf32>
    %320 = vector.broadcast %7 : vector<2x1xf32> to vector<2x256xf32>
    %321 = arith.addf %319, %320 : vector<2x256xf32>
    %cst_177 = arith.constant 0.000000e+00 : f32
    %322 = vector.broadcast %cst_177 : f32 to vector<2x256xf32>
    %323 = arith.maximumf %321, %322 : vector<2x256xf32>
    %c34_i32_178 = arith.constant 34 : i32
    %324 = tpu.dynamic_rotate %323 by %c34_i32_178 dim 1 : vector<2x256xf32>, i32 -> vector<2x256xf32>
    %c0_179 = arith.constant 0 : index
    %c0_180 = arith.constant 0 : index
    %325 = vector.load %arg2[%c0_179, %c0_180] : memref<25x256xf32, #tpu.memory_space<vmem>>, vector<1x256xf32>
    %326 = vector.broadcast %325 : vector<1x256xf32> to vector<2x256xf32>
    %327 = arith.mulf %324, %326 : vector<2x256xf32>
    %c33_i32_181 = arith.constant 33 : i32
    %328 = tpu.dynamic_rotate %323 by %c33_i32_181 dim 1 : vector<2x256xf32>, i32 -> vector<2x256xf32>
    %c1_182 = arith.constant 1 : index
    %c0_183 = arith.constant 0 : index
    %329 = vector.load %arg2[%c1_182, %c0_183] : memref<25x256xf32, #tpu.memory_space<vmem>>, vector<1x256xf32>
    %330 = vector.broadcast %329 : vector<1x256xf32> to vector<2x256xf32>
    %331 = arith.mulf %328, %330 : vector<2x256xf32>
    %c32_i32_184 = arith.constant 32 : i32
    %332 = tpu.dynamic_rotate %323 by %c32_i32_184 dim 1 : vector<2x256xf32>, i32 -> vector<2x256xf32>
    %c2_185 = arith.constant 2 : index
    %c0_186 = arith.constant 0 : index
    %333 = vector.load %arg2[%c2_185, %c0_186] : memref<25x256xf32, #tpu.memory_space<vmem>>, vector<1x256xf32>
    %334 = vector.broadcast %333 : vector<1x256xf32> to vector<2x256xf32>
    %335 = arith.mulf %332, %334 : vector<2x256xf32>
    %c31_i32_187 = arith.constant 31 : i32
    %336 = tpu.dynamic_rotate %323 by %c31_i32_187 dim 1 : vector<2x256xf32>, i32 -> vector<2x256xf32>
    %c3_188 = arith.constant 3 : index
    %c0_189 = arith.constant 0 : index
    %337 = vector.load %arg2[%c3_188, %c0_189] : memref<25x256xf32, #tpu.memory_space<vmem>>, vector<1x256xf32>
    %338 = vector.broadcast %337 : vector<1x256xf32> to vector<2x256xf32>
    %339 = arith.mulf %336, %338 : vector<2x256xf32>
    %c30_i32_190 = arith.constant 30 : i32
    %340 = tpu.dynamic_rotate %323 by %c30_i32_190 dim 1 : vector<2x256xf32>, i32 -> vector<2x256xf32>
    %c4_191 = arith.constant 4 : index
    %c0_192 = arith.constant 0 : index
    %341 = vector.load %arg2[%c4_191, %c0_192] : memref<25x256xf32, #tpu.memory_space<vmem>>, vector<1x256xf32>
    %342 = vector.broadcast %341 : vector<1x256xf32> to vector<2x256xf32>
    %343 = arith.mulf %340, %342 : vector<2x256xf32>
    %c18_i32_193 = arith.constant 18 : i32
    %344 = tpu.dynamic_rotate %323 by %c18_i32_193 dim 1 : vector<2x256xf32>, i32 -> vector<2x256xf32>
    %c5_194 = arith.constant 5 : index
    %c0_195 = arith.constant 0 : index
    %345 = vector.load %arg2[%c5_194, %c0_195] : memref<25x256xf32, #tpu.memory_space<vmem>>, vector<1x256xf32>
    %346 = vector.broadcast %345 : vector<1x256xf32> to vector<2x256xf32>
    %347 = arith.mulf %344, %346 : vector<2x256xf32>
    %c17_i32_196 = arith.constant 17 : i32
    %348 = tpu.dynamic_rotate %323 by %c17_i32_196 dim 1 : vector<2x256xf32>, i32 -> vector<2x256xf32>
    %c6_197 = arith.constant 6 : index
    %c0_198 = arith.constant 0 : index
    %349 = vector.load %arg2[%c6_197, %c0_198] : memref<25x256xf32, #tpu.memory_space<vmem>>, vector<1x256xf32>
    %350 = vector.broadcast %349 : vector<1x256xf32> to vector<2x256xf32>
    %351 = arith.mulf %348, %350 : vector<2x256xf32>
    %c16_i32_199 = arith.constant 16 : i32
    %352 = tpu.dynamic_rotate %323 by %c16_i32_199 dim 1 : vector<2x256xf32>, i32 -> vector<2x256xf32>
    %c7_200 = arith.constant 7 : index
    %c0_201 = arith.constant 0 : index
    %353 = vector.load %arg2[%c7_200, %c0_201] : memref<25x256xf32, #tpu.memory_space<vmem>>, vector<1x256xf32>
    %354 = vector.broadcast %353 : vector<1x256xf32> to vector<2x256xf32>
    %355 = arith.mulf %352, %354 : vector<2x256xf32>
    %c15_i32_202 = arith.constant 15 : i32
    %356 = tpu.dynamic_rotate %323 by %c15_i32_202 dim 1 : vector<2x256xf32>, i32 -> vector<2x256xf32>
    %c8_203 = arith.constant 8 : index
    %c0_204 = arith.constant 0 : index
    %357 = vector.load %arg2[%c8_203, %c0_204] : memref<25x256xf32, #tpu.memory_space<vmem>>, vector<1x256xf32>
    %358 = vector.broadcast %357 : vector<1x256xf32> to vector<2x256xf32>
    %359 = arith.mulf %356, %358 : vector<2x256xf32>
    %c14_i32_205 = arith.constant 14 : i32
    %360 = tpu.dynamic_rotate %323 by %c14_i32_205 dim 1 : vector<2x256xf32>, i32 -> vector<2x256xf32>
    %c9_206 = arith.constant 9 : index
    %c0_207 = arith.constant 0 : index
    %361 = vector.load %arg2[%c9_206, %c0_207] : memref<25x256xf32, #tpu.memory_space<vmem>>, vector<1x256xf32>
    %362 = vector.broadcast %361 : vector<1x256xf32> to vector<2x256xf32>
    %363 = arith.mulf %360, %362 : vector<2x256xf32>
    %c2_i32_208 = arith.constant 2 : i32
    %364 = tpu.dynamic_rotate %323 by %c2_i32_208 dim 1 : vector<2x256xf32>, i32 -> vector<2x256xf32>
    %c10_209 = arith.constant 10 : index
    %c0_210 = arith.constant 0 : index
    %365 = vector.load %arg2[%c10_209, %c0_210] : memref<25x256xf32, #tpu.memory_space<vmem>>, vector<1x256xf32>
    %366 = vector.broadcast %365 : vector<1x256xf32> to vector<2x256xf32>
    %367 = arith.mulf %364, %366 : vector<2x256xf32>
    %c1_i32_211 = arith.constant 1 : i32
    %368 = tpu.dynamic_rotate %323 by %c1_i32_211 dim 1 : vector<2x256xf32>, i32 -> vector<2x256xf32>
    %c11_212 = arith.constant 11 : index
    %c0_213 = arith.constant 0 : index
    %369 = vector.load %arg2[%c11_212, %c0_213] : memref<25x256xf32, #tpu.memory_space<vmem>>, vector<1x256xf32>
    %370 = vector.broadcast %369 : vector<1x256xf32> to vector<2x256xf32>
    %371 = arith.mulf %368, %370 : vector<2x256xf32>
    %c12_214 = arith.constant 12 : index
    %c0_215 = arith.constant 0 : index
    %372 = vector.load %arg2[%c12_214, %c0_215] : memref<25x256xf32, #tpu.memory_space<vmem>>, vector<1x256xf32>
    %373 = vector.broadcast %372 : vector<1x256xf32> to vector<2x256xf32>
    %374 = arith.mulf %323, %373 : vector<2x256xf32>
    %c255_i32_216 = arith.constant 255 : i32
    %375 = tpu.dynamic_rotate %323 by %c255_i32_216 dim 1 : vector<2x256xf32>, i32 -> vector<2x256xf32>
    %c13_217 = arith.constant 13 : index
    %c0_218 = arith.constant 0 : index
    %376 = vector.load %arg2[%c13_217, %c0_218] : memref<25x256xf32, #tpu.memory_space<vmem>>, vector<1x256xf32>
    %377 = vector.broadcast %376 : vector<1x256xf32> to vector<2x256xf32>
    %378 = arith.mulf %375, %377 : vector<2x256xf32>
    %c254_i32_219 = arith.constant 254 : i32
    %379 = tpu.dynamic_rotate %323 by %c254_i32_219 dim 1 : vector<2x256xf32>, i32 -> vector<2x256xf32>
    %c14_220 = arith.constant 14 : index
    %c0_221 = arith.constant 0 : index
    %380 = vector.load %arg2[%c14_220, %c0_221] : memref<25x256xf32, #tpu.memory_space<vmem>>, vector<1x256xf32>
    %381 = vector.broadcast %380 : vector<1x256xf32> to vector<2x256xf32>
    %382 = arith.mulf %379, %381 : vector<2x256xf32>
    %c242_i32_222 = arith.constant 242 : i32
    %383 = tpu.dynamic_rotate %323 by %c242_i32_222 dim 1 : vector<2x256xf32>, i32 -> vector<2x256xf32>
    %c15_223 = arith.constant 15 : index
    %c0_224 = arith.constant 0 : index
    %384 = vector.load %arg2[%c15_223, %c0_224] : memref<25x256xf32, #tpu.memory_space<vmem>>, vector<1x256xf32>
    %385 = vector.broadcast %384 : vector<1x256xf32> to vector<2x256xf32>
    %386 = arith.mulf %383, %385 : vector<2x256xf32>
    %c241_i32_225 = arith.constant 241 : i32
    %387 = tpu.dynamic_rotate %323 by %c241_i32_225 dim 1 : vector<2x256xf32>, i32 -> vector<2x256xf32>
    %c16_226 = arith.constant 16 : index
    %c0_227 = arith.constant 0 : index
    %388 = vector.load %arg2[%c16_226, %c0_227] : memref<25x256xf32, #tpu.memory_space<vmem>>, vector<1x256xf32>
    %389 = vector.broadcast %388 : vector<1x256xf32> to vector<2x256xf32>
    %390 = arith.mulf %387, %389 : vector<2x256xf32>
    %c240_i32_228 = arith.constant 240 : i32
    %391 = tpu.dynamic_rotate %323 by %c240_i32_228 dim 1 : vector<2x256xf32>, i32 -> vector<2x256xf32>
    %c17_229 = arith.constant 17 : index
    %c0_230 = arith.constant 0 : index
    %392 = vector.load %arg2[%c17_229, %c0_230] : memref<25x256xf32, #tpu.memory_space<vmem>>, vector<1x256xf32>
    %393 = vector.broadcast %392 : vector<1x256xf32> to vector<2x256xf32>
    %394 = arith.mulf %391, %393 : vector<2x256xf32>
    %c239_i32_231 = arith.constant 239 : i32
    %395 = tpu.dynamic_rotate %323 by %c239_i32_231 dim 1 : vector<2x256xf32>, i32 -> vector<2x256xf32>
    %c18_232 = arith.constant 18 : index
    %c0_233 = arith.constant 0 : index
    %396 = vector.load %arg2[%c18_232, %c0_233] : memref<25x256xf32, #tpu.memory_space<vmem>>, vector<1x256xf32>
    %397 = vector.broadcast %396 : vector<1x256xf32> to vector<2x256xf32>
    %398 = arith.mulf %395, %397 : vector<2x256xf32>
    %c238_i32_234 = arith.constant 238 : i32
    %399 = tpu.dynamic_rotate %323 by %c238_i32_234 dim 1 : vector<2x256xf32>, i32 -> vector<2x256xf32>
    %c19_235 = arith.constant 19 : index
    %c0_236 = arith.constant 0 : index
    %400 = vector.load %arg2[%c19_235, %c0_236] : memref<25x256xf32, #tpu.memory_space<vmem>>, vector<1x256xf32>
    %401 = vector.broadcast %400 : vector<1x256xf32> to vector<2x256xf32>
    %402 = arith.mulf %399, %401 : vector<2x256xf32>
    %c226_i32_237 = arith.constant 226 : i32
    %403 = tpu.dynamic_rotate %323 by %c226_i32_237 dim 1 : vector<2x256xf32>, i32 -> vector<2x256xf32>
    %c20_238 = arith.constant 20 : index
    %c0_239 = arith.constant 0 : index
    %404 = vector.load %arg2[%c20_238, %c0_239] : memref<25x256xf32, #tpu.memory_space<vmem>>, vector<1x256xf32>
    %405 = vector.broadcast %404 : vector<1x256xf32> to vector<2x256xf32>
    %406 = arith.mulf %403, %405 : vector<2x256xf32>
    %c225_i32_240 = arith.constant 225 : i32
    %407 = tpu.dynamic_rotate %323 by %c225_i32_240 dim 1 : vector<2x256xf32>, i32 -> vector<2x256xf32>
    %c21_241 = arith.constant 21 : index
    %c0_242 = arith.constant 0 : index
    %408 = vector.load %arg2[%c21_241, %c0_242] : memref<25x256xf32, #tpu.memory_space<vmem>>, vector<1x256xf32>
    %409 = vector.broadcast %408 : vector<1x256xf32> to vector<2x256xf32>
    %410 = arith.mulf %407, %409 : vector<2x256xf32>
    %c224_i32_243 = arith.constant 224 : i32
    %411 = tpu.dynamic_rotate %323 by %c224_i32_243 dim 1 : vector<2x256xf32>, i32 -> vector<2x256xf32>
    %c22_244 = arith.constant 22 : index
    %c0_245 = arith.constant 0 : index
    %412 = vector.load %arg2[%c22_244, %c0_245] : memref<25x256xf32, #tpu.memory_space<vmem>>, vector<1x256xf32>
    %413 = vector.broadcast %412 : vector<1x256xf32> to vector<2x256xf32>
    %414 = arith.mulf %411, %413 : vector<2x256xf32>
    %c223_i32_246 = arith.constant 223 : i32
    %415 = tpu.dynamic_rotate %323 by %c223_i32_246 dim 1 : vector<2x256xf32>, i32 -> vector<2x256xf32>
    %c23_247 = arith.constant 23 : index
    %c0_248 = arith.constant 0 : index
    %416 = vector.load %arg2[%c23_247, %c0_248] : memref<25x256xf32, #tpu.memory_space<vmem>>, vector<1x256xf32>
    %417 = vector.broadcast %416 : vector<1x256xf32> to vector<2x256xf32>
    %418 = arith.mulf %415, %417 : vector<2x256xf32>
    %c222_i32_249 = arith.constant 222 : i32
    %419 = tpu.dynamic_rotate %323 by %c222_i32_249 dim 1 : vector<2x256xf32>, i32 -> vector<2x256xf32>
    %c24_250 = arith.constant 24 : index
    %c0_251 = arith.constant 0 : index
    %420 = vector.load %arg2[%c24_250, %c0_251] : memref<25x256xf32, #tpu.memory_space<vmem>>, vector<1x256xf32>
    %421 = vector.broadcast %420 : vector<1x256xf32> to vector<2x256xf32>
    %422 = arith.mulf %419, %421 : vector<2x256xf32>
    %423 = tpu.concatenate %327, %331, %335, %339, %343, %347, %351, %355, %359, %363, %367, %371, %374, %378, %382, %386 in 0 : vector<2x256xf32>, vector<2x256xf32>, vector<2x256xf32>, vector<2x256xf32>, vector<2x256xf32>, vector<2x256xf32>, vector<2x256xf32>, vector<2x256xf32>, vector<2x256xf32>, vector<2x256xf32>, vector<2x256xf32>, vector<2x256xf32>, vector<2x256xf32>, vector<2x256xf32>, vector<2x256xf32>, vector<2x256xf32> -> vector<32x256xf32>
    %424 = tpu.concatenate %390, %394, %398, %402, %406, %410, %414, %418, %422 in 0 : vector<2x256xf32>, vector<2x256xf32>, vector<2x256xf32>, vector<2x256xf32>, vector<2x256xf32>, vector<2x256xf32>, vector<2x256xf32>, vector<2x256xf32>, vector<2x256xf32> -> vector<18x256xf32>
    %425 = tpu.concatenate %423, %424 in 0 : vector<32x256xf32>, vector<18x256xf32> -> vector<50x256xf32>
    %cst_252 = arith.constant dense<0.000000e+00> : vector<4x256xf32>
    %426 = tpu.matmul %8, %425, %cst_252 {dimension_numbers = #tpu.dot_dimension_numbers<[1], [0], [0], [1], [0, 0, 1, 1], [], []>} : vector<4x50xf32>, vector<50x256xf32>, vector<4x256xf32> -> vector<4x256xf32>
    %427 = vector.broadcast %9 : vector<4x1xf32> to vector<4x256xf32>
    %428 = arith.addf %426, %427 : vector<4x256xf32>
    %cst_253 = arith.constant 0.000000e+00 : f32
    %429 = vector.broadcast %cst_253 : f32 to vector<4x256xf32>
    %430 = arith.maximumf %428, %429 : vector<4x256xf32>
    %c6_254 = arith.constant 6 : index
    %c0_255 = arith.constant 0 : index
    %431 = vector.load %arg2[%c6_254, %c0_255] : memref<25x256xf32, #tpu.memory_space<vmem>>, vector<1x256xf32>
    %cst_256 = arith.constant 5.000000e-01 : f32
    %432 = vector.broadcast %cst_256 : f32 to vector<1x256xf32>
    %433 = arith.cmpf ogt, %431, %432 : vector<1x256xf32>
    %c17_i32_257 = arith.constant 17 : i32
    %434 = tpu.dynamic_rotate %267 by %c17_i32_257 dim 1 : vector<4x256xf32>, i32 -> vector<4x256xf32>
    %cst_258 = arith.constant 0xFF800000 : f32
    %435 = vector.shape_cast %433 : vector<1x256xi1> to vector<1x256xi1>
    %436 = vector.broadcast %435 : vector<1x256xi1> to vector<4x256xi1>
    %437 = vector.broadcast %cst_258 : f32 to vector<4x256xf32>
    %438 = arith.select %436, %434, %437 : vector<4x256xi1>, vector<4x256xf32>
    %439 = arith.maximumf %267, %438 : vector<4x256xf32>
    %c7_259 = arith.constant 7 : index
    %c0_260 = arith.constant 0 : index
    %440 = vector.load %arg2[%c7_259, %c0_260] : memref<25x256xf32, #tpu.memory_space<vmem>>, vector<1x256xf32>
    %cst_261 = arith.constant 5.000000e-01 : f32
    %441 = vector.broadcast %cst_261 : f32 to vector<1x256xf32>
    %442 = arith.cmpf ogt, %440, %441 : vector<1x256xf32>
    %c16_i32_262 = arith.constant 16 : i32
    %443 = tpu.dynamic_rotate %267 by %c16_i32_262 dim 1 : vector<4x256xf32>, i32 -> vector<4x256xf32>
    %cst_263 = arith.constant 0xFF800000 : f32
    %444 = vector.shape_cast %442 : vector<1x256xi1> to vector<1x256xi1>
    %445 = vector.broadcast %444 : vector<1x256xi1> to vector<4x256xi1>
    %446 = vector.broadcast %cst_263 : f32 to vector<4x256xf32>
    %447 = arith.select %445, %443, %446 : vector<4x256xi1>, vector<4x256xf32>
    %448 = arith.maximumf %439, %447 : vector<4x256xf32>
    %c8_264 = arith.constant 8 : index
    %c0_265 = arith.constant 0 : index
    %449 = vector.load %arg2[%c8_264, %c0_265] : memref<25x256xf32, #tpu.memory_space<vmem>>, vector<1x256xf32>
    %cst_266 = arith.constant 5.000000e-01 : f32
    %450 = vector.broadcast %cst_266 : f32 to vector<1x256xf32>
    %451 = arith.cmpf ogt, %449, %450 : vector<1x256xf32>
    %c15_i32_267 = arith.constant 15 : i32
    %452 = tpu.dynamic_rotate %267 by %c15_i32_267 dim 1 : vector<4x256xf32>, i32 -> vector<4x256xf32>
    %cst_268 = arith.constant 0xFF800000 : f32
    %453 = vector.shape_cast %451 : vector<1x256xi1> to vector<1x256xi1>
    %454 = vector.broadcast %453 : vector<1x256xi1> to vector<4x256xi1>
    %455 = vector.broadcast %cst_268 : f32 to vector<4x256xf32>
    %456 = arith.select %454, %452, %455 : vector<4x256xi1>, vector<4x256xf32>
    %457 = arith.maximumf %448, %456 : vector<4x256xf32>
    %c11_269 = arith.constant 11 : index
    %c0_270 = arith.constant 0 : index
    %458 = vector.load %arg2[%c11_269, %c0_270] : memref<25x256xf32, #tpu.memory_space<vmem>>, vector<1x256xf32>
    %cst_271 = arith.constant 5.000000e-01 : f32
    %459 = vector.broadcast %cst_271 : f32 to vector<1x256xf32>
    %460 = arith.cmpf ogt, %458, %459 : vector<1x256xf32>
    %c1_i32_272 = arith.constant 1 : i32
    %461 = tpu.dynamic_rotate %267 by %c1_i32_272 dim 1 : vector<4x256xf32>, i32 -> vector<4x256xf32>
    %cst_273 = arith.constant 0xFF800000 : f32
    %462 = vector.shape_cast %460 : vector<1x256xi1> to vector<1x256xi1>
    %463 = vector.broadcast %462 : vector<1x256xi1> to vector<4x256xi1>
    %464 = vector.broadcast %cst_273 : f32 to vector<4x256xf32>
    %465 = arith.select %463, %461, %464 : vector<4x256xi1>, vector<4x256xf32>
    %466 = arith.maximumf %457, %465 : vector<4x256xf32>
    %c13_274 = arith.constant 13 : index
    %c0_275 = arith.constant 0 : index
    %467 = vector.load %arg2[%c13_274, %c0_275] : memref<25x256xf32, #tpu.memory_space<vmem>>, vector<1x256xf32>
    %cst_276 = arith.constant 5.000000e-01 : f32
    %468 = vector.broadcast %cst_276 : f32 to vector<1x256xf32>
    %469 = arith.cmpf ogt, %467, %468 : vector<1x256xf32>
    %c255_i32_277 = arith.constant 255 : i32
    %470 = tpu.dynamic_rotate %267 by %c255_i32_277 dim 1 : vector<4x256xf32>, i32 -> vector<4x256xf32>
    %cst_278 = arith.constant 0xFF800000 : f32
    %471 = vector.shape_cast %469 : vector<1x256xi1> to vector<1x256xi1>
    %472 = vector.broadcast %471 : vector<1x256xi1> to vector<4x256xi1>
    %473 = vector.broadcast %cst_278 : f32 to vector<4x256xf32>
    %474 = arith.select %472, %470, %473 : vector<4x256xi1>, vector<4x256xf32>
    %475 = arith.maximumf %466, %474 : vector<4x256xf32>
    %c16_279 = arith.constant 16 : index
    %c0_280 = arith.constant 0 : index
    %476 = vector.load %arg2[%c16_279, %c0_280] : memref<25x256xf32, #tpu.memory_space<vmem>>, vector<1x256xf32>
    %cst_281 = arith.constant 5.000000e-01 : f32
    %477 = vector.broadcast %cst_281 : f32 to vector<1x256xf32>
    %478 = arith.cmpf ogt, %476, %477 : vector<1x256xf32>
    %c241_i32_282 = arith.constant 241 : i32
    %479 = tpu.dynamic_rotate %267 by %c241_i32_282 dim 1 : vector<4x256xf32>, i32 -> vector<4x256xf32>
    %cst_283 = arith.constant 0xFF800000 : f32
    %480 = vector.shape_cast %478 : vector<1x256xi1> to vector<1x256xi1>
    %481 = vector.broadcast %480 : vector<1x256xi1> to vector<4x256xi1>
    %482 = vector.broadcast %cst_283 : f32 to vector<4x256xf32>
    %483 = arith.select %481, %479, %482 : vector<4x256xi1>, vector<4x256xf32>
    %484 = arith.maximumf %475, %483 : vector<4x256xf32>
    %c17_284 = arith.constant 17 : index
    %c0_285 = arith.constant 0 : index
    %485 = vector.load %arg2[%c17_284, %c0_285] : memref<25x256xf32, #tpu.memory_space<vmem>>, vector<1x256xf32>
    %cst_286 = arith.constant 5.000000e-01 : f32
    %486 = vector.broadcast %cst_286 : f32 to vector<1x256xf32>
    %487 = arith.cmpf ogt, %485, %486 : vector<1x256xf32>
    %c240_i32_287 = arith.constant 240 : i32
    %488 = tpu.dynamic_rotate %267 by %c240_i32_287 dim 1 : vector<4x256xf32>, i32 -> vector<4x256xf32>
    %cst_288 = arith.constant 0xFF800000 : f32
    %489 = vector.shape_cast %487 : vector<1x256xi1> to vector<1x256xi1>
    %490 = vector.broadcast %489 : vector<1x256xi1> to vector<4x256xi1>
    %491 = vector.broadcast %cst_288 : f32 to vector<4x256xf32>
    %492 = arith.select %490, %488, %491 : vector<4x256xi1>, vector<4x256xf32>
    %493 = arith.maximumf %484, %492 : vector<4x256xf32>
    %c18_289 = arith.constant 18 : index
    %c0_290 = arith.constant 0 : index
    %494 = vector.load %arg2[%c18_289, %c0_290] : memref<25x256xf32, #tpu.memory_space<vmem>>, vector<1x256xf32>
    %cst_291 = arith.constant 5.000000e-01 : f32
    %495 = vector.broadcast %cst_291 : f32 to vector<1x256xf32>
    %496 = arith.cmpf ogt, %494, %495 : vector<1x256xf32>
    %c239_i32_292 = arith.constant 239 : i32
    %497 = tpu.dynamic_rotate %267 by %c239_i32_292 dim 1 : vector<4x256xf32>, i32 -> vector<4x256xf32>
    %cst_293 = arith.constant 0xFF800000 : f32
    %498 = vector.shape_cast %496 : vector<1x256xi1> to vector<1x256xi1>
    %499 = vector.broadcast %498 : vector<1x256xi1> to vector<4x256xi1>
    %500 = vector.broadcast %cst_293 : f32 to vector<4x256xf32>
    %501 = arith.select %499, %497, %500 : vector<4x256xi1>, vector<4x256xf32>
    %502 = arith.maximumf %493, %501 : vector<4x256xf32>
    %cst_294 = arith.constant dense<0.000000e+00> : vector<4x256xf32>
    %503 = tpu.matmul %10, %502, %cst_294 {dimension_numbers = #tpu.dot_dimension_numbers<[1], [0], [0], [1], [0, 0, 1, 1], [], []>} : vector<4x4xf32>, vector<4x256xf32>, vector<4x256xf32> -> vector<4x256xf32>
    %504 = vector.broadcast %11 : vector<4x1xf32> to vector<4x256xf32>
    %505 = arith.addf %503, %504 : vector<4x256xf32>
    %cst_295 = arith.constant 0.000000e+00 : f32
    %506 = vector.broadcast %cst_295 : f32 to vector<4x256xf32>
    %507 = arith.maximumf %505, %506 : vector<4x256xf32>
    %c1_296 = arith.constant 1 : index
    %c0_297 = arith.constant 0 : index
    %c0_298 = arith.constant 0 : index
    %508 = vector.load %arg15[%c1_296, %c0_297, %c0_298] : memref<2x20x256xf32, #tpu.memory_space<vmem>>, vector<1x4x256xf32>
    %509 = vector.shape_cast %508 : vector<1x4x256xf32> to vector<4x256xf32>
    %510 = vector.shape_cast %272 : vector<4x256xf32> to vector<1x4x256xf32>
    tpu.vector_store %arg15[%c1_296, %c0_297, %c0_298], %510 {strides = array<i32>} : memref<2x20x256xf32, #tpu.memory_space<vmem>>, vector<1x4x256xf32>,
    %c1_299 = arith.constant 1 : index
    %c4_300 = arith.constant 4 : index
    %c0_301 = arith.constant 0 : index
    %511 = vector.load %arg15[%c1_299, %c4_300, %c0_301] : memref<2x20x256xf32, #tpu.memory_space<vmem>>, vector<1x8x256xf32>
    %512 = vector.shape_cast %511 : vector<1x8x256xf32> to vector<8x256xf32>
    %513 = vector.shape_cast %318 : vector<8x256xf32> to vector<1x8x256xf32>
    tpu.vector_store %arg15[%c1_299, %c4_300, %c0_301], %513 {strides = array<i32>} : memref<2x20x256xf32, #tpu.memory_space<vmem>>, vector<1x8x256xf32>,
    %c1_302 = arith.constant 1 : index
    %c12_303 = arith.constant 12 : index
    %c0_304 = arith.constant 0 : index
    %514 = vector.load %arg15[%c1_302, %c12_303, %c0_304] : memref<2x20x256xf32, #tpu.memory_space<vmem>>, vector<1x4x256xf32>
    %515 = vector.shape_cast %514 : vector<1x4x256xf32> to vector<4x256xf32>
    %516 = vector.shape_cast %430 : vector<4x256xf32> to vector<1x4x256xf32>
    tpu.vector_store %arg15[%c1_302, %c12_303, %c0_304], %516 {strides = array<i32>} : memref<2x20x256xf32, #tpu.memory_space<vmem>>, vector<1x4x256xf32>,
    %c1_305 = arith.constant 1 : index
    %c16_306 = arith.constant 16 : index
    %c0_307 = arith.constant 0 : index
    %517 = vector.load %arg15[%c1_305, %c16_306, %c0_307] : memref<2x20x256xf32, #tpu.memory_space<vmem>>, vector<1x4x256xf32>
    %518 = vector.shape_cast %517 : vector<1x4x256xf32> to vector<4x256xf32>
    %519 = vector.shape_cast %507 : vector<4x256xf32> to vector<1x4x256xf32>
    tpu.vector_store %arg15[%c1_305, %c16_306, %c0_307], %519 {strides = array<i32>} : memref<2x20x256xf32, #tpu.memory_space<vmem>>, vector<1x4x256xf32>,
    return
  }
  func.func @transform_0(%arg0: i32) -> (i32, i32, i32) {
    %c0_i32 = arith.constant 0 : i32
    %c0_i32_0 = arith.constant 0 : i32
    %c0_i32_1 = arith.constant 0 : i32
    return %arg0, %c0_i32, %c0_i32_0 : i32, i32, i32
  }
  func.func @transform_1(%arg0: i32) -> (i32, i32) {
    %c0_i32 = arith.constant 0 : i32
    %c0_i32_0 = arith.constant 0 : i32
    %c0_i32_1 = arith.constant 0 : i32
    return %c0_i32, %c0_i32_0 : i32, i32
  }
  func.func @transform_2(%arg0: i32) -> (i32, i32) {
    %c0_i32 = arith.constant 0 : i32
    %c0_i32_0 = arith.constant 0 : i32
    %c0_i32_1 = arith.constant 0 : i32
    return %c0_i32, %c0_i32_0 : i32, i32
  }
  func.func @transform_3(%arg0: i32) -> (i32, i32) {
    %c0_i32 = arith.constant 0 : i32
    %c0_i32_0 = arith.constant 0 : i32
    %c0_i32_1 = arith.constant 0 : i32
    return %c0_i32, %c0_i32_0 : i32, i32
  }
  func.func @transform_4(%arg0: i32) -> (i32, i32) {
    %c0_i32 = arith.constant 0 : i32
    %c0_i32_0 = arith.constant 0 : i32
    %c0_i32_1 = arith.constant 0 : i32
    return %c0_i32, %c0_i32_0 : i32, i32
  }
  func.func @transform_5(%arg0: i32) -> (i32, i32) {
    %c0_i32 = arith.constant 0 : i32
    %c0_i32_0 = arith.constant 0 : i32
    %c0_i32_1 = arith.constant 0 : i32
    return %c0_i32, %c0_i32_0 : i32, i32
  }
  func.func @transform_6(%arg0: i32) -> (i32, i32) {
    %c0_i32 = arith.constant 0 : i32
    %c0_i32_0 = arith.constant 0 : i32
    %c0_i32_1 = arith.constant 0 : i32
    return %c0_i32, %c0_i32_0 : i32, i32
  }
  func.func @transform_7(%arg0: i32) -> (i32, i32) {
    %c0_i32 = arith.constant 0 : i32
    %c0_i32_0 = arith.constant 0 : i32
    %c0_i32_1 = arith.constant 0 : i32
    return %c0_i32, %c0_i32_0 : i32, i32
  }
  func.func @transform_8(%arg0: i32) -> (i32, i32) {
    %c0_i32 = arith.constant 0 : i32
    %c0_i32_0 = arith.constant 0 : i32
    %c0_i32_1 = arith.constant 0 : i32
    return %c0_i32, %c0_i32_0 : i32, i32
  }
  func.func @transform_9(%arg0: i32) -> (i32, i32) {
    %c0_i32 = arith.constant 0 : i32
    %c0_i32_0 = arith.constant 0 : i32
    %c0_i32_1 = arith.constant 0 : i32
    return %c0_i32, %c0_i32_0 : i32, i32
  }
  func.func @transform_10(%arg0: i32) -> (i32, i32) {
    %c0_i32 = arith.constant 0 : i32
    %c0_i32_0 = arith.constant 0 : i32
    %c0_i32_1 = arith.constant 0 : i32
    return %c0_i32, %c0_i32_0 : i32, i32
  }
  func.func @transform_11(%arg0: i32) -> (i32, i32) {
    %c0_i32 = arith.constant 0 : i32
    %c0_i32_0 = arith.constant 0 : i32
    %c0_i32_1 = arith.constant 0 : i32
    return %c0_i32, %c0_i32_0 : i32, i32
  }
  func.func @transform_12(%arg0: i32) -> (i32, i32) {
    %c0_i32 = arith.constant 0 : i32
    %c0_i32_0 = arith.constant 0 : i32
    %c0_i32_1 = arith.constant 0 : i32
    return %c0_i32, %c0_i32_0 : i32, i32
  }
  func.func @transform_13(%arg0: i32) -> (i32, i32) {
    %c0_i32 = arith.constant 0 : i32
    %c0_i32_0 = arith.constant 0 : i32
    %c0_i32_1 = arith.constant 0 : i32
    return %c0_i32, %c0_i32_0 : i32, i32
  }
  func.func @transform_14(%arg0: i32) -> (i32, i32, i32) {
    %c0_i32 = arith.constant 0 : i32
    %c0_i32_0 = arith.constant 0 : i32
    %c0_i32_1 = arith.constant 0 : i32
    return %arg0, %c0_i32, %c0_i32_0 : i32, i32, i32
  }
}

</mosaic_0001>

<llo_original>
// kernel: tpu_custom_call.1
$region0: #{tpu_custom_call.1}
  #allocation0 [shape = 'u32[]', space=smem, size = 0x4, offset = 0x4, fixed_abs, tag = 'smem constant byte address 0x4 - core index']
  #allocation1 [shape = 'u32[72,128]{1,0:T(1,128)}', space=vmem, size = 0x9000, scoped, tag = 'internal scratch']
  %s0 = inlined_call_operand.hbm [shape: f32[2,4,256], index: 0, kind: input, shape index: {}]
  %s1 = inlined_call_operand.hbm [shape: f32[25,256], index: 1, kind: input, shape index: {}]
  %s2 = inlined_call_operand.vmem [shape: f32[4,4], index: 2, kind: input, shape index: {}]
  %s3 = inlined_call_operand.vmem [shape: f32[4,1], index: 3, kind: input, shape index: {}]
  %s4 = inlined_call_operand.vmem [shape: f32[4,4], index: 4, kind: input, shape index: {}]
  %s5 = inlined_call_operand.vmem [shape: f32[4,1], index: 5, kind: input, shape index: {}]
  %s6 = inlined_call_operand.vmem [shape: f32[8,36], index: 6, kind: input, shape index: {}]
  %s7 = inlined_call_operand.vmem [shape: f32[8,1], index: 7, kind: input, shape index: {}]
  %s8 = inlined_call_operand.vmem [shape: f32[2,4], index: 8, kind: input, shape index: {}]
  %s9 = inlined_call_operand.vmem [shape: f32[2,1], index: 9, kind: input, shape index: {}]
  %s10 = inlined_call_operand.vmem [shape: f32[4,50], index: 10, kind: input, shape index: {}]
  %s11 = inlined_call_operand.vmem [shape: f32[4,1], index: 11, kind: input, shape index: {}]
  %s12 = inlined_call_operand.vmem [shape: f32[4,4], index: 12, kind: input, shape index: {}]
  %s13 = inlined_call_operand.vmem [shape: f32[4,1], index: 13, kind: input, shape index: {}]
  %s14 = inlined_call_operand.vmem [shape: f32[2,20,256], index: 14, kind: output, shape index: {}]
  %s15 = sld [smem:[#allocation0]]
  $region74: #{tpu_custom_call.1} parent=0
    _
  %s17 = ssub.s32 1, %s15
  %s18 = scalar_select 0, %s17, %s15
  $region1: #{tpu_custom_call.1} parent=0
    #allocation2 [shape = 'u8[8192]{0}', space=vmem, size = 0x2000, scoped, tag = 'input window, operand 0, single buffered']
    #allocation3 [shape = 's32[1]{0}', space=sflag, size = 0x4, scoped, tag = 'scoped memory for tpu_custom_call.1']
    #allocation4 [shape = 'u8[32768]{0}', space=vmem, size = 0x8000, scoped, tag = 'input window, operand 1, single buffered']
    #allocation5 [shape = 's32[1]{0}', space=sflag, size = 0x4, scoped, tag = 'scoped memory for tpu_custom_call.1']
    %19 = vsyncpa [#allocation3], 0
    %20 = vsyncpa [#allocation5], 0
    // Predicated region
    $region2: #{tpu_custom_call.1} parent=1 // pred_check
      _
    $region3: #{tpu_custom_call.1} parent=1 // pred_check_branch
      %22 = sbr.rel (0) target = $region5
    $region4: #{tpu_custom_call.1} parent=1 // pred_region
      %24 = vsyncadd [#allocation3], 0
      %s25 = sshll.u32 %s0, 4
      %s26 = int_to_ptr.hbm [resolvable:$true] %s25
      %s27 = sshll.u32 [#allocation2], 4
      %s28 = int_to_ptr.vmem [resolvable:$true] %s27
      %33 = dma.hbm_to_vmem [thread:$0]  %s26, 256, %s28, [#allocation3], 128, 128, 8
    $region5: #{tpu_custom_call.1} parent=1 // pred_fallthru
      _
    // Predicated region
    $region6: #{tpu_custom_call.1} parent=1 // pred_check
      _
    $region7: #{tpu_custom_call.1} parent=1 // pred_check_branch
      %35 = sbr.rel (0) target = $region9
    $region8: #{tpu_custom_call.1} parent=1 // pred_region
      %37 = vsyncadd [#allocation5], 0
      %s38 = sshll.u32 %s1, 4
      %s39 = int_to_ptr.hbm [resolvable:$true] %s38
      %s40 = sshll.u32 [#allocation4], 4
      %s41 = int_to_ptr.vmem [resolvable:$true] %s40
      %46 = dma.hbm_to_vmem [thread:$0]  %s39, 1024, %s41, [#allocation5], 256, 256, 16
    $region9: #{tpu_custom_call.1} parent=1 // pred_fallthru
      _
    // Predicated region
    $region10: #{tpu_custom_call.1} parent=1 // pred_check
      _
    $region11: #{tpu_custom_call.1} parent=1 // pred_check_branch
      %48 = sbr.rel (0) target = $region13
    $region12: #{tpu_custom_call.1} parent=1 // pred_region
      _
    $region13: #{tpu_custom_call.1} parent=1 // pred_fallthru
      _
    // Predicated region
    $region14: #{tpu_custom_call.1} parent=1 // pred_check
      _
    $region15: #{tpu_custom_call.1} parent=1 // pred_check_branch
      %50 = sbr.rel (0) target = $region17
    $region16: #{tpu_custom_call.1} parent=1 // pred_region
      _
    $region17: #{tpu_custom_call.1} parent=1 // pred_fallthru
      _
    // Predicated region
    $region18: #{tpu_custom_call.1} parent=1 // pred_check
      _
    $region19: #{tpu_custom_call.1} parent=1 // pred_check_branch
      %52 = sbr.rel (0) target = $region21
    $region20: #{tpu_custom_call.1} parent=1 // pred_region
      _
    $region21: #{tpu_custom_call.1} parent=1 // pred_fallthru
      _
    // Predicated region
    $region22: #{tpu_custom_call.1} parent=1 // pred_check
      _
    $region23: #{tpu_custom_call.1} parent=1 // pred_check_branch
      %54 = sbr.rel (0) target = $region25
    $region24: #{tpu_custom_call.1} parent=1 // pred_region
      _
    $region25: #{tpu_custom_call.1} parent=1 // pred_fallthru
      _
    // Predicated region
    $region26: #{tpu_custom_call.1} parent=1 // pred_check
      _
    $region27: #{tpu_custom_call.1} parent=1 // pred_check_branch
      %56 = sbr.rel (0) target = $region29
    $region28: #{tpu_custom_call.1} parent=1 // pred_region
      _
    $region29: #{tpu_custom_call.1} parent=1 // pred_fallthru
      _
    // Predicated region
    $region30: #{tpu_custom_call.1} parent=1 // pred_check
      _
    $region31: #{tpu_custom_call.1} parent=1 // pred_check_branch
      %58 = sbr.rel (0) target = $region33
    $region32: #{tpu_custom_call.1} parent=1 // pred_region
      _
    $region33: #{tpu_custom_call.1} parent=1 // pred_fallthru
      _
    // Predicated region
    $region34: #{tpu_custom_call.1} parent=1 // pred_check
      _
    $region35: #{tpu_custom_call.1} parent=1 // pred_check_branch
      %60 = sbr.rel (0) target = $region37
    $region36: #{tpu_custom_call.1} parent=1 // pred_region
      _
    $region37: #{tpu_custom_call.1} parent=1 // pred_fallthru
      _
    // Predicated region
    $region38: #{tpu_custom_call.1} parent=1 // pred_check
      _
    $region39: #{tpu_custom_call.1} parent=1 // pred_check_branch
      %62 = sbr.rel (0) target = $region41
    $region40: #{tpu_custom_call.1} parent=1 // pred_region
      _
    $region41: #{tpu_custom_call.1} parent=1 // pred_fallthru
      _
    // Predicated region
    $region42: #{tpu_custom_call.1} parent=1 // pred_check
      _
    $region43: #{tpu_custom_call.1} parent=1 // pred_check_branch
      %64 = sbr.rel (0) target = $region45
    $region44: #{tpu_custom_call.1} parent=1 // pred_region
      _
    $region45: #{tpu_custom_call.1} parent=1 // pred_fallthru
      _
    // Predicated region
    $region46: #{tpu_custom_call.1} parent=1 // pred_check
      _
    $region47: #{tpu_custom_call.1} parent=1 // pred_check_branch
      %66 = sbr.rel (0) target = $region49
    $region48: #{tpu_custom_call.1} parent=1 // pred_region
      _
    $region49: #{tpu_custom_call.1} parent=1 // pred_fallthru
      _
    // Predicated region
    $region50: #{tpu_custom_call.1} parent=1 // pred_check
      _
    $region51: #{tpu_custom_call.1} parent=1 // pred_check_branch
      %68 = sbr.rel (0) target = $region53
    $region52: #{tpu_custom_call.1} parent=1 // pred_region
      _
    $region53: #{tpu_custom_call.1} parent=1 // pred_fallthru
      _
    // Predicated region
    $region54: #{tpu_custom_call.1} parent=1 // pred_check
      _
    $region55: #{tpu_custom_call.1} parent=1 // pred_check_branch
      %70 = sbr.rel (0) target = $region57
    $region56: #{tpu_custom_call.1} parent=1 // pred_region
      _
    $region57: #{tpu_custom_call.1} parent=1 // pred_fallthru
      _
    // Predicated region
    $region58: #{tpu_custom_call.1} parent=1 // pred_check
      _
    $region59: #{tpu_custom_call.1} parent=1 // pred_check_branch
      %72 = sbr.rel (0) target = $region61
    $region60: #{tpu_custom_call.1} parent=1 // pred_region
      %74 = dma.done [#allocation3], 256
    $region61: #{tpu_custom_call.1} parent=1 // pred_fallthru
      _
    // Predicated region
    $region62: #{tpu_custom_call.1} parent=1 // pred_check
      _
    $region63: #{tpu_custom_call.1} parent=1 // pred_check_branch
      %76 = sbr.rel (0) target = $region65
    $region64: #{tpu_custom_call.1} parent=1 // pred_region
      %78 = dma.done [#allocation5], 1024
    $region65: #{tpu_custom_call.1} parent=1 // pred_fallthru
      _
    %v79 = vld [vmem:[%s2] sm:$0xf]
    %v80 = vld [vmem:[%s3] sm:$0xf]
    %v81 = vld [vmem:[%s4] sm:$0xf]
    %v82 = vld [vmem:[%s5] sm:$0xf]
    %v83 = vld [vmem:[%s6] sm:$0xff]
    %v84 = vld [vmem:[%s7] sm:$0xff]
    %v85 = vld [vmem:[%s8] sm:$0x3]
    %v86 = vld [vmem:[%s9] sm:$0x3]
    %v87 = vld [vmem:[%s10] sm:$0xf]
    %v88 = vld [vmem:[%s11] sm:$0xf]
    %v89 = vld [vmem:[%s12] sm:$0xf]
    %v90 = vld [vmem:[%s13] sm:$0xf]
    %v91 = vld [vmem:[#allocation2] sm:$0xff]
    %93 = vset.pattern.permute.xlu0 0
    %94 = vperm.xlu0 %93, %v80
    %v95 = vpop.permute.xlu0 %94
    %98 = vst [vmem:[#allocation1] ss:$2 sm:$0xff] %v91
    %v99 = vld.sshfl [vmem:[#allocation1] sm:$0xff pattern:$0x75316420]
    %v100 = vld.sshfl [vmem:[#allocation1 + $0x8] sm:$0xff pattern:$0x75316420]
    %vm101 = vcmask 31744
    %v103 = vsel %vm101, %v79, 0
    %vm105 = vcmask 1043456
    %v106 = vsel %vm105, %v99, 0
    %v108 = vsel %vm105, %v100, 0
    %110 = vmatpush.msra.mxu0 0.0
    %111 = vmatpush.msra.mxu0 0.0
    %112 = vmatpush.msra.mxu0 0.0
    %113 = vmatpush.msra.mxu0 0.0
    %114 = vmatpush.msra.mxu0 0.0
    %115 = vmatpush.msra.mxu0 0.0
    %116 = vmatpush.msra.mxu0 0.0
    %117 = vmatpush.msra.mxu0 0.0
    %118 = vmatpush.msra.mxu0 0.0
    %119 = vmatpush.msra.mxu0 0.0
    %120 = vmatpush.msra.mxu0 0.0
    %121 = vmatpush.msra.mxu0 0.0
    %122 = vmatpush.msra.mxu0 0.0
    %123 = vmatpush.msra.mxu0 0.0
    %124 = vmatpush.msra.mxu0 0.0
    %125 = vmatpush.msra.mxu0 %v106
    %126 = vmatmul.f32.gmra.mxu0 %v103
    %v127 = vpop.f32.mrf.mxu0
    %v128 = vadd.f32 %v95, %v127
    %129 = vdwg.mxu0
    %130 = vmatpush.msra.mxu0 0.0
    %131 = vmatpush.msra.mxu0 0.0
    %132 = vmatpush.msra.mxu0 0.0
    %133 = vmatpush.msra.mxu0 0.0
    %134 = vmatpush.msra.mxu0 0.0
    %135 = vmatpush.msra.mxu0 0.0
    %136 = vmatpush.msra.mxu0 0.0
    %137 = vmatpush.msra.mxu0 0.0
    %138 = vmatpush.msra.mxu0 0.0
    %139 = vmatpush.msra.mxu0 0.0
    %140 = vmatpush.msra.mxu0 0.0
    %141 = vmatpush.msra.mxu0 0.0
    %142 = vmatpush.msra.mxu0 0.0
    %143 = vmatpush.msra.mxu0 0.0
    %144 = vmatpush.msra.mxu0 0.0
    %145 = vmatpush.msra.mxu0 %v108
    %146 = vmatmul.f32.gmra.mxu0 %v103
    %v147 = vpop.f32.mrf.mxu0
    %v148 = vadd.f32 %v95, %v147
    %149 = vdwg.mxu0
    %v150 = vmax.f32 %v128, 0.0
    %v151 = vmax.f32 %v148, 0.0
    %153 = vset.pattern.permute.xlu0 0
    %154 = vperm.xlu0 %153, %v82
    %v155 = vpop.permute.xlu0 %154
    %157 = vst [vmem:[#allocation1] ss:$2 sm:$0xff] %v91
    %v158 = vld.sshfl [vmem:[#allocation1] sm:$0xff pattern:$0x75316420]
    %v159 = vld.sshfl [vmem:[#allocation1 + $0x8] sm:$0xff pattern:$0x75316420]
    %v161 = vsel %vm101, %v81, 0
    %v163 = vsel %vm105, %v158, 0
    %v165 = vsel %vm105, %v159, 0
    %167 = vmatpush.msra.mxu0 0.0
    %168 = vmatpush.msra.mxu0 0.0
    %169 = vmatpush.msra.mxu0 0.0
    %170 = vmatpush.msra.mxu0 0.0
    %171 = vmatpush.msra.mxu0 0.0
    %172 = vmatpush.msra.mxu0 0.0
    %173 = vmatpush.msra.mxu0 0.0
    %174 = vmatpush.msra.mxu0 0.0
    %175 = vmatpush.msra.mxu0 0.0
    %176 = vmatpush.msra.mxu0 0.0
    %177 = vmatpush.msra.mxu0 0.0
    %178 = vmatpush.msra.mxu0 0.0
    %179 = vmatpush.msra.mxu0 0.0
    %180 = vmatpush.msra.mxu0 0.0
    %181 = vmatpush.msra.mxu0 0.0
    %182 = vmatpush.msra.mxu0 %v163
    %183 = vmatmul.f32.gmra.mxu0 %v161
    %v184 = vpop.f32.mrf.mxu0
    %v185 = vadd.f32 %v155, %v184
    %186 = vdwg.mxu0
    %187 = vmatpush.msra.mxu0 0.0
    %188 = vmatpush.msra.mxu0 0.0
    %189 = vmatpush.msra.mxu0 0.0
    %190 = vmatpush.msra.mxu0 0.0
    %191 = vmatpush.msra.mxu0 0.0
    %192 = vmatpush.msra.mxu0 0.0
    %193 = vmatpush.msra.mxu0 0.0
    %194 = vmatpush.msra.mxu0 0.0
    %195 = vmatpush.msra.mxu0 0.0
    %196 = vmatpush.msra.mxu0 0.0
    %197 = vmatpush.msra.mxu0 0.0
    %198 = vmatpush.msra.mxu0 0.0
    %199 = vmatpush.msra.mxu0 0.0
    %200 = vmatpush.msra.mxu0 0.0
    %201 = vmatpush.msra.mxu0 0.0
    %202 = vmatpush.msra.mxu0 %v165
    %203 = vmatmul.f32.gmra.mxu0 %v161
    %v204 = vpop.f32.mrf.mxu0
    %v205 = vadd.f32 %v155, %v204
    %206 = vdwg.mxu0
    %v207 = vmax.f32 %v185, 0.0
    %v208 = vmax.f32 %v205, 0.0
    %209 = vrot.lane.b32.xlu0 %v207, 17
    %v210 = vpop.permute.xlu0 %209
    %211 = vrot.lane.b32.xlu0 %v208, 17
    %v212 = vpop.permute.xlu0 %211
    %v213 = vlaneseq
    %v214 = vand.u32 %v213, 127
    %vm215 = vcmp.lt.s32.totalorder %v214, 17
    %v216 = vsel %vm215, %v210, %v212
    %v217 = vsel %vm215, %v212, %v210
    %s218 = scalar_lea.vmem [#allocation4], 6
    %v219 = vld [vmem:[%s218] ss:$8 sm:$0x3]
    %v221 = vperm.slane %v219, 0
    %v222 = vperm.slane %v219, 1
    %v225 = vmul.f32 %v217, %v221
    %v226 = vmul.f32 %v216, %v222
    %227 = vrot.lane.b32.xlu0 %v207, 16
    %v228 = vpop.permute.xlu0 %227
    %229 = vrot.lane.b32.xlu0 %v208, 16
    %v230 = vpop.permute.xlu0 %229
    %vm231 = vcmp.lt.s32.totalorder %v214, 16
    %v232 = vsel %vm231, %v228, %v230
    %v233 = vsel %vm231, %v230, %v228
    %s234 = scalar_lea.vmem [#allocation4], 7
    %v235 = vld [vmem:[%s234] ss:$8 sm:$0x3]
    %v237 = vperm.slane %v235, 0
    %v238 = vperm.slane %v235, 1
    %v241 = vmul.f32 %v233, %v237
    %v242 = vmul.f32 %v232, %v238
    %243 = vrot.lane.b32.xlu0 %v207, 15
    %v244 = vpop.permute.xlu0 %243
    %245 = vrot.lane.b32.xlu0 %v208, 15
    %v246 = vpop.permute.xlu0 %245
    %vm247 = vcmp.lt.s32.totalorder %v214, 15
    %v248 = vsel %vm247, %v244, %v246
    %v249 = vsel %vm247, %v246, %v244
    %s250 = scalar_lea.vmem [#allocation4], 16
    %v251 = vld [vmem:[%s250] ss:$8 sm:$0x3]
    %v253 = vperm.slane %v251, 0
    %v254 = vperm.slane %v251, 1
    %v257 = vmul.f32 %v249, %v253
    %v258 = vmul.f32 %v248, %v254
    %259 = vrot.lane.b32.xlu0 %v207, 1
    %v260 = vpop.permute.xlu0 %259
    %261 = vrot.lane.b32.xlu0 %v208, 1
    %v262 = vpop.permute.xlu0 %261
    %vm263 = vcmp.lt.s32.totalorder %v214, 1
    %v264 = vsel %vm263, %v260, %v262
    %v265 = vsel %vm263, %v262, %v260
    %s266 = scalar_lea.vmem [#allocation4], 19
    %v267 = vld [vmem:[%s266] ss:$8 sm:$0x3]
    %v269 = vperm.slane %v267, 0
    %v270 = vperm.slane %v267, 1
    %v273 = vmul.f32 %v265, %v269
    %v274 = vmul.f32 %v264, %v270
    %s275 = scalar_lea.vmem [#allocation4], 20
    %v276 = vld [vmem:[%s275] ss:$8 sm:$0x3]
    %v278 = vperm.slane %v276, 0
    %v279 = vperm.slane %v276, 1
    %v282 = vmul.f32 %v207, %v278
    %v283 = vmul.f32 %v208, %v279
    %284 = vrot.lane.b32.xlu0 %v207, 127
    %v285 = vpop.permute.xlu0 %284
    %286 = vrot.lane.b32.xlu0 %v208, 127
    %v287 = vpop.permute.xlu0 %286
    %vm288 = vcmp.lt.s32.totalorder %v214, 127
    %v289 = vsel %vm288, %v285, %v287
    %v290 = vsel %vm288, %v287, %v285
    %s291 = scalar_lea.vmem [#allocation4], 21
    %v292 = vld [vmem:[%s291] ss:$8 sm:$0x3]
    %v294 = vperm.slane %v292, 0
    %v295 = vperm.slane %v292, 1
    %v298 = vmul.f32 %v289, %v294
    %v299 = vmul.f32 %v290, %v295
    %300 = vrot.lane.b32.xlu0 %v207, 113
    %v301 = vpop.permute.xlu0 %300
    %302 = vrot.lane.b32.xlu0 %v208, 113
    %v303 = vpop.permute.xlu0 %302
    %vm304 = vcmp.lt.s32.totalorder %v214, 113
    %v305 = vsel %vm304, %v301, %v303
    %v306 = vsel %vm304, %v303, %v301
    %s307 = scalar_lea.vmem [#allocation4], 32
    %v308 = vld [vmem:[%s307] ss:$8 sm:$0x3]
    %v310 = vperm.slane %v308, 0
    %v311 = vperm.slane %v308, 1
    %v314 = vmul.f32 %v305, %v310
    %v315 = vmul.f32 %v306, %v311
    %316 = vrot.lane.b32.xlu0 %v207, 112
    %v317 = vpop.permute.xlu0 %316
    %318 = vrot.lane.b32.xlu0 %v208, 112
    %v319 = vpop.permute.xlu0 %318
    %vm320 = vcmp.lt.s32.totalorder %v214, 112
    %v321 = vsel %vm320, %v317, %v319
    %v322 = vsel %vm320, %v319, %v317
    %s323 = scalar_lea.vmem [#allocation4], 33
    %v324 = vld [vmem:[%s323] ss:$8 sm:$0x3]
    %v326 = vperm.slane %v324, 0
    %v327 = vperm.slane %v324, 1
    %v330 = vmul.f32 %v321, %v326
    %v331 = vmul.f32 %v322, %v327
    %332 = vrot.lane.b32.xlu0 %v207, 111
    %v333 = vpop.permute.xlu0 %332
    %334 = vrot.lane.b32.xlu0 %v208, 111
    %v335 = vpop.permute.xlu0 %334
    %vm336 = vcmp.lt.s32.totalorder %v214, 111
    %v337 = vsel %vm336, %v333, %v335
    %v338 = vsel %vm336, %v335, %v333
    %s339 = scalar_lea.vmem [#allocation4], 34
    %v340 = vld [vmem:[%s339] ss:$8 sm:$0x3]
    %v342 = vperm.slane %v340, 0
    %v343 = vperm.slane %v340, 1
    %v346 = vmul.f32 %v337, %v342
    %v347 = vmul.f32 %v338, %v343
    %v350 = vrot.slane %v241, 4
    %v351 = vrot.slane %v242, 4
    %v356 = vrot.slane %v273, 4
    %v357 = vrot.slane %v274, 4
    %v362 = vrot.slane %v298, 4
    %v363 = vrot.slane %v299, 4
    %v368 = vrot.slane %v330, 4
    %v369 = vrot.slane %v331, 4
    %v372 = vsel %vm105, %v225, %v350
    %v373 = vsel %vm105, %v226, %v351
    %v374 = vsel %vm105, %v257, %v356
    %v375 = vsel %vm105, %v258, %v357
    %v376 = vsel %vm105, %v282, %v362
    %v377 = vsel %vm105, %v283, %v363
    %v378 = vsel %vm105, %v314, %v368
    %v379 = vsel %vm105, %v315, %v369
    %381 = vset.pattern.permute.xlu0 0
    %382 = vperm.xlu0 %381, %v84
    %v383 = vpop.permute.xlu0 %382
    %vm385 = vcmask 293888
    %v387 = vsel %vm385, %v83, 0
    %v390 = vsel %vm105, %v346, 0
    %v393 = vsel %vm105, %v347, 0
    %395 = vmatpush.msra.mxu0 0.0
    %396 = vmatpush.msra.mxu0 0.0
    %397 = vmatpush.msra.mxu0 0.0
    %398 = vmatpush.msra.mxu0 0.0
    %399 = vmatpush.msra.mxu0 0.0
    %400 = vmatpush.msra.mxu0 0.0
    %401 = vmatpush.msra.mxu0 0.0
    %402 = vmatpush.msra.mxu0 0.0
    %403 = vmatpush.msra.mxu0 0.0
    %404 = vmatpush.msra.mxu0 0.0
    %405 = vmatpush.msra.mxu0 0.0
    %406 = vmatpush.msra.mxu0 %v390
    %407 = vmatpush.msra.mxu0 %v378
    %408 = vmatpush.msra.mxu0 %v376
    %409 = vmatpush.msra.mxu0 %v374
    %410 = vmatpush.msra.mxu0 %v372
    %411 = vmatmul.f32.gmra.mxu0 %v387
    %v412 = vpop.f32.mrf.mxu0
    %v413 = vadd.f32 %v383, %v412
    %414 = vdwg.mxu0
    %415 = vmatpush.msra.mxu0 0.0
    %416 = vmatpush.msra.mxu0 0.0
    %417 = vmatpush.msra.mxu0 0.0
    %418 = vmatpush.msra.mxu0 0.0
    %419 = vmatpush.msra.mxu0 0.0
    %420 = vmatpush.msra.mxu0 0.0
    %421 = vmatpush.msra.mxu0 0.0
    %422 = vmatpush.msra.mxu0 0.0
    %423 = vmatpush.msra.mxu0 0.0
    %424 = vmatpush.msra.mxu0 0.0
    %425 = vmatpush.msra.mxu0 0.0
    %426 = vmatpush.msra.mxu0 %v393
    %427 = vmatpush.msra.mxu0 %v379
    %428 = vmatpush.msra.mxu0 %v377
    %429 = vmatpush.msra.mxu0 %v375
    %430 = vmatpush.msra.mxu0 %v373
    %431 = vmatmul.f32.gmra.mxu0 %v387
    %v432 = vpop.f32.mrf.mxu0
    %v433 = vadd.f32 %v383, %v432
    %434 = vdwg.mxu0
    %v435 = vmax.f32 %v413, 0.0
    %v436 = vmax.f32 %v433, 0.0
    %438 = vset.pattern.permute.xlu0 0
    %439 = vperm.xlu0 %438, %v86
    %v440 = vpop.permute.xlu0 %439
    %442 = vst [vmem:[#allocation1] ss:$2 sm:$0xff] %v91
    %v443 = vld.sshfl [vmem:[#allocation1] sm:$0xff pattern:$0x75316420]
    %v444 = vld.sshfl [vmem:[#allocation1 + $0x8] sm:$0xff pattern:$0x75316420]
    %v446 = vsel %vm101, %v85, 0
    %v448 = vsel %vm105, %v443, 0
    %v450 = vsel %vm105, %v444, 0
    %452 = vmatpush.msra.mxu0 0.0
    %453 = vmatpush.msra.mxu0 0.0
    %454 = vmatpush.msra.mxu0 0.0
    %455 = vmatpush.msra.mxu0 0.0
    %456 = vmatpush.msra.mxu0 0.0
    %457 = vmatpush.msra.mxu0 0.0
    %458 = vmatpush.msra.mxu0 0.0
    %459 = vmatpush.msra.mxu0 0.0
    %460 = vmatpush.msra.mxu0 0.0
    %461 = vmatpush.msra.mxu0 0.0
    %462 = vmatpush.msra.mxu0 0.0
    %463 = vmatpush.msra.mxu0 0.0
    %464 = vmatpush.msra.mxu0 0.0
    %465 = vmatpush.msra.mxu0 0.0
    %466 = vmatpush.msra.mxu0 0.0
    %467 = vmatpush.msra.mxu0 %v448
    %468 = vmatmul.f32.gmra.mxu0 %v446
    %v469 = vpop.f32.mrf.mxu0
    %v470 = vadd.f32 %v440, %v469
    %471 = vdwg.mxu0
    %472 = vmatpush.msra.mxu0 0.0
    %473 = vmatpush.msra.mxu0 0.0
    %474 = vmatpush.msra.mxu0 0.0
    %475 = vmatpush.msra.mxu0 0.0
    %476 = vmatpush.msra.mxu0 0.0
    %477 = vmatpush.msra.mxu0 0.0
    %478 = vmatpush.msra.mxu0 0.0
    %479 = vmatpush.msra.mxu0 0.0
    %480 = vmatpush.msra.mxu0 0.0
    %481 = vmatpush.msra.mxu0 0.0
    %482 = vmatpush.msra.mxu0 0.0
    %483 = vmatpush.msra.mxu0 0.0
    %484 = vmatpush.msra.mxu0 0.0
    %485 = vmatpush.msra.mxu0 0.0
    %486 = vmatpush.msra.mxu0 0.0
    %487 = vmatpush.msra.mxu0 %v450
    %488 = vmatmul.f32.gmra.mxu0 %v446
    %v489 = vpop.f32.mrf.mxu0
    %v490 = vadd.f32 %v440, %v489
    %491 = vdwg.mxu0
    %v492 = vmax.f32 %v470, 0.0
    %v493 = vmax.f32 %v490, 0.0
    %494 = vrot.lane.b32.xlu0 %v492, 34
    %v495 = vpop.permute.xlu0 %494
    %496 = vrot.lane.b32.xlu0 %v493, 34
    %v497 = vpop.permute.xlu0 %496
    %vm498 = vcmp.lt.s32.totalorder %v214, 34
    %v499 = vsel %vm498, %v495, %v497
    %v500 = vsel %vm498, %v497, %v495
    %v501 = vld [vmem:[#allocation4] ss:$8 sm:$0x3]
    %v503 = vperm.slane %v501, 0
    %v504 = vperm.slane %v501, 1
    %v507 = vmul.f32 %v500, %v503
    %v508 = vmul.f32 %v499, %v504
    %509 = vrot.lane.b32.xlu0 %v492, 33
    %v510 = vpop.permute.xlu0 %509
    %511 = vrot.lane.b32.xlu0 %v493, 33
    %v512 = vpop.permute.xlu0 %511
    %vm513 = vcmp.lt.s32.totalorder %v214, 33
    %v514 = vsel %vm513, %v510, %v512
    %v515 = vsel %vm513, %v512, %v510
    %s516 = scalar_lea.vmem [#allocation4], 1
    %v517 = vld [vmem:[%s516] ss:$8 sm:$0x3]
    %v519 = vperm.slane %v517, 0
    %v520 = vperm.slane %v517, 1
    %v523 = vmul.f32 %v515, %v519
    %v524 = vmul.f32 %v514, %v520
    %525 = vrot.lane.b32.xlu0 %v492, 32
    %v526 = vpop.permute.xlu0 %525
    %527 = vrot.lane.b32.xlu0 %v493, 32
    %v528 = vpop.permute.xlu0 %527
    %vm529 = vcmp.lt.s32.totalorder %v214, 32
    %v530 = vsel %vm529, %v526, %v528
    %v531 = vsel %vm529, %v528, %v526
    %s532 = scalar_lea.vmem [#allocation4], 2
    %v533 = vld [vmem:[%s532] ss:$8 sm:$0x3]
    %v535 = vperm.slane %v533, 0
    %v536 = vperm.slane %v533, 1
    %v539 = vmul.f32 %v531, %v535
    %v540 = vmul.f32 %v530, %v536
    %541 = vrot.lane.b32.xlu0 %v492, 31
    %v542 = vpop.permute.xlu0 %541
    %543 = vrot.lane.b32.xlu0 %v493, 31
    %v544 = vpop.permute.xlu0 %543
    %vm545 = vcmp.lt.s32.totalorder %v214, 31
    %v546 = vsel %vm545, %v542, %v544
    %v547 = vsel %vm545, %v544, %v542
    %s548 = scalar_lea.vmem [#allocation4], 3
    %v549 = vld [vmem:[%s548] ss:$8 sm:$0x3]
    %v551 = vperm.slane %v549, 0
    %v552 = vperm.slane %v549, 1
    %v555 = vmul.f32 %v547, %v551
    %v556 = vmul.f32 %v546, %v552
    %557 = vrot.lane.b32.xlu0 %v492, 30
    %v558 = vpop.permute.xlu0 %557
    %559 = vrot.lane.b32.xlu0 %v493, 30
    %v560 = vpop.permute.xlu0 %559
    %vm561 = vcmp.lt.s32.totalorder %v214, 30
    %v562 = vsel %vm561, %v558, %v560
    %v563 = vsel %vm561, %v560, %v558
    %s564 = scalar_lea.vmem [#allocation4], 4
    %v565 = vld [vmem:[%s564] ss:$8 sm:$0x3]
    %v567 = vperm.slane %v565, 0
    %v568 = vperm.slane %v565, 1
    %v571 = vmul.f32 %v563, %v567
    %v572 = vmul.f32 %v562, %v568
    %573 = vrot.lane.b32.xlu0 %v492, 18
    %v574 = vpop.permute.xlu0 %573
    %575 = vrot.lane.b32.xlu0 %v493, 18
    %v576 = vpop.permute.xlu0 %575
    %vm577 = vcmp.lt.s32.totalorder %v214, 18
    %v578 = vsel %vm577, %v574, %v576
    %v579 = vsel %vm577, %v576, %v574
    %s580 = scalar_lea.vmem [#allocation4], 5
    %v581 = vld [vmem:[%s580] ss:$8 sm:$0x3]
    %v583 = vperm.slane %v581, 0
    %v584 = vperm.slane %v581, 1
    %v587 = vmul.f32 %v579, %v583
    %v588 = vmul.f32 %v578, %v584
    %589 = vrot.lane.b32.xlu0 %v492, 17
    %v590 = vpop.permute.xlu0 %589
    %591 = vrot.lane.b32.xlu0 %v493, 17
    %v592 = vpop.permute.xlu0 %591
    %v593 = vsel %vm215, %v590, %v592
    %v594 = vsel %vm215, %v592, %v590
    %v595 = vmul.f32 %v594, %v221
    %v596 = vmul.f32 %v593, %v222
    %597 = vrot.lane.b32.xlu0 %v492, 16
    %v598 = vpop.permute.xlu0 %597
    %599 = vrot.lane.b32.xlu0 %v493, 16
    %v600 = vpop.permute.xlu0 %599
    %v601 = vsel %vm231, %v598, %v600
    %v602 = vsel %vm231, %v600, %v598
    %v603 = vmul.f32 %v602, %v237
    %v604 = vmul.f32 %v601, %v238
    %605 = vrot.lane.b32.xlu0 %v492, 15
    %v606 = vpop.permute.xlu0 %605
    %607 = vrot.lane.b32.xlu0 %v493, 15
    %v608 = vpop.permute.xlu0 %607
    %v609 = vsel %vm247, %v606, %v608
    %v610 = vsel %vm247, %v608, %v606
    %v611 = vmul.f32 %v610, %v253
    %v612 = vmul.f32 %v609, %v254
    %613 = vrot.lane.b32.xlu0 %v492, 14
    %v614 = vpop.permute.xlu0 %613
    %615 = vrot.lane.b32.xlu0 %v493, 14
    %v616 = vpop.permute.xlu0 %615
    %vm617 = vcmp.lt.s32.totalorder %v214, 14
    %v618 = vsel %vm617, %v614, %v616
    %v619 = vsel %vm617, %v616, %v614
    %s620 = scalar_lea.vmem [#allocation4], 17
    %v621 = vld [vmem:[%s620] ss:$8 sm:$0x3]
    %v623 = vperm.slane %v621, 0
    %v624 = vperm.slane %v621, 1
    %v627 = vmul.f32 %v619, %v623
    %v628 = vmul.f32 %v618, %v624
    %629 = vrot.lane.b32.xlu0 %v492, 2
    %v630 = vpop.permute.xlu0 %629
    %631 = vrot.lane.b32.xlu0 %v493, 2
    %v632 = vpop.permute.xlu0 %631
    %vm633 = vcmp.lt.s32.totalorder %v214, 2
    %v634 = vsel %vm633, %v630, %v632
    %v635 = vsel %vm633, %v632, %v630
    %s636 = scalar_lea.vmem [#allocation4], 18
    %v637 = vld [vmem:[%s636] ss:$8 sm:$0x3]
    %v639 = vperm.slane %v637, 0
    %v640 = vperm.slane %v637, 1
    %v643 = vmul.f32 %v635, %v639
    %v644 = vmul.f32 %v634, %v640
    %645 = vrot.lane.b32.xlu0 %v492, 1
    %v646 = vpop.permute.xlu0 %645
    %647 = vrot.lane.b32.xlu0 %v493, 1
    %v648 = vpop.permute.xlu0 %647
    %v649 = vsel %vm263, %v646, %v648
    %v650 = vsel %vm263, %v648, %v646
    %v651 = vmul.f32 %v650, %v269
    %v652 = vmul.f32 %v649, %v270
    %v653 = vmul.f32 %v492, %v278
    %v654 = vmul.f32 %v493, %v279
    %655 = vrot.lane.b32.xlu0 %v492, 127
    %v656 = vpop.permute.xlu0 %655
    %657 = vrot.lane.b32.xlu0 %v493, 127
    %v658 = vpop.permute.xlu0 %657
    %v659 = vsel %vm288, %v656, %v658
    %v660 = vsel %vm288, %v658, %v656
    %v661 = vmul.f32 %v659, %v294
    %v662 = vmul.f32 %v660, %v295
    %663 = vrot.lane.b32.xlu0 %v492, 126
    %v664 = vpop.permute.xlu0 %663
    %665 = vrot.lane.b32.xlu0 %v493, 126
    %v666 = vpop.permute.xlu0 %665
    %vm667 = vcmp.lt.s32.totalorder %v214, 126
    %v668 = vsel %vm667, %v664, %v666
    %v669 = vsel %vm667, %v666, %v664
    %s670 = scalar_lea.vmem [#allocation4], 22
    %v671 = vld [vmem:[%s670] ss:$8 sm:$0x3]
    %v673 = vperm.slane %v671, 0
    %v674 = vperm.slane %v671, 1
    %v677 = vmul.f32 %v668, %v673
    %v678 = vmul.f32 %v669, %v674
    %679 = vrot.lane.b32.xlu0 %v492, 114
    %v680 = vpop.permute.xlu0 %679
    %681 = vrot.lane.b32.xlu0 %v493, 114
    %v682 = vpop.permute.xlu0 %681
    %vm683 = vcmp.lt.s32.totalorder %v214, 114
    %v684 = vsel %vm683, %v680, %v682
    %v685 = vsel %vm683, %v682, %v680
    %s686 = scalar_lea.vmem [#allocation4], 23
    %v687 = vld [vmem:[%s686] ss:$8 sm:$0x3]
    %v689 = vperm.slane %v687, 0
    %v690 = vperm.slane %v687, 1
    %v693 = vmul.f32 %v684, %v689
    %v694 = vmul.f32 %v685, %v690
    %695 = vrot.lane.b32.xlu0 %v492, 113
    %v696 = vpop.permute.xlu0 %695
    %697 = vrot.lane.b32.xlu0 %v493, 113
    %v698 = vpop.permute.xlu0 %697
    %v699 = vsel %vm304, %v696, %v698
    %v700 = vsel %vm304, %v698, %v696
    %v701 = vmul.f32 %v699, %v310
    %v702 = vmul.f32 %v700, %v311
    %703 = vrot.lane.b32.xlu0 %v492, 112
    %v704 = vpop.permute.xlu0 %703
    %705 = vrot.lane.b32.xlu0 %v493, 112
    %v706 = vpop.permute.xlu0 %705
    %v707 = vsel %vm320, %v704, %v706
    %v708 = vsel %vm320, %v706, %v704
    %v709 = vmul.f32 %v707, %v326
    %v710 = vmul.f32 %v708, %v327
    %711 = vrot.lane.b32.xlu0 %v492, 111
    %v712 = vpop.permute.xlu0 %711
    %713 = vrot.lane.b32.xlu0 %v493, 111
    %v714 = vpop.permute.xlu0 %713
    %v715 = vsel %vm336, %v712, %v714
    %v716 = vsel %vm336, %v714, %v712
    %v717 = vmul.f32 %v715, %v342
    %v718 = vmul.f32 %v716, %v343
    %719 = vrot.lane.b32.xlu0 %v492, 110
    %v720 = vpop.permute.xlu0 %719
    %721 = vrot.lane.b32.xlu0 %v493, 110
    %v722 = vpop.permute.xlu0 %721
    %vm723 = vcmp.lt.s32.totalorder %v214, 110
    %v724 = vsel %vm723, %v720, %v722
    %v725 = vsel %vm723, %v722, %v720
    %s726 = scalar_lea.vmem [#allocation4], 35
    %v727 = vld [vmem:[%s726] ss:$8 sm:$0x3]
    %v729 = vperm.slane %v727, 0
    %v730 = vperm.slane %v727, 1
    %v733 = vmul.f32 %v724, %v729
    %v734 = vmul.f32 %v725, %v730
    %735 = vrot.lane.b32.xlu0 %v492, 98
    %v736 = vpop.permute.xlu0 %735
    %737 = vrot.lane.b32.xlu0 %v493, 98
    %v738 = vpop.permute.xlu0 %737
    %vm739 = vcmp.lt.s32.totalorder %v214, 98
    %v740 = vsel %vm739, %v736, %v738
    %v741 = vsel %vm739, %v738, %v736
    %s742 = scalar_lea.vmem [#allocation4], 36
    %v743 = vld [vmem:[%s742] ss:$8 sm:$0x3]
    %v745 = vperm.slane %v743, 0
    %v746 = vperm.slane %v743, 1
    %v749 = vmul.f32 %v740, %v745
    %v750 = vmul.f32 %v741, %v746
    %751 = vrot.lane.b32.xlu0 %v492, 97
    %v752 = vpop.permute.xlu0 %751
    %753 = vrot.lane.b32.xlu0 %v493, 97
    %v754 = vpop.permute.xlu0 %753
    %vm755 = vcmp.lt.s32.totalorder %v214, 97
    %v756 = vsel %vm755, %v752, %v754
    %v757 = vsel %vm755, %v754, %v752
    %s758 = scalar_lea.vmem [#allocation4], 37
    %v759 = vld [vmem:[%s758] ss:$8 sm:$0x3]
    %v761 = vperm.slane %v759, 0
    %v762 = vperm.slane %v759, 1
    %v765 = vmul.f32 %v756, %v761
    %v766 = vmul.f32 %v757, %v762
    %767 = vrot.lane.b32.xlu0 %v492, 96
    %v768 = vpop.permute.xlu0 %767
    %769 = vrot.lane.b32.xlu0 %v493, 96
    %v770 = vpop.permute.xlu0 %769
    %vm771 = vcmp.lt.s32.totalorder %v214, 96
    %v772 = vsel %vm771, %v768, %v770
    %v773 = vsel %vm771, %v770, %v768
    %s774 = scalar_lea.vmem [#allocation4], 38
    %v775 = vld [vmem:[%s774] ss:$8 sm:$0x3]
    %v777 = vperm.slane %v775, 0
    %v778 = vperm.slane %v775, 1
    %v781 = vmul.f32 %v772, %v777
    %v782 = vmul.f32 %v773, %v778
    %783 = vrot.lane.b32.xlu0 %v492, 95
    %v784 = vpop.permute.xlu0 %783
    %785 = vrot.lane.b32.xlu0 %v493, 95
    %v786 = vpop.permute.xlu0 %785
    %vm787 = vcmp.lt.s32.totalorder %v214, 95
    %v788 = vsel %vm787, %v784, %v786
    %v789 = vsel %vm787, %v786, %v784
    %s790 = scalar_lea.vmem [#allocation4], 39
    %v791 = vld [vmem:[%s790] ss:$8 sm:$0x3]
    %v793 = vperm.slane %v791, 0
    %v794 = vperm.slane %v791, 1
    %v797 = vmul.f32 %v788, %v793
    %v798 = vmul.f32 %v789, %v794
    %799 = vrot.lane.b32.xlu0 %v492, 94
    %v800 = vpop.permute.xlu0 %799
    %801 = vrot.lane.b32.xlu0 %v493, 94
    %v802 = vpop.permute.xlu0 %801
    %vm803 = vcmp.lt.s32.totalorder %v214, 94
    %v804 = vsel %vm803, %v800, %v802
    %v805 = vsel %vm803, %v802, %v800
    %s806 = scalar_lea.vmem [#allocation4], 48
    %v807 = vld [vmem:[%s806] ss:$8 sm:$0x3]
    %v809 = vperm.slane %v807, 0
    %v810 = vperm.slane %v807, 1
    %v813 = vmul.f32 %v804, %v809
    %v814 = vmul.f32 %v805, %v810
    %v817 = vrot.slane %v523, 6
    %v818 = vrot.slane %v524, 6
    %v823 = vrot.slane %v539, 4
    %v824 = vrot.slane %v540, 4
    %v829 = vrot.slane %v555, 2
    %v830 = vrot.slane %v556, 2
    %v835 = vrot.slane %v587, 6
    %v836 = vrot.slane %v588, 6
    %v841 = vrot.slane %v595, 4
    %v842 = vrot.slane %v596, 4
    %v847 = vrot.slane %v603, 2
    %v848 = vrot.slane %v604, 2
    %v853 = vrot.slane %v627, 6
    %v854 = vrot.slane %v628, 6
    %v859 = vrot.slane %v643, 4
    %v860 = vrot.slane %v644, 4
    %v865 = vrot.slane %v651, 2
    %v866 = vrot.slane %v652, 2
    %v871 = vrot.slane %v661, 6
    %v872 = vrot.slane %v662, 6
    %v877 = vrot.slane %v677, 4
    %v878 = vrot.slane %v678, 4
    %v883 = vrot.slane %v693, 2
    %v884 = vrot.slane %v694, 2
    %vm887 = vcmask 1041408
    %v888 = vsel %vm887, %v507, %v817
    %v889 = vsel %vm887, %v508, %v818
    %v890 = vsel %vm105, %v888, %v823
    %v891 = vsel %vm105, %v889, %v824
    %vm892 = vcmask 1045504
    %v893 = vsel %vm892, %v890, %v829
    %v894 = vsel %vm892, %v891, %v830
    %v895 = vsel %vm887, %v571, %v835
    %v896 = vsel %vm887, %v572, %v836
    %v897 = vsel %vm105, %v895, %v841
    %v898 = vsel %vm105, %v896, %v842
    %v899 = vsel %vm892, %v897, %v847
    %v900 = vsel %vm892, %v898, %v848
    %v901 = vsel %vm887, %v611, %v853
    %v902 = vsel %vm887, %v612, %v854
    %v903 = vsel %vm105, %v901, %v859
    %v904 = vsel %vm105, %v902, %v860
    %v905 = vsel %vm892, %v903, %v865
    %v906 = vsel %vm892, %v904, %v866
    %v907 = vsel %vm887, %v653, %v871
    %v908 = vsel %vm887, %v654, %v872
    %v909 = vsel %vm105, %v907, %v877
    %v910 = vsel %vm105, %v908, %v878
    %v911 = vsel %vm892, %v909, %v883
    %v912 = vsel %vm892, %v910, %v884
    %v915 = vrot.slane %v709, 6
    %v916 = vrot.slane %v710, 6
    %v921 = vrot.slane %v717, 4
    %v922 = vrot.slane %v718, 4
    %v927 = vrot.slane %v733, 2
    %v928 = vrot.slane %v734, 2
    %v933 = vrot.slane %v765, 6
    %v934 = vrot.slane %v766, 6
    %v939 = vrot.slane %v781, 4
    %v940 = vrot.slane %v782, 4
    %v945 = vrot.slane %v797, 2
    %v946 = vrot.slane %v798, 2
    %v949 = vsel %vm887, %v701, %v915
    %v950 = vsel %vm887, %v702, %v916
    %v951 = vsel %vm105, %v949, %v921
    %v952 = vsel %vm105, %v950, %v922
    %v953 = vsel %vm892, %v951, %v927
    %v954 = vsel %vm892, %v952, %v928
    %v955 = vsel %vm887, %v749, %v933
    %v956 = vsel %vm887, %v750, %v934
    %v957 = vsel %vm105, %v955, %v939
    %v958 = vsel %vm105, %v956, %v940
    %v959 = vsel %vm892, %v957, %v945
    %v960 = vsel %vm892, %v958, %v946
    %962 = vset.pattern.permute.xlu0 0
    %963 = vperm.xlu0 %962, %v88
    %v964 = vpop.permute.xlu0 %963
    %vm966 = vcmask 408576
    %v968 = vsel %vm966, %v87, 0
    %v971 = vsel %vm887, %v813, 0
    %v974 = vsel %vm887, %v814, 0
    %976 = vmatpush.msra.mxu0 0.0
    %977 = vmatpush.msra.mxu0 0.0
    %978 = vmatpush.msra.mxu0 0.0
    %979 = vmatpush.msra.mxu0 0.0
    %980 = vmatpush.msra.mxu0 0.0
    %981 = vmatpush.msra.mxu0 0.0
    %982 = vmatpush.msra.mxu0 0.0
    %983 = vmatpush.msra.mxu0 0.0
    %984 = vmatpush.msra.mxu0 0.0
    %985 = vmatpush.msra.mxu0 %v971
    %986 = vmatpush.msra.mxu0 %v959
    %987 = vmatpush.msra.mxu0 %v953
    %988 = vmatpush.msra.mxu0 %v911
    %989 = vmatpush.msra.mxu0 %v905
    %990 = vmatpush.msra.mxu0 %v899
    %991 = vmatpush.msra.mxu0 %v893
    %992 = vmatmul.f32.gmra.mxu0 %v968
    %v993 = vpop.f32.mrf.mxu0
    %v994 = vadd.f32 %v964, %v993
    %995 = vdwg.mxu0
    %996 = vmatpush.msra.mxu0 0.0
    %997 = vmatpush.msra.mxu0 0.0
    %998 = vmatpush.msra.mxu0 0.0
    %999 = vmatpush.msra.mxu0 0.0
    %1000 = vmatpush.msra.mxu0 0.0
    %1001 = vmatpush.msra.mxu0 0.0
    %1002 = vmatpush.msra.mxu0 0.0
    %1003 = vmatpush.msra.mxu0 0.0
    %1004 = vmatpush.msra.mxu0 0.0
    %1005 = vmatpush.msra.mxu0 %v974
    %1006 = vmatpush.msra.mxu0 %v960
    %1007 = vmatpush.msra.mxu0 %v954
    %1008 = vmatpush.msra.mxu0 %v912
    %1009 = vmatpush.msra.mxu0 %v906
    %1010 = vmatpush.msra.mxu0 %v900
    %1011 = vmatpush.msra.mxu0 %v894
    %1012 = vmatmul.f32.gmra.mxu0 %v968
    %v1013 = vpop.f32.mrf.mxu0
    %v1014 = vadd.f32 %v964, %v1013
    %1015 = vdwg.mxu0
    %v1016 = vmax.f32 %v994, 0.0
    %v1017 = vmax.f32 %v1014, 0.0
    %vm1018 = vcmp.gt.f32.partialorder %v219, 0.5
    %1019 = vst [vmem:[#allocation1] ss:$2 sm:$0xff] %v91
    %v1020 = vld.sshfl [vmem:[#allocation1] sm:$0xff pattern:$0x75316420]
    %v1021 = vld.sshfl [vmem:[#allocation1 + $0x8] sm:$0xff pattern:$0x75316420]
    %1024 = vrot.lane.b32.xlu0 %v1020, 17
    %v1025 = vpop.permute.xlu0 %1024
    %1026 = vrot.lane.b32.xlu0 %v1021, 17
    %v1027 = vpop.permute.xlu0 %1026
    %v1028 = vsel %vm215, %v1025, %v1027
    %v1029 = vsel %vm215, %v1027, %v1025
    %v1030 = vsel %vm1018, 1, 0
    %v1031 = vperm.slane %v1030, 0
    %v1032 = vperm.slane %v1030, 1
    %vm1033 = vcmp.eq.s32.totalorder %v1031, 1
    %vm1034 = vcmp.eq.s32.totalorder %v1032, 1
    %v1035 = vsel %vm1033, %v1029, -inf
    %v1036 = vsel %vm1034, %v1028, -inf
    %v1039 = vrot.slane %v1036, 4
    %v1040 = vsel %vm105, %v1035, %v1039
    %v1042 = vmax.f32 %v91, %v1040
    %vm1043 = vcmp.gt.f32.partialorder %v235, 0.5
    %1044 = vst [vmem:[#allocation1] ss:$2 sm:$0xff] %v91
    %v1045 = vld.sshfl [vmem:[#allocation1] sm:$0xff pattern:$0x75316420]
    %v1046 = vld.sshfl [vmem:[#allocation1 + $0x8] sm:$0xff pattern:$0x75316420]
    %1049 = vrot.lane.b32.xlu0 %v1045, 16
    %v1050 = vpop.permute.xlu0 %1049
    %1051 = vrot.lane.b32.xlu0 %v1046, 16
    %v1052 = vpop.permute.xlu0 %1051
    %v1053 = vsel %vm231, %v1050, %v1052
    %v1054 = vsel %vm231, %v1052, %v1050
    %v1055 = vsel %vm1043, 1, 0
    %v1056 = vperm.slane %v1055, 0
    %v1057 = vperm.slane %v1055, 1
    %vm1058 = vcmp.eq.s32.totalorder %v1056, 1
    %vm1059 = vcmp.eq.s32.totalorder %v1057, 1
    %v1060 = vsel %vm1058, %v1054, -inf
    %v1061 = vsel %vm1059, %v1053, -inf
    %v1064 = vrot.slane %v1061, 4
    %v1065 = vsel %vm105, %v1060, %v1064
    %v1067 = vmax.f32 %v1042, %v1065
    %vm1068 = vcmp.gt.f32.partialorder %v251, 0.5
    %1069 = vst [vmem:[#allocation1] ss:$2 sm:$0xff] %v91
    %v1070 = vld.sshfl [vmem:[#allocation1] sm:$0xff pattern:$0x75316420]
    %v1071 = vld.sshfl [vmem:[#allocation1 + $0x8] sm:$0xff pattern:$0x75316420]
    %1074 = vrot.lane.b32.xlu0 %v1070, 15
    %v1075 = vpop.permute.xlu0 %1074
    %1076 = vrot.lane.b32.xlu0 %v1071, 15
    %v1077 = vpop.permute.xlu0 %1076
    %v1078 = vsel %vm247, %v1075, %v1077
    %v1079 = vsel %vm247, %v1077, %v1075
    %v1080 = vsel %vm1068, 1, 0
    %v1081 = vperm.slane %v1080, 0
    %v1082 = vperm.slane %v1080, 1
    %vm1083 = vcmp.eq.s32.totalorder %v1081, 1
    %vm1084 = vcmp.eq.s32.totalorder %v1082, 1
    %v1085 = vsel %vm1083, %v1079, -inf
    %v1086 = vsel %vm1084, %v1078, -inf
    %v1089 = vrot.slane %v1086, 4
    %v1090 = vsel %vm105, %v1085, %v1089
    %v1092 = vmax.f32 %v1067, %v1090
    %vm1093 = vcmp.gt.f32.partialorder %v267, 0.5
    %1094 = vst [vmem:[#allocation1] ss:$2 sm:$0xff] %v91
    %v1095 = vld.sshfl [vmem:[#allocation1] sm:$0xff pattern:$0x75316420]
    %v1096 = vld.sshfl [vmem:[#allocation1 + $0x8] sm:$0xff pattern:$0x75316420]
    %1099 = vrot.lane.b32.xlu0 %v1095, 1
    %v1100 = vpop.permute.xlu0 %1099
    %1101 = vrot.lane.b32.xlu0 %v1096, 1
    %v1102 = vpop.permute.xlu0 %1101
    %v1103 = vsel %vm263, %v1100, %v1102
    %v1104 = vsel %vm263, %v1102, %v1100
    %v1105 = vsel %vm1093, 1, 0
    %v1106 = vperm.slane %v1105, 0
    %v1107 = vperm.slane %v1105, 1
    %vm1108 = vcmp.eq.s32.totalorder %v1106, 1
    %vm1109 = vcmp.eq.s32.totalorder %v1107, 1
    %v1110 = vsel %vm1108, %v1104, -inf
    %v1111 = vsel %vm1109, %v1103, -inf
    %v1114 = vrot.slane %v1111, 4
    %v1115 = vsel %vm105, %v1110, %v1114
    %v1117 = vmax.f32 %v1092, %v1115
    %vm1118 = vcmp.gt.f32.partialorder %v292, 0.5
    %1119 = vst [vmem:[#allocation1] ss:$2 sm:$0xff] %v91
    %v1120 = vld.sshfl [vmem:[#allocation1] sm:$0xff pattern:$0x75316420]
    %v1121 = vld.sshfl [vmem:[#allocation1 + $0x8] sm:$0xff pattern:$0x75316420]
    %1124 = vrot.lane.b32.xlu0 %v1120, 127
    %v1125 = vpop.permute.xlu0 %1124
    %1126 = vrot.lane.b32.xlu0 %v1121, 127
    %v1127 = vpop.permute.xlu0 %1126
    %v1128 = vsel %vm288, %v1125, %v1127
    %v1129 = vsel %vm288, %v1127, %v1125
    %v1130 = vsel %vm1118, 1, 0
    %v1131 = vperm.slane %v1130, 0
    %v1132 = vperm.slane %v1130, 1
    %vm1133 = vcmp.eq.s32.totalorder %v1131, 1
    %vm1134 = vcmp.eq.s32.totalorder %v1132, 1
    %v1135 = vsel %vm1133, %v1128, -inf
    %v1136 = vsel %vm1134, %v1129, -inf
    %v1139 = vrot.slane %v1136, 4
    %v1140 = vsel %vm105, %v1135, %v1139
    %v1142 = vmax.f32 %v1117, %v1140
    %vm1143 = vcmp.gt.f32.partialorder %v308, 0.5
    %1144 = vst [vmem:[#allocation1] ss:$2 sm:$0xff] %v91
    %v1145 = vld.sshfl [vmem:[#allocation1] sm:$0xff pattern:$0x75316420]
    %v1146 = vld.sshfl [vmem:[#allocation1 + $0x8] sm:$0xff pattern:$0x75316420]
    %1149 = vrot.lane.b32.xlu0 %v1145, 113
    %v1150 = vpop.permute.xlu0 %1149
    %1151 = vrot.lane.b32.xlu0 %v1146, 113
    %v1152 = vpop.permute.xlu0 %1151
    %v1153 = vsel %vm304, %v1150, %v1152
    %v1154 = vsel %vm304, %v1152, %v1150
    %v1155 = vsel %vm1143, 1, 0
    %v1156 = vperm.slane %v1155, 0
    %v1157 = vperm.slane %v1155, 1
    %vm1158 = vcmp.eq.s32.totalorder %v1156, 1
    %vm1159 = vcmp.eq.s32.totalorder %v1157, 1
    %v1160 = vsel %vm1158, %v1153, -inf
    %v1161 = vsel %vm1159, %v1154, -inf
    %v1164 = vrot.slane %v1161, 4
    %v1165 = vsel %vm105, %v1160, %v1164
    %v1167 = vmax.f32 %v1142, %v1165
    %vm1168 = vcmp.gt.f32.partialorder %v324, 0.5
    %1169 = vst [vmem:[#allocation1] ss:$2 sm:$0xff] %v91
    %v1170 = vld.sshfl [vmem:[#allocation1] sm:$0xff pattern:$0x75316420]
    %v1171 = vld.sshfl [vmem:[#allocation1 + $0x8] sm:$0xff pattern:$0x75316420]
    %1174 = vrot.lane.b32.xlu0 %v1170, 112
    %v1175 = vpop.permute.xlu0 %1174
    %1176 = vrot.lane.b32.xlu0 %v1171, 112
    %v1177 = vpop.permute.xlu0 %1176
    %v1178 = vsel %vm320, %v1175, %v1177
    %v1179 = vsel %vm320, %v1177, %v1175
    %v1180 = vsel %vm1168, 1, 0
    %v1181 = vperm.slane %v1180, 0
    %v1182 = vperm.slane %v1180, 1
    %vm1183 = vcmp.eq.s32.totalorder %v1181, 1
    %vm1184 = vcmp.eq.s32.totalorder %v1182, 1
    %v1185 = vsel %vm1183, %v1178, -inf
    %v1186 = vsel %vm1184, %v1179, -inf
    %v1189 = vrot.slane %v1186, 4
    %v1190 = vsel %vm105, %v1185, %v1189
    %v1192 = vmax.f32 %v1167, %v1190
    %vm1193 = vcmp.gt.f32.partialorder %v340, 0.5
    %1194 = vst [vmem:[#allocation1] ss:$2 sm:$0xff] %v91
    %v1195 = vld.sshfl [vmem:[#allocation1] sm:$0xff pattern:$0x75316420]
    %v1196 = vld.sshfl [vmem:[#allocation1 + $0x8] sm:$0xff pattern:$0x75316420]
    %1199 = vrot.lane.b32.xlu0 %v1195, 111
    %v1200 = vpop.permute.xlu0 %1199
    %1201 = vrot.lane.b32.xlu0 %v1196, 111
    %v1202 = vpop.permute.xlu0 %1201
    %v1203 = vsel %vm336, %v1200, %v1202
    %v1204 = vsel %vm336, %v1202, %v1200
    %v1205 = vsel %vm1193, 1, 0
    %v1206 = vperm.slane %v1205, 0
    %v1207 = vperm.slane %v1205, 1
    %vm1208 = vcmp.eq.s32.totalorder %v1206, 1
    %vm1209 = vcmp.eq.s32.totalorder %v1207, 1
    %v1210 = vsel %vm1208, %v1203, -inf
    %v1211 = vsel %vm1209, %v1204, -inf
    %v1214 = vrot.slane %v1211, 4
    %v1215 = vsel %vm105, %v1210, %v1214
    %v1217 = vmax.f32 %v1192, %v1215
    %1219 = vset.pattern.permute.xlu0 0
    %1220 = vperm.xlu0 %1219, %v90
    %v1221 = vpop.permute.xlu0 %1220
    %1224 = vst [vmem:[#allocation1] ss:$2 sm:$0xff] %v1217
    %v1225 = vld.sshfl [vmem:[#allocation1] sm:$0xff pattern:$0x75316420]
    %v1226 = vld.sshfl [vmem:[#allocation1 + $0x8] sm:$0xff pattern:$0x75316420]
    %v1228 = vsel %vm101, %v89, 0
    %v1230 = vsel %vm105, %v1225, 0
    %v1232 = vsel %vm105, %v1226, 0
    %1234 = vmatpush.msra.mxu0 0.0
    %1235 = vmatpush.msra.mxu0 0.0
    %1236 = vmatpush.msra.mxu0 0.0
    %1237 = vmatpush.msra.mxu0 0.0
    %1238 = vmatpush.msra.mxu0 0.0
    %1239 = vmatpush.msra.mxu0 0.0
    %1240 = vmatpush.msra.mxu0 0.0
    %1241 = vmatpush.msra.mxu0 0.0
    %1242 = vmatpush.msra.mxu0 0.0
    %1243 = vmatpush.msra.mxu0 0.0
    %1244 = vmatpush.msra.mxu0 0.0
    %1245 = vmatpush.msra.mxu0 0.0
    %1246 = vmatpush.msra.mxu0 0.0
    %1247 = vmatpush.msra.mxu0 0.0
    %1248 = vmatpush.msra.mxu0 0.0
    %1249 = vmatpush.msra.mxu0 %v1230
    %1250 = vmatmul.f32.gmra.mxu0 %v1228
    %v1251 = vpop.f32.mrf.mxu0
    %v1252 = vadd.f32 %v1221, %v1251
    %1253 = vdwg.mxu0
    %1254 = vmatpush.msra.mxu0 0.0
    %1255 = vmatpush.msra.mxu0 0.0
    %1256 = vmatpush.msra.mxu0 0.0
    %1257 = vmatpush.msra.mxu0 0.0
    %1258 = vmatpush.msra.mxu0 0.0
    %1259 = vmatpush.msra.mxu0 0.0
    %1260 = vmatpush.msra.mxu0 0.0
    %1261 = vmatpush.msra.mxu0 0.0
    %1262 = vmatpush.msra.mxu0 0.0
    %1263 = vmatpush.msra.mxu0 0.0
    %1264 = vmatpush.msra.mxu0 0.0
    %1265 = vmatpush.msra.mxu0 0.0
    %1266 = vmatpush.msra.mxu0 0.0
    %1267 = vmatpush.msra.mxu0 0.0
    %1268 = vmatpush.msra.mxu0 0.0
    %1269 = vmatpush.msra.mxu0 %v1232
    %1270 = vmatmul.f32.gmra.mxu0 %v1228
    %v1271 = vpop.f32.mrf.mxu0
    %v1272 = vadd.f32 %v1221, %v1271
    %1273 = vdwg.mxu0
    %v1274 = vmax.f32 %v1252, 0.0
    %v1275 = vmax.f32 %v1272, 0.0
    %1276 = vst [vmem:[%s14] sm:$0xf] %v150
    %1277 = vst [vmem:[%s14 + $0x8] sm:$0xf] %v151
    %v1280 = vrot.slane %v435, 4
    %v1281 = vrot.slane %v436, 4
    %1284 = vst [vmem:[%s14] sm:$0xf0] %v1280
    %1285 = vst [vmem:[%s14 + $0x8] sm:$0xf0] %v1281
    %1286 = vst [vmem:[%s14 + $0x10] sm:$0xf] %v1280
    %1287 = vst [vmem:[%s14 + $0x18] sm:$0xf] %v1281
    %v1290 = vrot.slane %v1016, 4
    %v1291 = vrot.slane %v1017, 4
    %1294 = vst [vmem:[%s14 + $0x10] sm:$0xf0] %v1290
    %1295 = vst [vmem:[%s14 + $0x18] sm:$0xf0] %v1291
    %1296 = vst [vmem:[%s14 + $0x20] sm:$0xf] %v1274
    %1297 = vst [vmem:[%s14 + $0x28] sm:$0xf] %v1275
    %s1298 = scalar_lea.vmem [#allocation2], 8
    %v1299 = vld [vmem:[%s1298] sm:$0xff]
    %1301 = vst [vmem:[#allocation1] ss:$2 sm:$0xff] %v1299
    %v1302 = vld.sshfl [vmem:[#allocation1] sm:$0xff pattern:$0x75316420]
    %v1303 = vld.sshfl [vmem:[#allocation1 + $0x8] sm:$0xff pattern:$0x75316420]
    %v1304 = vsel %vm105, %v1302, 0
    %v1306 = vsel %vm105, %v1303, 0
    %1308 = vmatpush.msra.mxu0 0.0
    %1309 = vmatpush.msra.mxu0 0.0
    %1310 = vmatpush.msra.mxu0 0.0
    %1311 = vmatpush.msra.mxu0 0.0
    %1312 = vmatpush.msra.mxu0 0.0
    %1313 = vmatpush.msra.mxu0 0.0
    %1314 = vmatpush.msra.mxu0 0.0
    %1315 = vmatpush.msra.mxu0 0.0
    %1316 = vmatpush.msra.mxu0 0.0
    %1317 = vmatpush.msra.mxu0 0.0
    %1318 = vmatpush.msra.mxu0 0.0
    %1319 = vmatpush.msra.mxu0 0.0
    %1320 = vmatpush.msra.mxu0 0.0
    %1321 = vmatpush.msra.mxu0 0.0
    %1322 = vmatpush.msra.mxu0 0.0
    %1323 = vmatpush.msra.mxu0 %v1304
    %1324 = vmatmul.f32.gmra.mxu0 %v103
    %v1325 = vpop.f32.mrf.mxu0
    %v1326 = vadd.f32 %v95, %v1325
    %1327 = vdwg.mxu0
    %1328 = vmatpush.msra.mxu0 0.0
    %1329 = vmatpush.msra.mxu0 0.0
    %1330 = vmatpush.msra.mxu0 0.0
    %1331 = vmatpush.msra.mxu0 0.0
    %1332 = vmatpush.msra.mxu0 0.0
    %1333 = vmatpush.msra.mxu0 0.0
    %1334 = vmatpush.msra.mxu0 0.0
    %1335 = vmatpush.msra.mxu0 0.0
    %1336 = vmatpush.msra.mxu0 0.0
    %1337 = vmatpush.msra.mxu0 0.0
    %1338 = vmatpush.msra.mxu0 0.0
    %1339 = vmatpush.msra.mxu0 0.0
    %1340 = vmatpush.msra.mxu0 0.0
    %1341 = vmatpush.msra.mxu0 0.0
    %1342 = vmatpush.msra.mxu0 0.0
    %1343 = vmatpush.msra.mxu0 %v1306
    %1344 = vmatmul.f32.gmra.mxu0 %v103
    %v1345 = vpop.f32.mrf.mxu0
    %v1346 = vadd.f32 %v95, %v1345
    %1347 = vdwg.mxu0
    %v1348 = vmax.f32 %v1326, 0.0
    %v1349 = vmax.f32 %v1346, 0.0
    %1350 = vst [vmem:[#allocation1] ss:$2 sm:$0xff] %v1299
    %v1351 = vld.sshfl [vmem:[#allocation1] sm:$0xff pattern:$0x75316420]
    %v1352 = vld.sshfl [vmem:[#allocation1 + $0x8] sm:$0xff pattern:$0x75316420]
    %v1353 = vsel %vm105, %v1351, 0
    %v1355 = vsel %vm105, %v1352, 0
    %1357 = vmatpush.msra.mxu0 0.0
    %1358 = vmatpush.msra.mxu0 0.0
    %1359 = vmatpush.msra.mxu0 0.0
    %1360 = vmatpush.msra.mxu0 0.0
    %1361 = vmatpush.msra.mxu0 0.0
    %1362 = vmatpush.msra.mxu0 0.0
    %1363 = vmatpush.msra.mxu0 0.0
    %1364 = vmatpush.msra.mxu0 0.0
    %1365 = vmatpush.msra.mxu0 0.0
    %1366 = vmatpush.msra.mxu0 0.0
    %1367 = vmatpush.msra.mxu0 0.0
    %1368 = vmatpush.msra.mxu0 0.0
    %1369 = vmatpush.msra.mxu0 0.0
    %1370 = vmatpush.msra.mxu0 0.0
    %1371 = vmatpush.msra.mxu0 0.0
    %1372 = vmatpush.msra.mxu0 %v1353
    %1373 = vmatmul.f32.gmra.mxu0 %v161
    %v1374 = vpop.f32.mrf.mxu0
    %v1375 = vadd.f32 %v155, %v1374
    %1376 = vdwg.mxu0
    %1377 = vmatpush.msra.mxu0 0.0
    %1378 = vmatpush.msra.mxu0 0.0
    %1379 = vmatpush.msra.mxu0 0.0
    %1380 = vmatpush.msra.mxu0 0.0
    %1381 = vmatpush.msra.mxu0 0.0
    %1382 = vmatpush.msra.mxu0 0.0
    %1383 = vmatpush.msra.mxu0 0.0
    %1384 = vmatpush.msra.mxu0 0.0
    %1385 = vmatpush.msra.mxu0 0.0
    %1386 = vmatpush.msra.mxu0 0.0
    %1387 = vmatpush.msra.mxu0 0.0
    %1388 = vmatpush.msra.mxu0 0.0
    %1389 = vmatpush.msra.mxu0 0.0
    %1390 = vmatpush.msra.mxu0 0.0
    %1391 = vmatpush.msra.mxu0 0.0
    %1392 = vmatpush.msra.mxu0 %v1355
    %1393 = vmatmul.f32.gmra.mxu0 %v161
    %v1394 = vpop.f32.mrf.mxu0
    %v1395 = vadd.f32 %v155, %v1394
    %1396 = vdwg.mxu0
    %v1397 = vmax.f32 %v1375, 0.0
    %v1398 = vmax.f32 %v1395, 0.0
    %1399 = vrot.lane.b32.xlu0 %v1397, 17
    %v1400 = vpop.permute.xlu0 %1399
    %1401 = vrot.lane.b32.xlu0 %v1398, 17
    %v1402 = vpop.permute.xlu0 %1401
    %v1403 = vsel %vm215, %v1400, %v1402
    %v1404 = vsel %vm215, %v1402, %v1400
    %v1405 = vld [vmem:[%s218] ss:$8 sm:$0x3]
    %v1407 = vperm.slane %v1405, 0
    %v1408 = vperm.slane %v1405, 1
    %v1411 = vmul.f32 %v1404, %v1407
    %v1412 = vmul.f32 %v1403, %v1408
    %1413 = vrot.lane.b32.xlu0 %v1397, 16
    %v1414 = vpop.permute.xlu0 %1413
    %1415 = vrot.lane.b32.xlu0 %v1398, 16
    %v1416 = vpop.permute.xlu0 %1415
    %v1417 = vsel %vm231, %v1414, %v1416
    %v1418 = vsel %vm231, %v1416, %v1414
    %v1419 = vld [vmem:[%s234] ss:$8 sm:$0x3]
    %v1421 = vperm.slane %v1419, 0
    %v1422 = vperm.slane %v1419, 1
    %v1425 = vmul.f32 %v1418, %v1421
    %v1426 = vmul.f32 %v1417, %v1422
    %1427 = vrot.lane.b32.xlu0 %v1397, 15
    %v1428 = vpop.permute.xlu0 %1427
    %1429 = vrot.lane.b32.xlu0 %v1398, 15
    %v1430 = vpop.permute.xlu0 %1429
    %v1431 = vsel %vm247, %v1428, %v1430
    %v1432 = vsel %vm247, %v1430, %v1428
    %v1433 = vld [vmem:[%s250] ss:$8 sm:$0x3]
    %v1435 = vperm.slane %v1433, 0
    %v1436 = vperm.slane %v1433, 1
    %v1439 = vmul.f32 %v1432, %v1435
    %v1440 = vmul.f32 %v1431, %v1436
    %1441 = vrot.lane.b32.xlu0 %v1397, 1
    %v1442 = vpop.permute.xlu0 %1441
    %1443 = vrot.lane.b32.xlu0 %v1398, 1
    %v1444 = vpop.permute.xlu0 %1443
    %v1445 = vsel %vm263, %v1442, %v1444
    %v1446 = vsel %vm263, %v1444, %v1442
    %v1447 = vld [vmem:[%s266] ss:$8 sm:$0x3]
    %v1449 = vperm.slane %v1447, 0
    %v1450 = vperm.slane %v1447, 1
    %v1453 = vmul.f32 %v1446, %v1449
    %v1454 = vmul.f32 %v1445, %v1450
    %v1455 = vld [vmem:[%s275] ss:$8 sm:$0x3]
    %v1457 = vperm.slane %v1455, 0
    %v1458 = vperm.slane %v1455, 1
    %v1461 = vmul.f32 %v1397, %v1457
    %v1462 = vmul.f32 %v1398, %v1458
    %1463 = vrot.lane.b32.xlu0 %v1397, 127
    %v1464 = vpop.permute.xlu0 %1463
    %1465 = vrot.lane.b32.xlu0 %v1398, 127
    %v1466 = vpop.permute.xlu0 %1465
    %v1467 = vsel %vm288, %v1464, %v1466
    %v1468 = vsel %vm288, %v1466, %v1464
    %v1469 = vld [vmem:[%s291] ss:$8 sm:$0x3]
    %v1471 = vperm.slane %v1469, 0
    %v1472 = vperm.slane %v1469, 1
    %v1475 = vmul.f32 %v1467, %v1471
    %v1476 = vmul.f32 %v1468, %v1472
    %1477 = vrot.lane.b32.xlu0 %v1397, 113
    %v1478 = vpop.permute.xlu0 %1477
    %1479 = vrot.lane.b32.xlu0 %v1398, 113
    %v1480 = vpop.permute.xlu0 %1479
    %v1481 = vsel %vm304, %v1478, %v1480
    %v1482 = vsel %vm304, %v1480, %v1478
    %v1483 = vld [vmem:[%s307] ss:$8 sm:$0x3]
    %v1485 = vperm.slane %v1483, 0
    %v1486 = vperm.slane %v1483, 1
    %v1489 = vmul.f32 %v1481, %v1485
    %v1490 = vmul.f32 %v1482, %v1486
    %1491 = vrot.lane.b32.xlu0 %v1397, 112
    %v1492 = vpop.permute.xlu0 %1491
    %1493 = vrot.lane.b32.xlu0 %v1398, 112
    %v1494 = vpop.permute.xlu0 %1493
    %v1495 = vsel %vm320, %v1492, %v1494
    %v1496 = vsel %vm320, %v1494, %v1492
    %v1497 = vld [vmem:[%s323] ss:$8 sm:$0x3]
    %v1499 = vperm.slane %v1497, 0
    %v1500 = vperm.slane %v1497, 1
    %v1503 = vmul.f32 %v1495, %v1499
    %v1504 = vmul.f32 %v1496, %v1500
    %1505 = vrot.lane.b32.xlu0 %v1397, 111
    %v1506 = vpop.permute.xlu0 %1505
    %1507 = vrot.lane.b32.xlu0 %v1398, 111
    %v1508 = vpop.permute.xlu0 %1507
    %v1509 = vsel %vm336, %v1506, %v1508
    %v1510 = vsel %vm336, %v1508, %v1506
    %v1511 = vld [vmem:[%s339] ss:$8 sm:$0x3]
    %v1513 = vperm.slane %v1511, 0
    %v1514 = vperm.slane %v1511, 1
    %v1517 = vmul.f32 %v1509, %v1513
    %v1518 = vmul.f32 %v1510, %v1514
    %v1521 = vrot.slane %v1425, 4
    %v1522 = vrot.slane %v1426, 4
    %v1527 = vrot.slane %v1453, 4
    %v1528 = vrot.slane %v1454, 4
    %v1533 = vrot.slane %v1475, 4
    %v1534 = vrot.slane %v1476, 4
    %v1539 = vrot.slane %v1503, 4
    %v1540 = vrot.slane %v1504, 4
    %v1543 = vsel %vm105, %v1411, %v1521
    %v1544 = vsel %vm105, %v1412, %v1522
    %v1545 = vsel %vm105, %v1439, %v1527
    %v1546 = vsel %vm105, %v1440, %v1528
    %v1547 = vsel %vm105, %v1461, %v1533
    %v1548 = vsel %vm105, %v1462, %v1534
    %v1549 = vsel %vm105, %v1489, %v1539
    %v1550 = vsel %vm105, %v1490, %v1540
    %v1552 = vsel %vm105, %v1517, 0
    %v1555 = vsel %vm105, %v1518, 0
    %1557 = vmatpush.msra.mxu0 0.0
    %1558 = vmatpush.msra.mxu0 0.0
    %1559 = vmatpush.msra.mxu0 0.0
    %1560 = vmatpush.msra.mxu0 0.0
    %1561 = vmatpush.msra.mxu0 0.0
    %1562 = vmatpush.msra.mxu0 0.0
    %1563 = vmatpush.msra.mxu0 0.0
    %1564 = vmatpush.msra.mxu0 0.0
    %1565 = vmatpush.msra.mxu0 0.0
    %1566 = vmatpush.msra.mxu0 0.0
    %1567 = vmatpush.msra.mxu0 0.0
    %1568 = vmatpush.msra.mxu0 %v1552
    %1569 = vmatpush.msra.mxu0 %v1549
    %1570 = vmatpush.msra.mxu0 %v1547
    %1571 = vmatpush.msra.mxu0 %v1545
    %1572 = vmatpush.msra.mxu0 %v1543
    %1573 = vmatmul.f32.gmra.mxu0 %v387
    %v1574 = vpop.f32.mrf.mxu0
    %v1575 = vadd.f32 %v383, %v1574
    %1576 = vdwg.mxu0
    %1577 = vmatpush.msra.mxu0 0.0
    %1578 = vmatpush.msra.mxu0 0.0
    %1579 = vmatpush.msra.mxu0 0.0
    %1580 = vmatpush.msra.mxu0 0.0
    %1581 = vmatpush.msra.mxu0 0.0
    %1582 = vmatpush.msra.mxu0 0.0
    %1583 = vmatpush.msra.mxu0 0.0
    %1584 = vmatpush.msra.mxu0 0.0
    %1585 = vmatpush.msra.mxu0 0.0
    %1586 = vmatpush.msra.mxu0 0.0
    %1587 = vmatpush.msra.mxu0 0.0
    %1588 = vmatpush.msra.mxu0 %v1555
    %1589 = vmatpush.msra.mxu0 %v1550
    %1590 = vmatpush.msra.mxu0 %v1548
    %1591 = vmatpush.msra.mxu0 %v1546
    %1592 = vmatpush.msra.mxu0 %v1544
    %1593 = vmatmul.f32.gmra.mxu0 %v387
    %v1594 = vpop.f32.mrf.mxu0
    %v1595 = vadd.f32 %v383, %v1594
    %1596 = vdwg.mxu0
    %v1597 = vmax.f32 %v1575, 0.0
    %v1598 = vmax.f32 %v1595, 0.0
    %1599 = vst [vmem:[#allocation1] ss:$2 sm:$0xff] %v1299
    %v1600 = vld.sshfl [vmem:[#allocation1] sm:$0xff pattern:$0x75316420]
    %v1601 = vld.sshfl [vmem:[#allocation1 + $0x8] sm:$0xff pattern:$0x75316420]
    %v1602 = vsel %vm105, %v1600, 0
    %v1604 = vsel %vm105, %v1601, 0
    %1606 = vmatpush.msra.mxu0 0.0
    %1607 = vmatpush.msra.mxu0 0.0
    %1608 = vmatpush.msra.mxu0 0.0
    %1609 = vmatpush.msra.mxu0 0.0
    %1610 = vmatpush.msra.mxu0 0.0
    %1611 = vmatpush.msra.mxu0 0.0
    %1612 = vmatpush.msra.mxu0 0.0
    %1613 = vmatpush.msra.mxu0 0.0
    %1614 = vmatpush.msra.mxu0 0.0
    %1615 = vmatpush.msra.mxu0 0.0
    %1616 = vmatpush.msra.mxu0 0.0
    %1617 = vmatpush.msra.mxu0 0.0
    %1618 = vmatpush.msra.mxu0 0.0
    %1619 = vmatpush.msra.mxu0 0.0
    %1620 = vmatpush.msra.mxu0 0.0
    %1621 = vmatpush.msra.mxu0 %v1602
    %1622 = vmatmul.f32.gmra.mxu0 %v446
    %v1623 = vpop.f32.mrf.mxu0
    %v1624 = vadd.f32 %v440, %v1623
    %1625 = vdwg.mxu0
    %1626 = vmatpush.msra.mxu0 0.0
    %1627 = vmatpush.msra.mxu0 0.0
    %1628 = vmatpush.msra.mxu0 0.0
    %1629 = vmatpush.msra.mxu0 0.0
    %1630 = vmatpush.msra.mxu0 0.0
    %1631 = vmatpush.msra.mxu0 0.0
    %1632 = vmatpush.msra.mxu0 0.0
    %1633 = vmatpush.msra.mxu0 0.0
    %1634 = vmatpush.msra.mxu0 0.0
    %1635 = vmatpush.msra.mxu0 0.0
    %1636 = vmatpush.msra.mxu0 0.0
    %1637 = vmatpush.msra.mxu0 0.0
    %1638 = vmatpush.msra.mxu0 0.0
    %1639 = vmatpush.msra.mxu0 0.0
    %1640 = vmatpush.msra.mxu0 0.0
    %1641 = vmatpush.msra.mxu0 %v1604
    %1642 = vmatmul.f32.gmra.mxu0 %v446
    %v1643 = vpop.f32.mrf.mxu0
    %v1644 = vadd.f32 %v440, %v1643
    %1645 = vdwg.mxu0
    %v1646 = vmax.f32 %v1624, 0.0
    %v1647 = vmax.f32 %v1644, 0.0
    %1648 = vrot.lane.b32.xlu0 %v1646, 34
    %v1649 = vpop.permute.xlu0 %1648
    %1650 = vrot.lane.b32.xlu0 %v1647, 34
    %v1651 = vpop.permute.xlu0 %1650
    %v1652 = vsel %vm498, %v1649, %v1651
    %v1653 = vsel %vm498, %v1651, %v1649
    %v1654 = vld [vmem:[#allocation4] ss:$8 sm:$0x3]
    %v1656 = vperm.slane %v1654, 0
    %v1657 = vperm.slane %v1654, 1
    %v1660 = vmul.f32 %v1653, %v1656
    %v1661 = vmul.f32 %v1652, %v1657
    %1662 = vrot.lane.b32.xlu0 %v1646, 33
    %v1663 = vpop.permute.xlu0 %1662
    %1664 = vrot.lane.b32.xlu0 %v1647, 33
    %v1665 = vpop.permute.xlu0 %1664
    %v1666 = vsel %vm513, %v1663, %v1665
    %v1667 = vsel %vm513, %v1665, %v1663
    %v1668 = vld [vmem:[%s516] ss:$8 sm:$0x3]
    %v1670 = vperm.slane %v1668, 0
    %v1671 = vperm.slane %v1668, 1
    %v1674 = vmul.f32 %v1667, %v1670
    %v1675 = vmul.f32 %v1666, %v1671
    %1676 = vrot.lane.b32.xlu0 %v1646, 32
    %v1677 = vpop.permute.xlu0 %1676
    %1678 = vrot.lane.b32.xlu0 %v1647, 32
    %v1679 = vpop.permute.xlu0 %1678
    %v1680 = vsel %vm529, %v1677, %v1679
    %v1681 = vsel %vm529, %v1679, %v1677
    %v1682 = vld [vmem:[%s532] ss:$8 sm:$0x3]
    %v1684 = vperm.slane %v1682, 0
    %v1685 = vperm.slane %v1682, 1
    %v1688 = vmul.f32 %v1681, %v1684
    %v1689 = vmul.f32 %v1680, %v1685
    %1690 = vrot.lane.b32.xlu0 %v1646, 31
    %v1691 = vpop.permute.xlu0 %1690
    %1692 = vrot.lane.b32.xlu0 %v1647, 31
    %v1693 = vpop.permute.xlu0 %1692
    %v1694 = vsel %vm545, %v1691, %v1693
    %v1695 = vsel %vm545, %v1693, %v1691
    %v1696 = vld [vmem:[%s548] ss:$8 sm:$0x3]
    %v1698 = vperm.slane %v1696, 0
    %v1699 = vperm.slane %v1696, 1
    %v1702 = vmul.f32 %v1695, %v1698
    %v1703 = vmul.f32 %v1694, %v1699
    %1704 = vrot.lane.b32.xlu0 %v1646, 30
    %v1705 = vpop.permute.xlu0 %1704
    %1706 = vrot.lane.b32.xlu0 %v1647, 30
    %v1707 = vpop.permute.xlu0 %1706
    %v1708 = vsel %vm561, %v1705, %v1707
    %v1709 = vsel %vm561, %v1707, %v1705
    %v1710 = vld [vmem:[%s564] ss:$8 sm:$0x3]
    %v1712 = vperm.slane %v1710, 0
    %v1713 = vperm.slane %v1710, 1
    %v1716 = vmul.f32 %v1709, %v1712
    %v1717 = vmul.f32 %v1708, %v1713
    %1718 = vrot.lane.b32.xlu0 %v1646, 18
    %v1719 = vpop.permute.xlu0 %1718
    %1720 = vrot.lane.b32.xlu0 %v1647, 18
    %v1721 = vpop.permute.xlu0 %1720
    %v1722 = vsel %vm577, %v1719, %v1721
    %v1723 = vsel %vm577, %v1721, %v1719
    %v1724 = vld [vmem:[%s580] ss:$8 sm:$0x3]
    %v1726 = vperm.slane %v1724, 0
    %v1727 = vperm.slane %v1724, 1
    %v1730 = vmul.f32 %v1723, %v1726
    %v1731 = vmul.f32 %v1722, %v1727
    %1732 = vrot.lane.b32.xlu0 %v1646, 17
    %v1733 = vpop.permute.xlu0 %1732
    %1734 = vrot.lane.b32.xlu0 %v1647, 17
    %v1735 = vpop.permute.xlu0 %1734
    %v1736 = vsel %vm215, %v1733, %v1735
    %v1737 = vsel %vm215, %v1735, %v1733
    %v1738 = vmul.f32 %v1737, %v1407
    %v1739 = vmul.f32 %v1736, %v1408
    %1740 = vrot.lane.b32.xlu0 %v1646, 16
    %v1741 = vpop.permute.xlu0 %1740
    %1742 = vrot.lane.b32.xlu0 %v1647, 16
    %v1743 = vpop.permute.xlu0 %1742
    %v1744 = vsel %vm231, %v1741, %v1743
    %v1745 = vsel %vm231, %v1743, %v1741
    %v1746 = vmul.f32 %v1745, %v1421
    %v1747 = vmul.f32 %v1744, %v1422
    %1748 = vrot.lane.b32.xlu0 %v1646, 15
    %v1749 = vpop.permute.xlu0 %1748
    %1750 = vrot.lane.b32.xlu0 %v1647, 15
    %v1751 = vpop.permute.xlu0 %1750
    %v1752 = vsel %vm247, %v1749, %v1751
    %v1753 = vsel %vm247, %v1751, %v1749
    %v1754 = vmul.f32 %v1753, %v1435
    %v1755 = vmul.f32 %v1752, %v1436
    %1756 = vrot.lane.b32.xlu0 %v1646, 14
    %v1757 = vpop.permute.xlu0 %1756
    %1758 = vrot.lane.b32.xlu0 %v1647, 14
    %v1759 = vpop.permute.xlu0 %1758
    %v1760 = vsel %vm617, %v1757, %v1759
    %v1761 = vsel %vm617, %v1759, %v1757
    %v1762 = vld [vmem:[%s620] ss:$8 sm:$0x3]
    %v1764 = vperm.slane %v1762, 0
    %v1765 = vperm.slane %v1762, 1
    %v1768 = vmul.f32 %v1761, %v1764
    %v1769 = vmul.f32 %v1760, %v1765
    %1770 = vrot.lane.b32.xlu0 %v1646, 2
    %v1771 = vpop.permute.xlu0 %1770
    %1772 = vrot.lane.b32.xlu0 %v1647, 2
    %v1773 = vpop.permute.xlu0 %1772
    %v1774 = vsel %vm633, %v1771, %v1773
    %v1775 = vsel %vm633, %v1773, %v1771
    %v1776 = vld [vmem:[%s636] ss:$8 sm:$0x3]
    %v1778 = vperm.slane %v1776, 0
    %v1779 = vperm.slane %v1776, 1
    %v1782 = vmul.f32 %v1775, %v1778
    %v1783 = vmul.f32 %v1774, %v1779
    %1784 = vrot.lane.b32.xlu0 %v1646, 1
    %v1785 = vpop.permute.xlu0 %1784
    %1786 = vrot.lane.b32.xlu0 %v1647, 1
    %v1787 = vpop.permute.xlu0 %1786
    %v1788 = vsel %vm263, %v1785, %v1787
    %v1789 = vsel %vm263, %v1787, %v1785
    %v1790 = vmul.f32 %v1789, %v1449
    %v1791 = vmul.f32 %v1788, %v1450
    %v1792 = vmul.f32 %v1646, %v1457
    %v1793 = vmul.f32 %v1647, %v1458
    %1794 = vrot.lane.b32.xlu0 %v1646, 127
    %v1795 = vpop.permute.xlu0 %1794
    %1796 = vrot.lane.b32.xlu0 %v1647, 127
    %v1797 = vpop.permute.xlu0 %1796
    %v1798 = vsel %vm288, %v1795, %v1797
    %v1799 = vsel %vm288, %v1797, %v1795
    %v1800 = vmul.f32 %v1798, %v1471
    %v1801 = vmul.f32 %v1799, %v1472
    %1802 = vrot.lane.b32.xlu0 %v1646, 126
    %v1803 = vpop.permute.xlu0 %1802
    %1804 = vrot.lane.b32.xlu0 %v1647, 126
    %v1805 = vpop.permute.xlu0 %1804
    %v1806 = vsel %vm667, %v1803, %v1805
    %v1807 = vsel %vm667, %v1805, %v1803
    %v1808 = vld [vmem:[%s670] ss:$8 sm:$0x3]
    %v1810 = vperm.slane %v1808, 0
    %v1811 = vperm.slane %v1808, 1
    %v1814 = vmul.f32 %v1806, %v1810
    %v1815 = vmul.f32 %v1807, %v1811
    %1816 = vrot.lane.b32.xlu0 %v1646, 114
    %v1817 = vpop.permute.xlu0 %1816
    %1818 = vrot.lane.b32.xlu0 %v1647, 114
    %v1819 = vpop.permute.xlu0 %1818
    %v1820 = vsel %vm683, %v1817, %v1819
    %v1821 = vsel %vm683, %v1819, %v1817
    %v1822 = vld [vmem:[%s686] ss:$8 sm:$0x3]
    %v1824 = vperm.slane %v1822, 0
    %v1825 = vperm.slane %v1822, 1
    %v1828 = vmul.f32 %v1820, %v1824
    %v1829 = vmul.f32 %v1821, %v1825
    %1830 = vrot.lane.b32.xlu0 %v1646, 113
    %v1831 = vpop.permute.xlu0 %1830
    %1832 = vrot.lane.b32.xlu0 %v1647, 113
    %v1833 = vpop.permute.xlu0 %1832
    %v1834 = vsel %vm304, %v1831, %v1833
    %v1835 = vsel %vm304, %v1833, %v1831
    %v1836 = vmul.f32 %v1834, %v1485
    %v1837 = vmul.f32 %v1835, %v1486
    %1838 = vrot.lane.b32.xlu0 %v1646, 112
    %v1839 = vpop.permute.xlu0 %1838
    %1840 = vrot.lane.b32.xlu0 %v1647, 112
    %v1841 = vpop.permute.xlu0 %1840
    %v1842 = vsel %vm320, %v1839, %v1841
    %v1843 = vsel %vm320, %v1841, %v1839
    %v1844 = vmul.f32 %v1842, %v1499
    %v1845 = vmul.f32 %v1843, %v1500
    %1846 = vrot.lane.b32.xlu0 %v1646, 111
    %v1847 = vpop.permute.xlu0 %1846
    %1848 = vrot.lane.b32.xlu0 %v1647, 111
    %v1849 = vpop.permute.xlu0 %1848
    %v1850 = vsel %vm336, %v1847, %v1849
    %v1851 = vsel %vm336, %v1849, %v1847
    %v1852 = vmul.f32 %v1850, %v1513
    %v1853 = vmul.f32 %v1851, %v1514
    %1854 = vrot.lane.b32.xlu0 %v1646, 110
    %v1855 = vpop.permute.xlu0 %1854
    %1856 = vrot.lane.b32.xlu0 %v1647, 110
    %v1857 = vpop.permute.xlu0 %1856
    %v1858 = vsel %vm723, %v1855, %v1857
    %v1859 = vsel %vm723, %v1857, %v1855
    %v1860 = vld [vmem:[%s726] ss:$8 sm:$0x3]
    %v1862 = vperm.slane %v1860, 0
    %v1863 = vperm.slane %v1860, 1
    %v1866 = vmul.f32 %v1858, %v1862
    %v1867 = vmul.f32 %v1859, %v1863
    %1868 = vrot.lane.b32.xlu0 %v1646, 98
    %v1869 = vpop.permute.xlu0 %1868
    %1870 = vrot.lane.b32.xlu0 %v1647, 98
    %v1871 = vpop.permute.xlu0 %1870
    %v1872 = vsel %vm739, %v1869, %v1871
    %v1873 = vsel %vm739, %v1871, %v1869
    %v1874 = vld [vmem:[%s742] ss:$8 sm:$0x3]
    %v1876 = vperm.slane %v1874, 0
    %v1877 = vperm.slane %v1874, 1
    %v1880 = vmul.f32 %v1872, %v1876
    %v1881 = vmul.f32 %v1873, %v1877
    %1882 = vrot.lane.b32.xlu0 %v1646, 97
    %v1883 = vpop.permute.xlu0 %1882
    %1884 = vrot.lane.b32.xlu0 %v1647, 97
    %v1885 = vpop.permute.xlu0 %1884
    %v1886 = vsel %vm755, %v1883, %v1885
    %v1887 = vsel %vm755, %v1885, %v1883
    %v1888 = vld [vmem:[%s758] ss:$8 sm:$0x3]
    %v1890 = vperm.slane %v1888, 0
    %v1891 = vperm.slane %v1888, 1
    %v1894 = vmul.f32 %v1886, %v1890
    %v1895 = vmul.f32 %v1887, %v1891
    %1896 = vrot.lane.b32.xlu0 %v1646, 96
    %v1897 = vpop.permute.xlu0 %1896
    %1898 = vrot.lane.b32.xlu0 %v1647, 96
    %v1899 = vpop.permute.xlu0 %1898
    %v1900 = vsel %vm771, %v1897, %v1899
    %v1901 = vsel %vm771, %v1899, %v1897
    %v1902 = vld [vmem:[%s774] ss:$8 sm:$0x3]
    %v1904 = vperm.slane %v1902, 0
    %v1905 = vperm.slane %v1902, 1
    %v1908 = vmul.f32 %v1900, %v1904
    %v1909 = vmul.f32 %v1901, %v1905
    %1910 = vrot.lane.b32.xlu0 %v1646, 95
    %v1911 = vpop.permute.xlu0 %1910
    %1912 = vrot.lane.b32.xlu0 %v1647, 95
    %v1913 = vpop.permute.xlu0 %1912
    %v1914 = vsel %vm787, %v1911, %v1913
    %v1915 = vsel %vm787, %v1913, %v1911
    %v1916 = vld [vmem:[%s790] ss:$8 sm:$0x3]
    %v1918 = vperm.slane %v1916, 0
    %v1919 = vperm.slane %v1916, 1
    %v1922 = vmul.f32 %v1914, %v1918
    %v1923 = vmul.f32 %v1915, %v1919
    %1924 = vrot.lane.b32.xlu0 %v1646, 94
    %v1925 = vpop.permute.xlu0 %1924
    %1926 = vrot.lane.b32.xlu0 %v1647, 94
    %v1927 = vpop.permute.xlu0 %1926
    %v1928 = vsel %vm803, %v1925, %v1927
    %v1929 = vsel %vm803, %v1927, %v1925
    %v1930 = vld [vmem:[%s806] ss:$8 sm:$0x3]
    %v1932 = vperm.slane %v1930, 0
    %v1933 = vperm.slane %v1930, 1
    %v1936 = vmul.f32 %v1928, %v1932
    %v1937 = vmul.f32 %v1929, %v1933
    %v1940 = vrot.slane %v1674, 6
    %v1941 = vrot.slane %v1675, 6
    %v1946 = vrot.slane %v1688, 4
    %v1947 = vrot.slane %v1689, 4
    %v1952 = vrot.slane %v1702, 2
    %v1953 = vrot.slane %v1703, 2
    %v1958 = vrot.slane %v1730, 6
    %v1959 = vrot.slane %v1731, 6
    %v1964 = vrot.slane %v1738, 4
    %v1965 = vrot.slane %v1739, 4
    %v1970 = vrot.slane %v1746, 2
    %v1971 = vrot.slane %v1747, 2
    %v1976 = vrot.slane %v1768, 6
    %v1977 = vrot.slane %v1769, 6
    %v1982 = vrot.slane %v1782, 4
    %v1983 = vrot.slane %v1783, 4
    %v1988 = vrot.slane %v1790, 2
    %v1989 = vrot.slane %v1791, 2
    %v1994 = vrot.slane %v1800, 6
    %v1995 = vrot.slane %v1801, 6
    %v2000 = vrot.slane %v1814, 4
    %v2001 = vrot.slane %v1815, 4
    %v2006 = vrot.slane %v1828, 2
    %v2007 = vrot.slane %v1829, 2
    %v2010 = vsel %vm887, %v1660, %v1940
    %v2011 = vsel %vm887, %v1661, %v1941
    %v2012 = vsel %vm105, %v2010, %v1946
    %v2013 = vsel %vm105, %v2011, %v1947
    %v2014 = vsel %vm892, %v2012, %v1952
    %v2015 = vsel %vm892, %v2013, %v1953
    %v2016 = vsel %vm887, %v1716, %v1958
    %v2017 = vsel %vm887, %v1717, %v1959
    %v2018 = vsel %vm105, %v2016, %v1964
    %v2019 = vsel %vm105, %v2017, %v1965
    %v2020 = vsel %vm892, %v2018, %v1970
    %v2021 = vsel %vm892, %v2019, %v1971
    %v2022 = vsel %vm887, %v1754, %v1976
    %v2023 = vsel %vm887, %v1755, %v1977
    %v2024 = vsel %vm105, %v2022, %v1982
    %v2025 = vsel %vm105, %v2023, %v1983
    %v2026 = vsel %vm892, %v2024, %v1988
    %v2027 = vsel %vm892, %v2025, %v1989
    %v2028 = vsel %vm887, %v1792, %v1994
    %v2029 = vsel %vm887, %v1793, %v1995
    %v2030 = vsel %vm105, %v2028, %v2000
    %v2031 = vsel %vm105, %v2029, %v2001
    %v2032 = vsel %vm892, %v2030, %v2006
    %v2033 = vsel %vm892, %v2031, %v2007
    %v2036 = vrot.slane %v1844, 6
    %v2037 = vrot.slane %v1845, 6
    %v2042 = vrot.slane %v1852, 4
    %v2043 = vrot.slane %v1853, 4
    %v2048 = vrot.slane %v1866, 2
    %v2049 = vrot.slane %v1867, 2
    %v2054 = vrot.slane %v1894, 6
    %v2055 = vrot.slane %v1895, 6
    %v2060 = vrot.slane %v1908, 4
    %v2061 = vrot.slane %v1909, 4
    %v2066 = vrot.slane %v1922, 2
    %v2067 = vrot.slane %v1923, 2
    %v2070 = vsel %vm887, %v1836, %v2036
    %v2071 = vsel %vm887, %v1837, %v2037
    %v2072 = vsel %vm105, %v2070, %v2042
    %v2073 = vsel %vm105, %v2071, %v2043
    %v2074 = vsel %vm892, %v2072, %v2048
    %v2075 = vsel %vm892, %v2073, %v2049
    %v2076 = vsel %vm887, %v1880, %v2054
    %v2077 = vsel %vm887, %v1881, %v2055
    %v2078 = vsel %vm105, %v2076, %v2060
    %v2079 = vsel %vm105, %v2077, %v2061
    %v2080 = vsel %vm892, %v2078, %v2066
    %v2081 = vsel %vm892, %v2079, %v2067
    %v2083 = vsel %vm887, %v1936, 0
    %v2086 = vsel %vm887, %v1937, 0
    %2088 = vmatpush.msra.mxu0 0.0
    %2089 = vmatpush.msra.mxu0 0.0
    %2090 = vmatpush.msra.mxu0 0.0
    %2091 = vmatpush.msra.mxu0 0.0
    %2092 = vmatpush.msra.mxu0 0.0
    %2093 = vmatpush.msra.mxu0 0.0
    %2094 = vmatpush.msra.mxu0 0.0
    %2095 = vmatpush.msra.mxu0 0.0
    %2096 = vmatpush.msra.mxu0 0.0
    %2097 = vmatpush.msra.mxu0 %v2083
    %2098 = vmatpush.msra.mxu0 %v2080
    %2099 = vmatpush.msra.mxu0 %v2074
    %2100 = vmatpush.msra.mxu0 %v2032
    %2101 = vmatpush.msra.mxu0 %v2026
    %2102 = vmatpush.msra.mxu0 %v2020
    %2103 = vmatpush.msra.mxu0 %v2014
    %2104 = vmatmul.f32.gmra.mxu0 %v968
    %v2105 = vpop.f32.mrf.mxu0
    %v2106 = vadd.f32 %v964, %v2105
    %2107 = vdwg.mxu0
    %2108 = vmatpush.msra.mxu0 0.0
    %2109 = vmatpush.msra.mxu0 0.0
    %2110 = vmatpush.msra.mxu0 0.0
    %2111 = vmatpush.msra.mxu0 0.0
    %2112 = vmatpush.msra.mxu0 0.0
    %2113 = vmatpush.msra.mxu0 0.0
    %2114 = vmatpush.msra.mxu0 0.0
    %2115 = vmatpush.msra.mxu0 0.0
    %2116 = vmatpush.msra.mxu0 0.0
    %2117 = vmatpush.msra.mxu0 %v2086
    %2118 = vmatpush.msra.mxu0 %v2081
    %2119 = vmatpush.msra.mxu0 %v2075
    %2120 = vmatpush.msra.mxu0 %v2033
    %2121 = vmatpush.msra.mxu0 %v2027
    %2122 = vmatpush.msra.mxu0 %v2021
    %2123 = vmatpush.msra.mxu0 %v2015
    %2124 = vmatmul.f32.gmra.mxu0 %v968
    %v2125 = vpop.f32.mrf.mxu0
    %v2126 = vadd.f32 %v964, %v2125
    %2127 = vdwg.mxu0
    %v2128 = vmax.f32 %v2106, 0.0
    %v2129 = vmax.f32 %v2126, 0.0
    %vm2130 = vcmp.gt.f32.partialorder %v1405, 0.5
    %2131 = vst [vmem:[#allocation1] ss:$2 sm:$0xff] %v1299
    %v2132 = vld.sshfl [vmem:[#allocation1] sm:$0xff pattern:$0x75316420]
    %v2133 = vld.sshfl [vmem:[#allocation1 + $0x8] sm:$0xff pattern:$0x75316420]
    %2136 = vrot.lane.b32.xlu0 %v2132, 17
    %v2137 = vpop.permute.xlu0 %2136
    %2138 = vrot.lane.b32.xlu0 %v2133, 17
    %v2139 = vpop.permute.xlu0 %2138
    %v2140 = vsel %vm215, %v2137, %v2139
    %v2141 = vsel %vm215, %v2139, %v2137
    %v2142 = vsel %vm2130, 1, 0
    %v2143 = vperm.slane %v2142, 0
    %v2144 = vperm.slane %v2142, 1
    %vm2145 = vcmp.eq.s32.totalorder %v2143, 1
    %vm2146 = vcmp.eq.s32.totalorder %v2144, 1
    %v2147 = vsel %vm2145, %v2141, -inf
    %v2148 = vsel %vm2146, %v2140, -inf
    %v2151 = vrot.slane %v2148, 4
    %v2152 = vsel %vm105, %v2147, %v2151
    %v2154 = vmax.f32 %v1299, %v2152
    %vm2155 = vcmp.gt.f32.partialorder %v1419, 0.5
    %2156 = vst [vmem:[#allocation1] ss:$2 sm:$0xff] %v1299
    %v2157 = vld.sshfl [vmem:[#allocation1] sm:$0xff pattern:$0x75316420]
    %v2158 = vld.sshfl [vmem:[#allocation1 + $0x8] sm:$0xff pattern:$0x75316420]
    %2161 = vrot.lane.b32.xlu0 %v2157, 16
    %v2162 = vpop.permute.xlu0 %2161
    %2163 = vrot.lane.b32.xlu0 %v2158, 16
    %v2164 = vpop.permute.xlu0 %2163
    %v2165 = vsel %vm231, %v2162, %v2164
    %v2166 = vsel %vm231, %v2164, %v2162
    %v2167 = vsel %vm2155, 1, 0
    %v2168 = vperm.slane %v2167, 0
    %v2169 = vperm.slane %v2167, 1
    %vm2170 = vcmp.eq.s32.totalorder %v2168, 1
    %vm2171 = vcmp.eq.s32.totalorder %v2169, 1
    %v2172 = vsel %vm2170, %v2166, -inf
    %v2173 = vsel %vm2171, %v2165, -inf
    %v2176 = vrot.slane %v2173, 4
    %v2177 = vsel %vm105, %v2172, %v2176
    %v2179 = vmax.f32 %v2154, %v2177
    %vm2180 = vcmp.gt.f32.partialorder %v1433, 0.5
    %2181 = vst [vmem:[#allocation1] ss:$2 sm:$0xff] %v1299
    %v2182 = vld.sshfl [vmem:[#allocation1] sm:$0xff pattern:$0x75316420]
    %v2183 = vld.sshfl [vmem:[#allocation1 + $0x8] sm:$0xff pattern:$0x75316420]
    %2186 = vrot.lane.b32.xlu0 %v2182, 15
    %v2187 = vpop.permute.xlu0 %2186
    %2188 = vrot.lane.b32.xlu0 %v2183, 15
    %v2189 = vpop.permute.xlu0 %2188
    %v2190 = vsel %vm247, %v2187, %v2189
    %v2191 = vsel %vm247, %v2189, %v2187
    %v2192 = vsel %vm2180, 1, 0
    %v2193 = vperm.slane %v2192, 0
    %v2194 = vperm.slane %v2192, 1
    %vm2195 = vcmp.eq.s32.totalorder %v2193, 1
    %vm2196 = vcmp.eq.s32.totalorder %v2194, 1
    %v2197 = vsel %vm2195, %v2191, -inf
    %v2198 = vsel %vm2196, %v2190, -inf
    %v2201 = vrot.slane %v2198, 4
    %v2202 = vsel %vm105, %v2197, %v2201
    %v2204 = vmax.f32 %v2179, %v2202
    %vm2205 = vcmp.gt.f32.partialorder %v1447, 0.5
    %2206 = vst [vmem:[#allocation1] ss:$2 sm:$0xff] %v1299
    %v2207 = vld.sshfl [vmem:[#allocation1] sm:$0xff pattern:$0x75316420]
    %v2208 = vld.sshfl [vmem:[#allocation1 + $0x8] sm:$0xff pattern:$0x75316420]
    %2211 = vrot.lane.b32.xlu0 %v2207, 1
    %v2212 = vpop.permute.xlu0 %2211
    %2213 = vrot.lane.b32.xlu0 %v2208, 1
    %v2214 = vpop.permute.xlu0 %2213
    %v2215 = vsel %vm263, %v2212, %v2214
    %v2216 = vsel %vm263, %v2214, %v2212
    %v2217 = vsel %vm2205, 1, 0
    %v2218 = vperm.slane %v2217, 0
    %v2219 = vperm.slane %v2217, 1
    %vm2220 = vcmp.eq.s32.totalorder %v2218, 1
    %vm2221 = vcmp.eq.s32.totalorder %v2219, 1
    %v2222 = vsel %vm2220, %v2216, -inf
    %v2223 = vsel %vm2221, %v2215, -inf
    %v2226 = vrot.slane %v2223, 4
    %v2227 = vsel %vm105, %v2222, %v2226
    %v2229 = vmax.f32 %v2204, %v2227
    %vm2230 = vcmp.gt.f32.partialorder %v1469, 0.5
    %2231 = vst [vmem:[#allocation1] ss:$2 sm:$0xff] %v1299
    %v2232 = vld.sshfl [vmem:[#allocation1] sm:$0xff pattern:$0x75316420]
    %v2233 = vld.sshfl [vmem:[#allocation1 + $0x8] sm:$0xff pattern:$0x75316420]
    %2236 = vrot.lane.b32.xlu0 %v2232, 127
    %v2237 = vpop.permute.xlu0 %2236
    %2238 = vrot.lane.b32.xlu0 %v2233, 127
    %v2239 = vpop.permute.xlu0 %2238
    %v2240 = vsel %vm288, %v2237, %v2239
    %v2241 = vsel %vm288, %v2239, %v2237
    %v2242 = vsel %vm2230, 1, 0
    %v2243 = vperm.slane %v2242, 0
    %v2244 = vperm.slane %v2242, 1
    %vm2245 = vcmp.eq.s32.totalorder %v2243, 1
    %vm2246 = vcmp.eq.s32.totalorder %v2244, 1
    %v2247 = vsel %vm2245, %v2240, -inf
    %v2248 = vsel %vm2246, %v2241, -inf
    %v2251 = vrot.slane %v2248, 4
    %v2252 = vsel %vm105, %v2247, %v2251
    %v2254 = vmax.f32 %v2229, %v2252
    %vm2255 = vcmp.gt.f32.partialorder %v1483, 0.5
    %2256 = vst [vmem:[#allocation1] ss:$2 sm:$0xff] %v1299
    %v2257 = vld.sshfl [vmem:[#allocation1] sm:$0xff pattern:$0x75316420]
    %v2258 = vld.sshfl [vmem:[#allocation1 + $0x8] sm:$0xff pattern:$0x75316420]
    %2261 = vrot.lane.b32.xlu0 %v2257, 113
    %v2262 = vpop.permute.xlu0 %2261
    %2263 = vrot.lane.b32.xlu0 %v2258, 113
    %v2264 = vpop.permute.xlu0 %2263
    %v2265 = vsel %vm304, %v2262, %v2264
    %v2266 = vsel %vm304, %v2264, %v2262
    %v2267 = vsel %vm2255, 1, 0
    %v2268 = vperm.slane %v2267, 0
    %v2269 = vperm.slane %v2267, 1
    %vm2270 = vcmp.eq.s32.totalorder %v2268, 1
    %vm2271 = vcmp.eq.s32.totalorder %v2269, 1
    %v2272 = vsel %vm2270, %v2265, -inf
    %v2273 = vsel %vm2271, %v2266, -inf
    %v2276 = vrot.slane %v2273, 4
    %v2277 = vsel %vm105, %v2272, %v2276
    %v2279 = vmax.f32 %v2254, %v2277
    %vm2280 = vcmp.gt.f32.partialorder %v1497, 0.5
    %2281 = vst [vmem:[#allocation1] ss:$2 sm:$0xff] %v1299
    %v2282 = vld.sshfl [vmem:[#allocation1] sm:$0xff pattern:$0x75316420]
    %v2283 = vld.sshfl [vmem:[#allocation1 + $0x8] sm:$0xff pattern:$0x75316420]
    %2286 = vrot.lane.b32.xlu0 %v2282, 112
    %v2287 = vpop.permute.xlu0 %2286
    %2288 = vrot.lane.b32.xlu0 %v2283, 112
    %v2289 = vpop.permute.xlu0 %2288
    %v2290 = vsel %vm320, %v2287, %v2289
    %v2291 = vsel %vm320, %v2289, %v2287
    %v2292 = vsel %vm2280, 1, 0
    %v2293 = vperm.slane %v2292, 0
    %v2294 = vperm.slane %v2292, 1
    %vm2295 = vcmp.eq.s32.totalorder %v2293, 1
    %vm2296 = vcmp.eq.s32.totalorder %v2294, 1
    %v2297 = vsel %vm2295, %v2290, -inf
    %v2298 = vsel %vm2296, %v2291, -inf
    %v2301 = vrot.slane %v2298, 4
    %v2302 = vsel %vm105, %v2297, %v2301
    %v2304 = vmax.f32 %v2279, %v2302
    %vm2305 = vcmp.gt.f32.partialorder %v1511, 0.5
    %2306 = vst [vmem:[#allocation1] ss:$2 sm:$0xff] %v1299
    %v2307 = vld.sshfl [vmem:[#allocation1] sm:$0xff pattern:$0x75316420]
    %v2308 = vld.sshfl [vmem:[#allocation1 + $0x8] sm:$0xff pattern:$0x75316420]
    %2311 = vrot.lane.b32.xlu0 %v2307, 111
    %v2312 = vpop.permute.xlu0 %2311
    %2313 = vrot.lane.b32.xlu0 %v2308, 111
    %v2314 = vpop.permute.xlu0 %2313
    %v2315 = vsel %vm336, %v2312, %v2314
    %v2316 = vsel %vm336, %v2314, %v2312
    %v2317 = vsel %vm2305, 1, 0
    %v2318 = vperm.slane %v2317, 0
    %v2319 = vperm.slane %v2317, 1
    %vm2320 = vcmp.eq.s32.totalorder %v2318, 1
    %vm2321 = vcmp.eq.s32.totalorder %v2319, 1
    %v2322 = vsel %vm2320, %v2315, -inf
    %v2323 = vsel %vm2321, %v2316, -inf
    %v2326 = vrot.slane %v2323, 4
    %v2327 = vsel %vm105, %v2322, %v2326
    %v2329 = vmax.f32 %v2304, %v2327
    %2331 = vst [vmem:[#allocation1] ss:$2 sm:$0xff] %v2329
    %v2332 = vld.sshfl [vmem:[#allocation1] sm:$0xff pattern:$0x75316420]
    %v2333 = vld.sshfl [vmem:[#allocation1 + $0x8] sm:$0xff pattern:$0x75316420]
    %v2334 = vsel %vm105, %v2332, 0
    %v2336 = vsel %vm105, %v2333, 0
    %2338 = vmatpush.msra.mxu0 0.0
    %2339 = vmatpush.msra.mxu0 0.0
    %2340 = vmatpush.msra.mxu0 0.0
    %2341 = vmatpush.msra.mxu0 0.0
    %2342 = vmatpush.msra.mxu0 0.0
    %2343 = vmatpush.msra.mxu0 0.0
    %2344 = vmatpush.msra.mxu0 0.0
    %2345 = vmatpush.msra.mxu0 0.0
    %2346 = vmatpush.msra.mxu0 0.0
    %2347 = vmatpush.msra.mxu0 0.0
    %2348 = vmatpush.msra.mxu0 0.0
    %2349 = vmatpush.msra.mxu0 0.0
    %2350 = vmatpush.msra.mxu0 0.0
    %2351 = vmatpush.msra.mxu0 0.0
    %2352 = vmatpush.msra.mxu0 0.0
    %2353 = vmatpush.msra.mxu0 %v2334
    %2354 = vmatmul.f32.gmra.mxu0 %v1228
    %v2355 = vpop.f32.mrf.mxu0
    %v2356 = vadd.f32 %v1221, %v2355
    %2357 = vdwg.mxu0
    %2358 = vmatpush.msra.mxu0 0.0
    %2359 = vmatpush.msra.mxu0 0.0
    %2360 = vmatpush.msra.mxu0 0.0
    %2361 = vmatpush.msra.mxu0 0.0
    %2362 = vmatpush.msra.mxu0 0.0
    %2363 = vmatpush.msra.mxu0 0.0
    %2364 = vmatpush.msra.mxu0 0.0
    %2365 = vmatpush.msra.mxu0 0.0
    %2366 = vmatpush.msra.mxu0 0.0
    %2367 = vmatpush.msra.mxu0 0.0
    %2368 = vmatpush.msra.mxu0 0.0
    %2369 = vmatpush.msra.mxu0 0.0
    %2370 = vmatpush.msra.mxu0 0.0
    %2371 = vmatpush.msra.mxu0 0.0
    %2372 = vmatpush.msra.mxu0 0.0
    %2373 = vmatpush.msra.mxu0 %v2336
    %2374 = vmatmul.f32.gmra.mxu0 %v1228
    %v2375 = vpop.f32.mrf.mxu0
    %v2376 = vadd.f32 %v1221, %v2375
    %2377 = vdwg.mxu0
    %v2378 = vmax.f32 %v2356, 0.0
    %v2379 = vmax.f32 %v2376, 0.0
    %s2380 = scalar_lea.vmem %s14, 48
    %2381 = vst [vmem:[%s2380] sm:$0xf] %v1348
    %2382 = vst [vmem:[%s2380 + $0x8] sm:$0xf] %v1349
    %v2385 = vrot.slane %v1597, 4
    %v2386 = vrot.slane %v1598, 4
    %2389 = vst [vmem:[%s2380] sm:$0xf0] %v2385
    %2390 = vst [vmem:[%s2380 + $0x8] sm:$0xf0] %v2386
    %2391 = vst [vmem:[%s2380 + $0x10] sm:$0xf] %v2385
    %2392 = vst [vmem:[%s2380 + $0x18] sm:$0xf] %v2386
    %v2395 = vrot.slane %v2128, 4
    %v2396 = vrot.slane %v2129, 4
    %2399 = vst [vmem:[%s2380 + $0x10] sm:$0xf0] %v2395
    %2400 = vst [vmem:[%s2380 + $0x18] sm:$0xf0] %v2396
    %2401 = vst [vmem:[%s2380 + $0x20] sm:$0xf] %v2378
    %2402 = vst [vmem:[%s2380 + $0x28] sm:$0xf] %v2379
    // Predicated region
    $region66: #{tpu_custom_call.1} parent=1 // pred_check
      _
    $region67: #{tpu_custom_call.1} parent=1 // pred_check_branch
      %2404 = sbr.rel (0) target = $region69
    $region68: #{tpu_custom_call.1} parent=1 // pred_region
      _
    $region69: #{tpu_custom_call.1} parent=1 // pred_fallthru
      _
    // Predicated region
    $region70: #{tpu_custom_call.1} parent=1 // pred_check
      _
    $region71: #{tpu_custom_call.1} parent=1 // pred_check_branch
      %2406 = sbr.rel (0) target = $region73
    $region72: #{tpu_custom_call.1} parent=1 // pred_region
      _
    $region73: #{tpu_custom_call.1} parent=1 // pred_fallthru
      _
    %2407 = vsyncpa [#allocation3], 1
    %2408 = vsyncpa [#allocation5], 1

</llo_original>
